<compile_context>
chip_gen: v5e
topology: v5e:2x2
jax: 0.10.0
libtpu: 0.0.40
codegen_flags: <defaults>
</compile_context>

<pallas_src>
import jax
import jax.numpy as jnp
from jax import lax
from jax.experimental import pallas as pl
from jax.experimental.pallas import tpu as pltpu

# Set to jnp.bfloat16 on v6e/v7x for ~2x MXU throughput and half the operand
# bytes (accumulation stays f32 via preferred_element_type). Kept f32 here to
# preserve the reference numerics exactly.
MXU_DTYPE = jnp.float32


def _mm(a, b):
    return jnp.dot(a.astype(MXU_DTYPE), b.astype(MXU_DTYPE),
                   preferred_element_type=jnp.float32)


def _vmem_specs(n):
    return [pl.BlockSpec(memory_space=pltpu.MemorySpace.VMEM) for _ in range(n)]


def _lstm_cell(gates, c):
    # Gate columns are pre-reordered at weight-prep time to [i, f, o, g] so a
    # single sigmoid covers the contiguous 3H slab.
    H = gates.shape[-1] // 4
    sig = jax.nn.sigmoid(gates[:, :3 * H])
    i = sig[:, :H]
    f = sig[:, H:2 * H]
    o = sig[:, 2 * H:3 * H]
    g = jnp.tanh(gates[:, 3 * H:])
    c_new = f * c + i * g
    h_new = o * jnp.tanh(c_new)
    return h_new, c_new


# ----------------------------- Pallas kernels ------------------------------

def encoder_init_kernel(x_ref, hw_w_ref, hw_b_ref, wih_fb_ref, b_fb_ref,
                        whh_f_ref, whh_b_ref,
                        h2i_wf_ref, h2i_wb_ref, h2i_b_ref,
                        c2i_wf_ref, c2i_wb_ref, c2i_b_ref,
                        h0_ref, c0_ref, xw_scr):
    # x_ref: [S, B, E] time-major. Fully fused: highway + hoisted input
    # projections for BOTH LSTM directions + fwd/bwd recurrences + the
    # h/c -> initial-state linears. Everything stays in VMEM.
    S, B, E = x_ref.shape
    He = whh_f_ref.shape[0]
    G = 4 * He

    hw_w = hw_w_ref[...]
    hw_b = hw_b_ref[...]
    wih_fb = wih_fb_ref[...]
    b_fb = b_fb_ref[...]

    # Phase 1 (non-recurrent): highway gating + input-to-hidden projection for
    # both directions fused into a single [B, E] x [E, 8He] matmul per step.
    # This keeps w_ih completely off the serial recurrence dependency chain.
    # TODO(synk): when B is a multiple of the 8-row sublane tile, flatten this
    # into one [S*B, E] x [E, 8He] matmul for full MXU occupancy.
    def proj_step(t, carry):
        x_t = x_ref[t]                                            # [B, E]
        hwp = _mm(x_t, hw_w) + hw_b                               # [B, 3E]
        gate = jax.nn.sigmoid(hwp[:, :E])
        nonlin = jax.nn.relu(hwp[:, E:2 * E])
        lin = hwp[:, 2 * E:]
        hwy = gate * nonlin + (1.0 - gate) * lin                  # [B, E]
        xw_scr[t] = _mm(hwy, wih_fb) + b_fb                       # [B, 8He]
        return carry

    lax.fori_loop(0, S, proj_step, 0, unroll=True)

    # Phase 2: recurrences. Only h @ w_hh remains inside the serial loop; the
    # backward direction reads reversed indices (no reversed copy of x).
    whh_f = whh_f_ref[...]
    whh_b = whh_b_ref[...]
    zeros = jnp.zeros((B, He), jnp.float32)

    def fwd_step(t, carry):
        h, c = carry
        gates = xw_scr[t][:, :G] + _mm(h, whh_f)
        return _lstm_cell(gates, c)

    def bwd_step(t, carry):
        h, c = carry
        gates = xw_scr[S - 1 - t][:, G:] + _mm(h, whh_b)
        return _lstm_cell(gates, c)

    h_f, c_f = lax.fori_loop(0, S, fwd_step, (zeros, zeros), unroll=True)
    h_b, c_b = lax.fori_loop(0, S, bwd_step, (zeros, zeros), unroll=True)

    # Phase 3: initial-state projections. The [2He, nl*Hd] weights were split
    # into fwd/bwd row halves at prep time, so no in-kernel concat is needed.
    h0_ref[...] = (_mm(h_f, h2i_wf_ref[...]) + _mm(h_b, h2i_wb_ref[...])
                   + h2i_b_ref[...])
    c0_ref[...] = (_mm(c_f, c2i_wf_ref[...]) + _mm(c_b, c2i_wb_ref[...])
                   + c2i_b_ref[...])


def decoder_fc_kernel(x_ref, z_ref, wih_x_ref, wih_z_ref, bias_ref, whh_ref,
                      h0_ref, c0_ref, fcw_ref, fcb_ref,
                      logits_ref, hT_ref, cT_ref,
                      xw_scr, hseq_scr):
    # Grid: (V // tV,) over vocab tiles ("arbitrary" -> stays on one core so
    # the VMEM scratch is shared). The recurrence runs once (j == 0) and
    # leaves the hidden sequence in scratch; every vocab tile then applies the
    # fused fc projection, so rnn_out never leaves VMEM and fc_w streams
    # through double-buffered BlockSpec tiles.
    S, B, _ = x_ref.shape

    @pl.when(pl.program_id(0) == 0)
    def _recurrence():
        wih_x = wih_x_ref[...]
        # z conditions every token: project it once per sequence (not per
        # step) and fold the pre-summed LSTM bias in at the same time.
        zw = _mm(z_ref[...], wih_z_ref[...]) + bias_ref[...]      # [B, 4Hd]

        def proj_step(t, carry):
            xw_scr[t] = zw + _mm(x_ref[t], wih_x)                 # [B, 4Hd]
            return carry

        lax.fori_loop(0, S, proj_step, 0, unroll=True)

        whh = whh_ref[...]

        def step(t, carry):
            h, c = carry
            h_new, c_new = _lstm_cell(xw_scr[t] + _mm(h, whh), c)
            hseq_scr[t] = h_new
            return (h_new, c_new)

        hT, cT = lax.fori_loop(0, S, step, (h0_ref[...], c0_ref[...]),
                               unroll=True)
        hT_ref[...] = hT
        cT_ref[...] = cT

    # Fused vocab projection for this tile (runs for every grid step).
    fcw = fcw_ref[...]
    fcb = fcb_ref[...]

    def fc_step(t, carry):
        logits_ref[t] = _mm(hseq_scr[t], fcw) + fcb               # [B, tV]
        return carry

    lax.fori_loop(0, S, fc_step, 0, unroll=True)


# ------------------------------ Forward glue --------------------------------

def build_initial_state(params, hp, encoder_input):
    B, S, _ = encoder_input.shape
    He = hp["encoder_rnn_size"]
    nl, Hd = hp["decoder_num_layers"], hp["decoder_rnn_size"]

    x_tm = jnp.transpose(encoder_input, (1, 0, 2))                # [S, B, E]

    h0, c0 = pl.pallas_call(
        encoder_init_kernel,
        out_shape=(jax.ShapeDtypeStruct((B, nl * Hd), jnp.float32),
                   jax.ShapeDtypeStruct((B, nl * Hd), jnp.float32)),
        in_specs=_vmem_specs(13),
        out_specs=(pl.BlockSpec(memory_space=pltpu.MemorySpace.VMEM),
                   pl.BlockSpec(memory_space=pltpu.MemorySpace.VMEM)),
        scratch_shapes=[pltpu.VMEM((S, B, 8 * He), jnp.float32)],
    )(x_tm, params["hw_w"], params["hw_b"], params["enc_wih_fb"],
      params["enc_b_fb"], params["enc_whh_f"], params["enc_whh_b"],
      params["h2i_wf"], params["h2i_wb"], params["h2i_b"],
      params["c2i_wf"], params["c2i_wb"], params["c2i_b"])

    h_init = jnp.transpose(h0.reshape(B, nl, Hd), (1, 0, 2))
    c_init = jnp.transpose(c0.reshape(B, nl, Hd), (1, 0, 2))
    return h_init, c_init


def decoder_forward(params, hp, encoder_input, decoder_input, z, drop_prob,
                    initial_state=None, dropout_key=None):
    if initial_state is None:
        assert encoder_input is not None
        initial_state = build_initial_state(params, hp, encoder_input)

    B, S, E = decoder_input.shape
    L = hp["latent_variable_size"]
    Hd = hp["decoder_rnn_size"]
    V = hp["vocab_size"]

    # dropout stays in plain-JAX glue (needs jax.random); matches F.dropout.
    if drop_prob > 0.0:
        keep = jax.random.bernoulli(dropout_key, 1.0 - drop_prob,
                                    decoder_input.shape)
        decoder_input = jnp.where(keep, decoder_input / (1.0 - drop_prob), 0.0)

    x_tm = jnp.transpose(decoder_input, (1, 0, 2))                # [S, B, E]
    h0_all, c0_all = initial_state
    # TODO(synk): only decoder_num_layers == 1 supported by the fused cell.

    # Lane-dense vocab tile (multiple of 128); at realistic vocab sizes use
    # wider tiles (512-2048) so fc_w blocks pipeline against the MXU.
    tV = 128 if V % 128 == 0 else V
    num_v_tiles = V // tV

    logits_tm, hT, cT = pl.pallas_call(
        decoder_fc_kernel,
        grid=(num_v_tiles,),
        out_shape=(jax.ShapeDtypeStruct((S, B, V), jnp.float32),
                   jax.ShapeDtypeStruct((B, Hd), jnp.float32),
                   jax.ShapeDtypeStruct((B, Hd), jnp.float32)),
        in_specs=[
            pl.BlockSpec((S, B, E), lambda j: (0, 0, 0)),         # dec input
            pl.BlockSpec((B, L), lambda j: (0, 0)),               # z
            pl.BlockSpec((E, 4 * Hd), lambda j: (0, 0)),          # w_ih (token)
            pl.BlockSpec((L, 4 * Hd), lambda j: (0, 0)),          # w_ih (latent)
            pl.BlockSpec((1, 4 * Hd), lambda j: (0, 0)),          # bias
            pl.BlockSpec((Hd, 4 * Hd), lambda j: (0, 0)),         # w_hh
            pl.BlockSpec((B, Hd), lambda j: (0, 0)),              # h0
            pl.BlockSpec((B, Hd), lambda j: (0, 0)),              # c0
            pl.BlockSpec((Hd, tV), lambda j: (0, j)),             # fc weight tile
            pl.BlockSpec((1, tV), lambda j: (0, j)),              # fc bias tile
        ],
        out_specs=(
            pl.BlockSpec((S, B, tV), lambda j: (0, 0, j)),        # logits tile
            pl.BlockSpec((B, Hd), lambda j: (0, 0)),              # h_T
            pl.BlockSpec((B, Hd), lambda j: (0, 0)),              # c_T
        ),
        scratch_shapes=[pltpu.VMEM((S, B, 4 * Hd), jnp.float32),
                        pltpu.VMEM((S, B, Hd), jnp.float32)],
        compiler_params=pltpu.CompilerParams(
            dimension_semantics=("arbitrary",)),
    )(x_tm, z, params["dec_wih_x"], params["dec_wih_z"], params["dec_b"],
      params["dec_whh"], h0_all[0], c0_all[0], params["fc_w"], params["fc_b"])

    logits = jnp.transpose(logits_tm, (1, 0, 2))                  # [B, S, V]
    final_state = (hT[None], cT[None])                            # [1, B, Hd]
    return logits, final_state


# ------------------------------- Param prep ---------------------------------

def _reorder_gates_out(w):
    # PyTorch LSTM row order (i, f, g, o) -> kernel order (i, f, o, g).
    H = w.shape[0] // 4
    return jnp.concatenate([w[:H], w[H:2 * H], w[3 * H:], w[2 * H:3 * H]],
                           axis=0)


def _reorder_gates_bias(b):
    H = b.shape[1] // 4
    return jnp.concatenate([b[:, :H], b[:, H:2 * H], b[:, 3 * H:],
                            b[:, 2 * H:3 * H]], axis=1)


def prepare_params(w, hp):
    """One-time conversion from PyTorch-layout weights to kernel layout."""
    E = hp["word_embed_size"]
    He = hp["encoder_rnn_size"]

    hw = w["highway"]
    p = {}
    # highway fused to one [E, 3E] matrix (columns: gate | nonlinear | linear)
    p["hw_w"] = jnp.concatenate([hw["w_gate"].T, hw["w_nl"].T, hw["w_lin"].T],
                                axis=1)
    p["hw_b"] = jnp.concatenate([hw["b_gate"], hw["b_nl"], hw["b_lin"]],
                                axis=1)
    # encoder biLSTM: both directions' input weights fused to [E, 8He]
    wih_f = _reorder_gates_out(w["enc_w_ih_f"]).T
    wih_b = _reorder_gates_out(w["enc_w_ih_b"]).T
    p["enc_wih_fb"] = jnp.concatenate([wih_f, wih_b], axis=1)
    p["enc_b_fb"] = jnp.concatenate([_reorder_gates_bias(w["enc_b_f"]),
                                     _reorder_gates_bias(w["enc_b_b"])],
                                    axis=1)
    p["enc_whh_f"] = _reorder_gates_out(w["enc_w_hh_f"]).T        # [He, 4He]
    p["enc_whh_b"] = _reorder_gates_out(w["enc_w_hh_b"]).T
    # initial-state projections, split into fwd/bwd row halves
    h2i_t = w["h2init_w"].T                                       # [2He, nl*Hd]
    c2i_t = w["c2init_w"].T
    p["h2i_wf"], p["h2i_wb"] = h2i_t[:He], h2i_t[He:]
    p["c2i_wf"], p["c2i_wb"] = c2i_t[:He], c2i_t[He:]
    p["h2i_b"], p["c2i_b"] = w["h2init_b"], w["c2init_b"]
    # decoder LSTM: split input weight into token-embedding part + latent part
    dec_wih = _reorder_gates_out(w["dec_w_ih"])                   # [4Hd, E+L]
    p["dec_wih_x"] = dec_wih[:, :E].T                             # [E, 4Hd]
    p["dec_wih_z"] = dec_wih[:, E:].T                             # [L, 4Hd]
    p["dec_b"] = _reorder_gates_bias(w["dec_b"])
    p["dec_whh"] = _reorder_gates_out(w["dec_w_hh"]).T            # [Hd, 4Hd]
    # output projection
    p["fc_w"] = w["fc_w"].T                                       # [Hd, V]
    p["fc_b"] = w["fc_b"]
    return p


def init_weights(key, hp):
    E = hp["word_embed_size"]
    He = hp["encoder_rnn_size"]
    Hd = hp["decoder_rnn_size"]
    L = hp["latent_variable_size"]
    V = hp["vocab_size"]
    nl = hp["decoder_num_layers"]
    keys = jax.random.split(key, 21)

    def w(k, shape, scale=0.1):
        return (scale * jax.random.normal(k, shape)).astype(jnp.float32)

    return {
        "highway": {
            "w_gate": w(keys[0], (E, E)), "b_gate": w(keys[1], (1, E)),
            "w_nl":   w(keys[2], (E, E)), "b_nl":   w(keys[3], (1, E)),
            "w_lin":  w(keys[4], (E, E)), "b_lin":  w(keys[5], (1, E)),
        },
        # encoder biLSTM (b = pre-summed b_ih + b_hh)
        "enc_w_ih_f": w(keys[6], (4 * He, E)),
        "enc_w_hh_f": w(keys[7], (4 * He, He)),
        "enc_b_f":    w(keys[8], (1, 4 * He)),
        "enc_w_ih_b": w(keys[9], (4 * He, E)),
        "enc_w_hh_b": w(keys[10], (4 * He, He)),
        "enc_b_b":    w(keys[11], (1, 4 * He)),
        # initial-state projections
        "h2init_w": w(keys[12], (nl * Hd, 2 * He)),
        "h2init_b": w(keys[13], (1, nl * Hd)),
        "c2init_w": w(keys[14], (nl * Hd, 2 * He)),
        "c2init_b": w(keys[15], (1, nl * Hd)),
        # decoder LSTM (input = word_embed + latent)
        "dec_w_ih": w(keys[16], (4 * Hd, E + L)),
        "dec_w_hh": w(keys[17], (4 * Hd, Hd)),
        "dec_b":    w(keys[18], (1, 4 * Hd)),
        # output projection
        "fc_w": w(keys[19], (V, Hd)),
        "fc_b": w(keys[20], (1, V)),
    }


# ---------------------------------- Main -------------------------------------

if __name__ == "__main__":
    hp = dict(word_embed_size=32, encoder_rnn_size=32, encoder_num_layers=1,
              decoder_rnn_size=32, decoder_num_layers=1,
              latent_variable_size=16, vocab_size=256)

    key = jax.random.PRNGKey(0)
    k_w, k_e, k_d, k_z = jax.random.split(key, 4)
    torch_layout_weights = init_weights(k_w, hp)
    params = prepare_params(torch_layout_weights, hp)   # done once, not per call

    B, S = 2, 8
    encoder_input = jax.random.normal(k_e, (B, S, hp["word_embed_size"]),
                                      jnp.float32)
    decoder_input = jax.random.normal(k_d, (B, S, hp["word_embed_size"]),
                                      jnp.float32)
    z = jax.random.normal(k_z, (B, hp["latent_variable_size"]), jnp.float32)

    logits, (h_f, c_f) = decoder_forward(params, hp, encoder_input,
                                         decoder_input, z, drop_prob=0.0)
    jax.block_until_ready(logits)
    jax.block_until_ready(h_f)
    jax.block_until_ready(c_f)

    assert logits.shape == (B, S, hp["vocab_size"])
    assert logits.dtype == jnp.float32
    assert h_f.shape == (hp["decoder_num_layers"], B, hp["decoder_rnn_size"])
    assert c_f.shape == (hp["decoder_num_layers"], B, hp["decoder_rnn_size"])
    assert bool(jnp.all(jnp.isfinite(logits)))
    assert bool(jnp.all(jnp.isfinite(h_f)))
    assert bool(jnp.all(jnp.isfinite(c_f)))
    print("KERNEL_OK")
</pallas_src>

<mosaic_0001>
module attributes {stable_mosaic.version = 11 : i64} {
  func.func @encoder_init_kernel(%arg0: memref<8x2x32xf32, #tpu.memory_space<vmem>>, %arg1: memref<32x96xf32, #tpu.memory_space<vmem>>, %arg2: memref<1x96xf32, #tpu.memory_space<vmem>>, %arg3: memref<32x256xf32, #tpu.memory_space<vmem>>, %arg4: memref<1x256xf32, #tpu.memory_space<vmem>>, %arg5: memref<32x128xf32, #tpu.memory_space<vmem>>, %arg6: memref<32x128xf32, #tpu.memory_space<vmem>>, %arg7: memref<32x32xf32, #tpu.memory_space<vmem>>, %arg8: memref<32x32xf32, #tpu.memory_space<vmem>>, %arg9: memref<1x32xf32, #tpu.memory_space<vmem>>, %arg10: memref<32x32xf32, #tpu.memory_space<vmem>>, %arg11: memref<32x32xf32, #tpu.memory_space<vmem>>, %arg12: memref<1x32xf32, #tpu.memory_space<vmem>>, %arg13: memref<2x32xf32, #tpu.memory_space<vmem>>, %arg14: memref<2x32xf32, #tpu.memory_space<vmem>>, %arg15: memref<8x2x256xf32, #tpu.memory_space<vmem>>) attributes {dimension_semantics = [], scalar_prefetch = 0 : i64, scratch_operands = 1 : i64, tpu.core_type = #tpu.core_type<tc>} {
    %c0 = arith.constant 0 : index
    %c0_0 = arith.constant 0 : index
    %0 = vector.load %arg1[%c0, %c0_0] : memref<32x96xf32, #tpu.memory_space<vmem>>, vector<32x96xf32>
    %c0_1 = arith.constant 0 : index
    %c0_2 = arith.constant 0 : index
    %1 = vector.load %arg2[%c0_1, %c0_2] : memref<1x96xf32, #tpu.memory_space<vmem>>, vector<1x96xf32>
    %c0_3 = arith.constant 0 : index
    %c0_4 = arith.constant 0 : index
    %2 = vector.load %arg3[%c0_3, %c0_4] : memref<32x256xf32, #tpu.memory_space<vmem>>, vector<32x256xf32>
    %c0_5 = arith.constant 0 : index
    %c0_6 = arith.constant 0 : index
    %3 = vector.load %arg4[%c0_5, %c0_6] : memref<1x256xf32, #tpu.memory_space<vmem>>, vector<1x256xf32>
    %c0_i32 = arith.constant 0 : i32
    %4 = arith.index_cast %c0_i32 : i32 to index
    %c0_7 = arith.constant 0 : index
    %c0_8 = arith.constant 0 : index
    %5 = vector.load %arg0[%4, %c0_7, %c0_8] : memref<8x2x32xf32, #tpu.memory_space<vmem>>, vector<1x2x32xf32>
    %6 = vector.shape_cast %5 : vector<1x2x32xf32> to vector<2x32xf32>
    %cst = arith.constant dense<0.000000e+00> : vector<2x96xf32>
    %7 = tpu.matmul %6, %0, %cst {dimension_numbers = #tpu.dot_dimension_numbers<[1], [0], [0], [1], [0, 0, 1, 1], [], []>} : vector<2x32xf32>, vector<32x96xf32>, vector<2x96xf32> -> vector<2x96xf32>
    %8 = vector.broadcast %1 : vector<1x96xf32> to vector<2x96xf32>
    %9 = arith.addf %7, %8 : vector<2x96xf32>
    %10 = vector.extract_strided_slice %9 {offsets = [0, 0], sizes = [2, 32], strides = [1, 1]} : vector<2x96xf32> to vector<2x32xf32>
    %11 = arith.negf %10 : vector<2x32xf32>
    %12 = math.exp %11 : vector<2x32xf32>
    %cst_9 = arith.constant 1.000000e+00 : f32
    %13 = vector.broadcast %cst_9 : f32 to vector<2x32xf32>
    %14 = arith.addf %13, %12 : vector<2x32xf32>
    %15 = arith.divf %13, %14 : vector<2x32xf32>
    %16 = vector.extract_strided_slice %9 {offsets = [0, 32], sizes = [2, 32], strides = [1, 1]} : vector<2x96xf32> to vector<2x32xf32>
    %cst_10 = arith.constant 0.000000e+00 : f32
    %17 = vector.broadcast %cst_10 : f32 to vector<2x32xf32>
    %18 = arith.maximumf %16, %17 : vector<2x32xf32>
    %19 = vector.extract_strided_slice %9 {offsets = [0, 64], sizes = [2, 32], strides = [1, 1]} : vector<2x96xf32> to vector<2x32xf32>
    %20 = arith.mulf %15, %18 : vector<2x32xf32>
    %cst_11 = arith.constant 1.000000e+00 : f32
    %21 = vector.broadcast %cst_11 : f32 to vector<2x32xf32>
    %22 = arith.subf %21, %15 : vector<2x32xf32>
    %23 = arith.mulf %22, %19 : vector<2x32xf32>
    %24 = arith.addf %20, %23 : vector<2x32xf32>
    %cst_12 = arith.constant dense<0.000000e+00> : vector<2x256xf32>
    %25 = tpu.matmul %24, %2, %cst_12 {dimension_numbers = #tpu.dot_dimension_numbers<[1], [0], [0], [1], [0, 0, 1, 1], [], []>} : vector<2x32xf32>, vector<32x256xf32>, vector<2x256xf32> -> vector<2x256xf32>
    %26 = vector.broadcast %3 : vector<1x256xf32> to vector<2x256xf32>
    %27 = arith.addf %25, %26 : vector<2x256xf32>
    %28 = arith.index_cast %c0_i32 : i32 to index
    %c0_13 = arith.constant 0 : index
    %c0_14 = arith.constant 0 : index
    %29 = vector.load %arg15[%28, %c0_13, %c0_14] : memref<8x2x256xf32, #tpu.memory_space<vmem>>, vector<1x2x256xf32>
    %30 = vector.shape_cast %29 : vector<1x2x256xf32> to vector<2x256xf32>
    %31 = vector.shape_cast %27 : vector<2x256xf32> to vector<1x2x256xf32>
    tpu.vector_store %arg15[%28, %c0_13, %c0_14], %31 {strides = array<i32>} : memref<8x2x256xf32, #tpu.memory_space<vmem>>, vector<1x2x256xf32>,
    %c1_i32 = arith.constant 1 : i32
    %32 = arith.index_cast %c1_i32 : i32 to index
    %c0_15 = arith.constant 0 : index
    %c0_16 = arith.constant 0 : index
    %33 = vector.load %arg0[%32, %c0_15, %c0_16] : memref<8x2x32xf32, #tpu.memory_space<vmem>>, vector<1x2x32xf32>
    %34 = vector.shape_cast %33 : vector<1x2x32xf32> to vector<2x32xf32>
    %cst_17 = arith.constant dense<0.000000e+00> : vector<2x96xf32>
    %35 = tpu.matmul %34, %0, %cst_17 {dimension_numbers = #tpu.dot_dimension_numbers<[1], [0], [0], [1], [0, 0, 1, 1], [], []>} : vector<2x32xf32>, vector<32x96xf32>, vector<2x96xf32> -> vector<2x96xf32>
    %36 = vector.broadcast %1 : vector<1x96xf32> to vector<2x96xf32>
    %37 = arith.addf %35, %36 : vector<2x96xf32>
    %38 = vector.extract_strided_slice %37 {offsets = [0, 0], sizes = [2, 32], strides = [1, 1]} : vector<2x96xf32> to vector<2x32xf32>
    %39 = arith.negf %38 : vector<2x32xf32>
    %40 = math.exp %39 : vector<2x32xf32>
    %cst_18 = arith.constant 1.000000e+00 : f32
    %41 = vector.broadcast %cst_18 : f32 to vector<2x32xf32>
    %42 = arith.addf %41, %40 : vector<2x32xf32>
    %43 = arith.divf %41, %42 : vector<2x32xf32>
    %44 = vector.extract_strided_slice %37 {offsets = [0, 32], sizes = [2, 32], strides = [1, 1]} : vector<2x96xf32> to vector<2x32xf32>
    %cst_19 = arith.constant 0.000000e+00 : f32
    %45 = vector.broadcast %cst_19 : f32 to vector<2x32xf32>
    %46 = arith.maximumf %44, %45 : vector<2x32xf32>
    %47 = vector.extract_strided_slice %37 {offsets = [0, 64], sizes = [2, 32], strides = [1, 1]} : vector<2x96xf32> to vector<2x32xf32>
    %48 = arith.mulf %43, %46 : vector<2x32xf32>
    %cst_20 = arith.constant 1.000000e+00 : f32
    %49 = vector.broadcast %cst_20 : f32 to vector<2x32xf32>
    %50 = arith.subf %49, %43 : vector<2x32xf32>
    %51 = arith.mulf %50, %47 : vector<2x32xf32>
    %52 = arith.addf %48, %51 : vector<2x32xf32>
    %cst_21 = arith.constant dense<0.000000e+00> : vector<2x256xf32>
    %53 = tpu.matmul %52, %2, %cst_21 {dimension_numbers = #tpu.dot_dimension_numbers<[1], [0], [0], [1], [0, 0, 1, 1], [], []>} : vector<2x32xf32>, vector<32x256xf32>, vector<2x256xf32> -> vector<2x256xf32>
    %54 = vector.broadcast %3 : vector<1x256xf32> to vector<2x256xf32>
    %55 = arith.addf %53, %54 : vector<2x256xf32>
    %56 = arith.index_cast %c1_i32 : i32 to index
    %c0_22 = arith.constant 0 : index
    %c0_23 = arith.constant 0 : index
    %57 = vector.load %arg15[%56, %c0_22, %c0_23] : memref<8x2x256xf32, #tpu.memory_space<vmem>>, vector<1x2x256xf32>
    %58 = vector.shape_cast %57 : vector<1x2x256xf32> to vector<2x256xf32>
    %59 = vector.shape_cast %55 : vector<2x256xf32> to vector<1x2x256xf32>
    tpu.vector_store %arg15[%56, %c0_22, %c0_23], %59 {strides = array<i32>} : memref<8x2x256xf32, #tpu.memory_space<vmem>>, vector<1x2x256xf32>,
    %c2_i32 = arith.constant 2 : i32
    %60 = arith.index_cast %c2_i32 : i32 to index
    %c0_24 = arith.constant 0 : index
    %c0_25 = arith.constant 0 : index
    %61 = vector.load %arg0[%60, %c0_24, %c0_25] : memref<8x2x32xf32, #tpu.memory_space<vmem>>, vector<1x2x32xf32>
    %62 = vector.shape_cast %61 : vector<1x2x32xf32> to vector<2x32xf32>
    %cst_26 = arith.constant dense<0.000000e+00> : vector<2x96xf32>
    %63 = tpu.matmul %62, %0, %cst_26 {dimension_numbers = #tpu.dot_dimension_numbers<[1], [0], [0], [1], [0, 0, 1, 1], [], []>} : vector<2x32xf32>, vector<32x96xf32>, vector<2x96xf32> -> vector<2x96xf32>
    %64 = vector.broadcast %1 : vector<1x96xf32> to vector<2x96xf32>
    %65 = arith.addf %63, %64 : vector<2x96xf32>
    %66 = vector.extract_strided_slice %65 {offsets = [0, 0], sizes = [2, 32], strides = [1, 1]} : vector<2x96xf32> to vector<2x32xf32>
    %67 = arith.negf %66 : vector<2x32xf32>
    %68 = math.exp %67 : vector<2x32xf32>
    %cst_27 = arith.constant 1.000000e+00 : f32
    %69 = vector.broadcast %cst_27 : f32 to vector<2x32xf32>
    %70 = arith.addf %69, %68 : vector<2x32xf32>
    %71 = arith.divf %69, %70 : vector<2x32xf32>
    %72 = vector.extract_strided_slice %65 {offsets = [0, 32], sizes = [2, 32], strides = [1, 1]} : vector<2x96xf32> to vector<2x32xf32>
    %cst_28 = arith.constant 0.000000e+00 : f32
    %73 = vector.broadcast %cst_28 : f32 to vector<2x32xf32>
    %74 = arith.maximumf %72, %73 : vector<2x32xf32>
    %75 = vector.extract_strided_slice %65 {offsets = [0, 64], sizes = [2, 32], strides = [1, 1]} : vector<2x96xf32> to vector<2x32xf32>
    %76 = arith.mulf %71, %74 : vector<2x32xf32>
    %cst_29 = arith.constant 1.000000e+00 : f32
    %77 = vector.broadcast %cst_29 : f32 to vector<2x32xf32>
    %78 = arith.subf %77, %71 : vector<2x32xf32>
    %79 = arith.mulf %78, %75 : vector<2x32xf32>
    %80 = arith.addf %76, %79 : vector<2x32xf32>
    %cst_30 = arith.constant dense<0.000000e+00> : vector<2x256xf32>
    %81 = tpu.matmul %80, %2, %cst_30 {dimension_numbers = #tpu.dot_dimension_numbers<[1], [0], [0], [1], [0, 0, 1, 1], [], []>} : vector<2x32xf32>, vector<32x256xf32>, vector<2x256xf32> -> vector<2x256xf32>
    %82 = vector.broadcast %3 : vector<1x256xf32> to vector<2x256xf32>
    %83 = arith.addf %81, %82 : vector<2x256xf32>
    %84 = arith.index_cast %c2_i32 : i32 to index
    %c0_31 = arith.constant 0 : index
    %c0_32 = arith.constant 0 : index
    %85 = vector.load %arg15[%84, %c0_31, %c0_32] : memref<8x2x256xf32, #tpu.memory_space<vmem>>, vector<1x2x256xf32>
    %86 = vector.shape_cast %85 : vector<1x2x256xf32> to vector<2x256xf32>
    %87 = vector.shape_cast %83 : vector<2x256xf32> to vector<1x2x256xf32>
    tpu.vector_store %arg15[%84, %c0_31, %c0_32], %87 {strides = array<i32>} : memref<8x2x256xf32, #tpu.memory_space<vmem>>, vector<1x2x256xf32>,
    %c3_i32 = arith.constant 3 : i32
    %88 = arith.index_cast %c3_i32 : i32 to index
    %c0_33 = arith.constant 0 : index
    %c0_34 = arith.constant 0 : index
    %89 = vector.load %arg0[%88, %c0_33, %c0_34] : memref<8x2x32xf32, #tpu.memory_space<vmem>>, vector<1x2x32xf32>
    %90 = vector.shape_cast %89 : vector<1x2x32xf32> to vector<2x32xf32>
    %cst_35 = arith.constant dense<0.000000e+00> : vector<2x96xf32>
    %91 = tpu.matmul %90, %0, %cst_35 {dimension_numbers = #tpu.dot_dimension_numbers<[1], [0], [0], [1], [0, 0, 1, 1], [], []>} : vector<2x32xf32>, vector<32x96xf32>, vector<2x96xf32> -> vector<2x96xf32>
    %92 = vector.broadcast %1 : vector<1x96xf32> to vector<2x96xf32>
    %93 = arith.addf %91, %92 : vector<2x96xf32>
    %94 = vector.extract_strided_slice %93 {offsets = [0, 0], sizes = [2, 32], strides = [1, 1]} : vector<2x96xf32> to vector<2x32xf32>
    %95 = arith.negf %94 : vector<2x32xf32>
    %96 = math.exp %95 : vector<2x32xf32>
    %cst_36 = arith.constant 1.000000e+00 : f32
    %97 = vector.broadcast %cst_36 : f32 to vector<2x32xf32>
    %98 = arith.addf %97, %96 : vector<2x32xf32>
    %99 = arith.divf %97, %98 : vector<2x32xf32>
    %100 = vector.extract_strided_slice %93 {offsets = [0, 32], sizes = [2, 32], strides = [1, 1]} : vector<2x96xf32> to vector<2x32xf32>
    %cst_37 = arith.constant 0.000000e+00 : f32
    %101 = vector.broadcast %cst_37 : f32 to vector<2x32xf32>
    %102 = arith.maximumf %100, %101 : vector<2x32xf32>
    %103 = vector.extract_strided_slice %93 {offsets = [0, 64], sizes = [2, 32], strides = [1, 1]} : vector<2x96xf32> to vector<2x32xf32>
    %104 = arith.mulf %99, %102 : vector<2x32xf32>
    %cst_38 = arith.constant 1.000000e+00 : f32
    %105 = vector.broadcast %cst_38 : f32 to vector<2x32xf32>
    %106 = arith.subf %105, %99 : vector<2x32xf32>
    %107 = arith.mulf %106, %103 : vector<2x32xf32>
    %108 = arith.addf %104, %107 : vector<2x32xf32>
    %cst_39 = arith.constant dense<0.000000e+00> : vector<2x256xf32>
    %109 = tpu.matmul %108, %2, %cst_39 {dimension_numbers = #tpu.dot_dimension_numbers<[1], [0], [0], [1], [0, 0, 1, 1], [], []>} : vector<2x32xf32>, vector<32x256xf32>, vector<2x256xf32> -> vector<2x256xf32>
    %110 = vector.broadcast %3 : vector<1x256xf32> to vector<2x256xf32>
    %111 = arith.addf %109, %110 : vector<2x256xf32>
    %112 = arith.index_cast %c3_i32 : i32 to index
    %c0_40 = arith.constant 0 : index
    %c0_41 = arith.constant 0 : index
    %113 = vector.load %arg15[%112, %c0_40, %c0_41] : memref<8x2x256xf32, #tpu.memory_space<vmem>>, vector<1x2x256xf32>
    %114 = vector.shape_cast %113 : vector<1x2x256xf32> to vector<2x256xf32>
    %115 = vector.shape_cast %111 : vector<2x256xf32> to vector<1x2x256xf32>
    tpu.vector_store %arg15[%112, %c0_40, %c0_41], %115 {strides = array<i32>} : memref<8x2x256xf32, #tpu.memory_space<vmem>>, vector<1x2x256xf32>,
    %c4_i32 = arith.constant 4 : i32
    %116 = arith.index_cast %c4_i32 : i32 to index
    %c0_42 = arith.constant 0 : index
    %c0_43 = arith.constant 0 : index
    %117 = vector.load %arg0[%116, %c0_42, %c0_43] : memref<8x2x32xf32, #tpu.memory_space<vmem>>, vector<1x2x32xf32>
    %118 = vector.shape_cast %117 : vector<1x2x32xf32> to vector<2x32xf32>
    %cst_44 = arith.constant dense<0.000000e+00> : vector<2x96xf32>
    %119 = tpu.matmul %118, %0, %cst_44 {dimension_numbers = #tpu.dot_dimension_numbers<[1], [0], [0], [1], [0, 0, 1, 1], [], []>} : vector<2x32xf32>, vector<32x96xf32>, vector<2x96xf32> -> vector<2x96xf32>
    %120 = vector.broadcast %1 : vector<1x96xf32> to vector<2x96xf32>
    %121 = arith.addf %119, %120 : vector<2x96xf32>
    %122 = vector.extract_strided_slice %121 {offsets = [0, 0], sizes = [2, 32], strides = [1, 1]} : vector<2x96xf32> to vector<2x32xf32>
    %123 = arith.negf %122 : vector<2x32xf32>
    %124 = math.exp %123 : vector<2x32xf32>
    %cst_45 = arith.constant 1.000000e+00 : f32
    %125 = vector.broadcast %cst_45 : f32 to vector<2x32xf32>
    %126 = arith.addf %125, %124 : vector<2x32xf32>
    %127 = arith.divf %125, %126 : vector<2x32xf32>
    %128 = vector.extract_strided_slice %121 {offsets = [0, 32], sizes = [2, 32], strides = [1, 1]} : vector<2x96xf32> to vector<2x32xf32>
    %cst_46 = arith.constant 0.000000e+00 : f32
    %129 = vector.broadcast %cst_46 : f32 to vector<2x32xf32>
    %130 = arith.maximumf %128, %129 : vector<2x32xf32>
    %131 = vector.extract_strided_slice %121 {offsets = [0, 64], sizes = [2, 32], strides = [1, 1]} : vector<2x96xf32> to vector<2x32xf32>
    %132 = arith.mulf %127, %130 : vector<2x32xf32>
    %cst_47 = arith.constant 1.000000e+00 : f32
    %133 = vector.broadcast %cst_47 : f32 to vector<2x32xf32>
    %134 = arith.subf %133, %127 : vector<2x32xf32>
    %135 = arith.mulf %134, %131 : vector<2x32xf32>
    %136 = arith.addf %132, %135 : vector<2x32xf32>
    %cst_48 = arith.constant dense<0.000000e+00> : vector<2x256xf32>
    %137 = tpu.matmul %136, %2, %cst_48 {dimension_numbers = #tpu.dot_dimension_numbers<[1], [0], [0], [1], [0, 0, 1, 1], [], []>} : vector<2x32xf32>, vector<32x256xf32>, vector<2x256xf32> -> vector<2x256xf32>
    %138 = vector.broadcast %3 : vector<1x256xf32> to vector<2x256xf32>
    %139 = arith.addf %137, %138 : vector<2x256xf32>
    %140 = arith.index_cast %c4_i32 : i32 to index
    %c0_49 = arith.constant 0 : index
    %c0_50 = arith.constant 0 : index
    %141 = vector.load %arg15[%140, %c0_49, %c0_50] : memref<8x2x256xf32, #tpu.memory_space<vmem>>, vector<1x2x256xf32>
    %142 = vector.shape_cast %141 : vector<1x2x256xf32> to vector<2x256xf32>
    %143 = vector.shape_cast %139 : vector<2x256xf32> to vector<1x2x256xf32>
    tpu.vector_store %arg15[%140, %c0_49, %c0_50], %143 {strides = array<i32>} : memref<8x2x256xf32, #tpu.memory_space<vmem>>, vector<1x2x256xf32>,
    %c5_i32 = arith.constant 5 : i32
    %144 = arith.index_cast %c5_i32 : i32 to index
    %c0_51 = arith.constant 0 : index
    %c0_52 = arith.constant 0 : index
    %145 = vector.load %arg0[%144, %c0_51, %c0_52] : memref<8x2x32xf32, #tpu.memory_space<vmem>>, vector<1x2x32xf32>
    %146 = vector.shape_cast %145 : vector<1x2x32xf32> to vector<2x32xf32>
    %cst_53 = arith.constant dense<0.000000e+00> : vector<2x96xf32>
    %147 = tpu.matmul %146, %0, %cst_53 {dimension_numbers = #tpu.dot_dimension_numbers<[1], [0], [0], [1], [0, 0, 1, 1], [], []>} : vector<2x32xf32>, vector<32x96xf32>, vector<2x96xf32> -> vector<2x96xf32>
    %148 = vector.broadcast %1 : vector<1x96xf32> to vector<2x96xf32>
    %149 = arith.addf %147, %148 : vector<2x96xf32>
    %150 = vector.extract_strided_slice %149 {offsets = [0, 0], sizes = [2, 32], strides = [1, 1]} : vector<2x96xf32> to vector<2x32xf32>
    %151 = arith.negf %150 : vector<2x32xf32>
    %152 = math.exp %151 : vector<2x32xf32>
    %cst_54 = arith.constant 1.000000e+00 : f32
    %153 = vector.broadcast %cst_54 : f32 to vector<2x32xf32>
    %154 = arith.addf %153, %152 : vector<2x32xf32>
    %155 = arith.divf %153, %154 : vector<2x32xf32>
    %156 = vector.extract_strided_slice %149 {offsets = [0, 32], sizes = [2, 32], strides = [1, 1]} : vector<2x96xf32> to vector<2x32xf32>
    %cst_55 = arith.constant 0.000000e+00 : f32
    %157 = vector.broadcast %cst_55 : f32 to vector<2x32xf32>
    %158 = arith.maximumf %156, %157 : vector<2x32xf32>
    %159 = vector.extract_strided_slice %149 {offsets = [0, 64], sizes = [2, 32], strides = [1, 1]} : vector<2x96xf32> to vector<2x32xf32>
    %160 = arith.mulf %155, %158 : vector<2x32xf32>
    %cst_56 = arith.constant 1.000000e+00 : f32
    %161 = vector.broadcast %cst_56 : f32 to vector<2x32xf32>
    %162 = arith.subf %161, %155 : vector<2x32xf32>
    %163 = arith.mulf %162, %159 : vector<2x32xf32>
    %164 = arith.addf %160, %163 : vector<2x32xf32>
    %cst_57 = arith.constant dense<0.000000e+00> : vector<2x256xf32>
    %165 = tpu.matmul %164, %2, %cst_57 {dimension_numbers = #tpu.dot_dimension_numbers<[1], [0], [0], [1], [0, 0, 1, 1], [], []>} : vector<2x32xf32>, vector<32x256xf32>, vector<2x256xf32> -> vector<2x256xf32>
    %166 = vector.broadcast %3 : vector<1x256xf32> to vector<2x256xf32>
    %167 = arith.addf %165, %166 : vector<2x256xf32>
    %168 = arith.index_cast %c5_i32 : i32 to index
    %c0_58 = arith.constant 0 : index
    %c0_59 = arith.constant 0 : index
    %169 = vector.load %arg15[%168, %c0_58, %c0_59] : memref<8x2x256xf32, #tpu.memory_space<vmem>>, vector<1x2x256xf32>
    %170 = vector.shape_cast %169 : vector<1x2x256xf32> to vector<2x256xf32>
    %171 = vector.shape_cast %167 : vector<2x256xf32> to vector<1x2x256xf32>
    tpu.vector_store %arg15[%168, %c0_58, %c0_59], %171 {strides = array<i32>} : memref<8x2x256xf32, #tpu.memory_space<vmem>>, vector<1x2x256xf32>,
    %c6_i32 = arith.constant 6 : i32
    %172 = arith.index_cast %c6_i32 : i32 to index
    %c0_60 = arith.constant 0 : index
    %c0_61 = arith.constant 0 : index
    %173 = vector.load %arg0[%172, %c0_60, %c0_61] : memref<8x2x32xf32, #tpu.memory_space<vmem>>, vector<1x2x32xf32>
    %174 = vector.shape_cast %173 : vector<1x2x32xf32> to vector<2x32xf32>
    %cst_62 = arith.constant dense<0.000000e+00> : vector<2x96xf32>
    %175 = tpu.matmul %174, %0, %cst_62 {dimension_numbers = #tpu.dot_dimension_numbers<[1], [0], [0], [1], [0, 0, 1, 1], [], []>} : vector<2x32xf32>, vector<32x96xf32>, vector<2x96xf32> -> vector<2x96xf32>
    %176 = vector.broadcast %1 : vector<1x96xf32> to vector<2x96xf32>
    %177 = arith.addf %175, %176 : vector<2x96xf32>
    %178 = vector.extract_strided_slice %177 {offsets = [0, 0], sizes = [2, 32], strides = [1, 1]} : vector<2x96xf32> to vector<2x32xf32>
    %179 = arith.negf %178 : vector<2x32xf32>
    %180 = math.exp %179 : vector<2x32xf32>
    %cst_63 = arith.constant 1.000000e+00 : f32
    %181 = vector.broadcast %cst_63 : f32 to vector<2x32xf32>
    %182 = arith.addf %181, %180 : vector<2x32xf32>
    %183 = arith.divf %181, %182 : vector<2x32xf32>
    %184 = vector.extract_strided_slice %177 {offsets = [0, 32], sizes = [2, 32], strides = [1, 1]} : vector<2x96xf32> to vector<2x32xf32>
    %cst_64 = arith.constant 0.000000e+00 : f32
    %185 = vector.broadcast %cst_64 : f32 to vector<2x32xf32>
    %186 = arith.maximumf %184, %185 : vector<2x32xf32>
    %187 = vector.extract_strided_slice %177 {offsets = [0, 64], sizes = [2, 32], strides = [1, 1]} : vector<2x96xf32> to vector<2x32xf32>
    %188 = arith.mulf %183, %186 : vector<2x32xf32>
    %cst_65 = arith.constant 1.000000e+00 : f32
    %189 = vector.broadcast %cst_65 : f32 to vector<2x32xf32>
    %190 = arith.subf %189, %183 : vector<2x32xf32>
    %191 = arith.mulf %190, %187 : vector<2x32xf32>
    %192 = arith.addf %188, %191 : vector<2x32xf32>
    %cst_66 = arith.constant dense<0.000000e+00> : vector<2x256xf32>
    %193 = tpu.matmul %192, %2, %cst_66 {dimension_numbers = #tpu.dot_dimension_numbers<[1], [0], [0], [1], [0, 0, 1, 1], [], []>} : vector<2x32xf32>, vector<32x256xf32>, vector<2x256xf32> -> vector<2x256xf32>
    %194 = vector.broadcast %3 : vector<1x256xf32> to vector<2x256xf32>
    %195 = arith.addf %193, %194 : vector<2x256xf32>
    %196 = arith.index_cast %c6_i32 : i32 to index
    %c0_67 = arith.constant 0 : index
    %c0_68 = arith.constant 0 : index
    %197 = vector.load %arg15[%196, %c0_67, %c0_68] : memref<8x2x256xf32, #tpu.memory_space<vmem>>, vector<1x2x256xf32>
    %198 = vector.shape_cast %197 : vector<1x2x256xf32> to vector<2x256xf32>
    %199 = vector.shape_cast %195 : vector<2x256xf32> to vector<1x2x256xf32>
    tpu.vector_store %arg15[%196, %c0_67, %c0_68], %199 {strides = array<i32>} : memref<8x2x256xf32, #tpu.memory_space<vmem>>, vector<1x2x256xf32>,
    %c7_i32 = arith.constant 7 : i32
    %200 = arith.index_cast %c7_i32 : i32 to index
    %c0_69 = arith.constant 0 : index
    %c0_70 = arith.constant 0 : index
    %201 = vector.load %arg0[%200, %c0_69, %c0_70] : memref<8x2x32xf32, #tpu.memory_space<vmem>>, vector<1x2x32xf32>
    %202 = vector.shape_cast %201 : vector<1x2x32xf32> to vector<2x32xf32>
    %cst_71 = arith.constant dense<0.000000e+00> : vector<2x96xf32>
    %203 = tpu.matmul %202, %0, %cst_71 {dimension_numbers = #tpu.dot_dimension_numbers<[1], [0], [0], [1], [0, 0, 1, 1], [], []>} : vector<2x32xf32>, vector<32x96xf32>, vector<2x96xf32> -> vector<2x96xf32>
    %204 = vector.broadcast %1 : vector<1x96xf32> to vector<2x96xf32>
    %205 = arith.addf %203, %204 : vector<2x96xf32>
    %206 = vector.extract_strided_slice %205 {offsets = [0, 0], sizes = [2, 32], strides = [1, 1]} : vector<2x96xf32> to vector<2x32xf32>
    %207 = arith.negf %206 : vector<2x32xf32>
    %208 = math.exp %207 : vector<2x32xf32>
    %cst_72 = arith.constant 1.000000e+00 : f32
    %209 = vector.broadcast %cst_72 : f32 to vector<2x32xf32>
    %210 = arith.addf %209, %208 : vector<2x32xf32>
    %211 = arith.divf %209, %210 : vector<2x32xf32>
    %212 = vector.extract_strided_slice %205 {offsets = [0, 32], sizes = [2, 32], strides = [1, 1]} : vector<2x96xf32> to vector<2x32xf32>
    %cst_73 = arith.constant 0.000000e+00 : f32
    %213 = vector.broadcast %cst_73 : f32 to vector<2x32xf32>
    %214 = arith.maximumf %212, %213 : vector<2x32xf32>
    %215 = vector.extract_strided_slice %205 {offsets = [0, 64], sizes = [2, 32], strides = [1, 1]} : vector<2x96xf32> to vector<2x32xf32>
    %216 = arith.mulf %211, %214 : vector<2x32xf32>
    %cst_74 = arith.constant 1.000000e+00 : f32
    %217 = vector.broadcast %cst_74 : f32 to vector<2x32xf32>
    %218 = arith.subf %217, %211 : vector<2x32xf32>
    %219 = arith.mulf %218, %215 : vector<2x32xf32>
    %220 = arith.addf %216, %219 : vector<2x32xf32>
    %cst_75 = arith.constant dense<0.000000e+00> : vector<2x256xf32>
    %221 = tpu.matmul %220, %2, %cst_75 {dimension_numbers = #tpu.dot_dimension_numbers<[1], [0], [0], [1], [0, 0, 1, 1], [], []>} : vector<2x32xf32>, vector<32x256xf32>, vector<2x256xf32> -> vector<2x256xf32>
    %222 = vector.broadcast %3 : vector<1x256xf32> to vector<2x256xf32>
    %223 = arith.addf %221, %222 : vector<2x256xf32>
    %224 = arith.index_cast %c7_i32 : i32 to index
    %c0_76 = arith.constant 0 : index
    %c0_77 = arith.constant 0 : index
    %225 = vector.load %arg15[%224, %c0_76, %c0_77] : memref<8x2x256xf32, #tpu.memory_space<vmem>>, vector<1x2x256xf32>
    %226 = vector.shape_cast %225 : vector<1x2x256xf32> to vector<2x256xf32>
    %227 = vector.shape_cast %223 : vector<2x256xf32> to vector<1x2x256xf32>
    tpu.vector_store %arg15[%224, %c0_76, %c0_77], %227 {strides = array<i32>} : memref<8x2x256xf32, #tpu.memory_space<vmem>>, vector<1x2x256xf32>,
    %c8_i32 = arith.constant 8 : i32
    %c0_78 = arith.constant 0 : index
    %c0_79 = arith.constant 0 : index
    %228 = vector.load %arg5[%c0_78, %c0_79] : memref<32x128xf32, #tpu.memory_space<vmem>>, vector<32x128xf32>
    %c0_80 = arith.constant 0 : index
    %c0_81 = arith.constant 0 : index
    %229 = vector.load %arg6[%c0_80, %c0_81] : memref<32x128xf32, #tpu.memory_space<vmem>>, vector<32x128xf32>
    %cst_82 = arith.constant 0.000000e+00 : f32
    %230 = vector.broadcast %cst_82 : f32 to vector<2x32xf32>
    %c0_i32_83 = arith.constant 0 : i32
    %231 = arith.index_cast %c0_i32_83 : i32 to index
    %c0_84 = arith.constant 0 : index
    %c0_85 = arith.constant 0 : index
    %232 = vector.load %arg15[%231, %c0_84, %c0_85] : memref<8x2x256xf32, #tpu.memory_space<vmem>>, vector<1x2x256xf32>
    %233 = vector.shape_cast %232 : vector<1x2x256xf32> to vector<2x256xf32>
    %234 = vector.extract_strided_slice %233 {offsets = [0, 0], sizes = [2, 128], strides = [1, 1]} : vector<2x256xf32> to vector<2x128xf32>
    %cst_86 = arith.constant dense<0.000000e+00> : vector<2x128xf32>
    %235 = tpu.matmul %230, %228, %cst_86 {dimension_numbers = #tpu.dot_dimension_numbers<[1], [0], [0], [1], [0, 0, 1, 1], [], []>} : vector<2x32xf32>, vector<32x128xf32>, vector<2x128xf32> -> vector<2x128xf32>
    %236 = arith.addf %234, %235 : vector<2x128xf32>
    %237 = vector.extract_strided_slice %236 {offsets = [0, 0], sizes = [2, 96], strides = [1, 1]} : vector<2x128xf32> to vector<2x96xf32>
    %238 = arith.negf %237 : vector<2x96xf32>
    %239 = math.exp %238 : vector<2x96xf32>
    %cst_87 = arith.constant 1.000000e+00 : f32
    %240 = vector.broadcast %cst_87 : f32 to vector<2x96xf32>
    %241 = arith.addf %240, %239 : vector<2x96xf32>
    %242 = arith.divf %240, %241 : vector<2x96xf32>
    %243 = vector.extract_strided_slice %242 {offsets = [0, 0], sizes = [2, 32], strides = [1, 1]} : vector<2x96xf32> to vector<2x32xf32>
    %244 = vector.extract_strided_slice %242 {offsets = [0, 32], sizes = [2, 32], strides = [1, 1]} : vector<2x96xf32> to vector<2x32xf32>
    %245 = vector.extract_strided_slice %242 {offsets = [0, 64], sizes = [2, 32], strides = [1, 1]} : vector<2x96xf32> to vector<2x32xf32>
    %246 = vector.extract_strided_slice %236 {offsets = [0, 96], sizes = [2, 32], strides = [1, 1]} : vector<2x128xf32> to vector<2x32xf32>
    %247 = math.tanh %246 : vector<2x32xf32>
    %248 = arith.mulf %244, %230 : vector<2x32xf32>
    %249 = arith.mulf %243, %247 : vector<2x32xf32>
    %250 = arith.addf %248, %249 : vector<2x32xf32>
    %251 = math.tanh %250 : vector<2x32xf32>
    %252 = arith.mulf %245, %251 : vector<2x32xf32>
    %c1_i32_88 = arith.constant 1 : i32
    %253 = arith.index_cast %c1_i32_88 : i32 to index
    %c0_89 = arith.constant 0 : index
    %c0_90 = arith.constant 0 : index
    %254 = vector.load %arg15[%253, %c0_89, %c0_90] : memref<8x2x256xf32, #tpu.memory_space<vmem>>, vector<1x2x256xf32>
    %255 = vector.shape_cast %254 : vector<1x2x256xf32> to vector<2x256xf32>
    %256 = vector.extract_strided_slice %255 {offsets = [0, 0], sizes = [2, 128], strides = [1, 1]} : vector<2x256xf32> to vector<2x128xf32>
    %cst_91 = arith.constant dense<0.000000e+00> : vector<2x128xf32>
    %257 = tpu.matmul %252, %228, %cst_91 {dimension_numbers = #tpu.dot_dimension_numbers<[1], [0], [0], [1], [0, 0, 1, 1], [], []>} : vector<2x32xf32>, vector<32x128xf32>, vector<2x128xf32> -> vector<2x128xf32>
    %258 = arith.addf %256, %257 : vector<2x128xf32>
    %259 = vector.extract_strided_slice %258 {offsets = [0, 0], sizes = [2, 96], strides = [1, 1]} : vector<2x128xf32> to vector<2x96xf32>
    %260 = arith.negf %259 : vector<2x96xf32>
    %261 = math.exp %260 : vector<2x96xf32>
    %cst_92 = arith.constant 1.000000e+00 : f32
    %262 = vector.broadcast %cst_92 : f32 to vector<2x96xf32>
    %263 = arith.addf %262, %261 : vector<2x96xf32>
    %264 = arith.divf %262, %263 : vector<2x96xf32>
    %265 = vector.extract_strided_slice %264 {offsets = [0, 0], sizes = [2, 32], strides = [1, 1]} : vector<2x96xf32> to vector<2x32xf32>
    %266 = vector.extract_strided_slice %264 {offsets = [0, 32], sizes = [2, 32], strides = [1, 1]} : vector<2x96xf32> to vector<2x32xf32>
    %267 = vector.extract_strided_slice %264 {offsets = [0, 64], sizes = [2, 32], strides = [1, 1]} : vector<2x96xf32> to vector<2x32xf32>
    %268 = vector.extract_strided_slice %258 {offsets = [0, 96], sizes = [2, 32], strides = [1, 1]} : vector<2x128xf32> to vector<2x32xf32>
    %269 = math.tanh %268 : vector<2x32xf32>
    %270 = arith.mulf %266, %250 : vector<2x32xf32>
    %271 = arith.mulf %265, %269 : vector<2x32xf32>
    %272 = arith.addf %270, %271 : vector<2x32xf32>
    %273 = math.tanh %272 : vector<2x32xf32>
    %274 = arith.mulf %267, %273 : vector<2x32xf32>
    %c2_i32_93 = arith.constant 2 : i32
    %275 = arith.index_cast %c2_i32_93 : i32 to index
    %c0_94 = arith.constant 0 : index
    %c0_95 = arith.constant 0 : index
    %276 = vector.load %arg15[%275, %c0_94, %c0_95] : memref<8x2x256xf32, #tpu.memory_space<vmem>>, vector<1x2x256xf32>
    %277 = vector.shape_cast %276 : vector<1x2x256xf32> to vector<2x256xf32>
    %278 = vector.extract_strided_slice %277 {offsets = [0, 0], sizes = [2, 128], strides = [1, 1]} : vector<2x256xf32> to vector<2x128xf32>
    %cst_96 = arith.constant dense<0.000000e+00> : vector<2x128xf32>
    %279 = tpu.matmul %274, %228, %cst_96 {dimension_numbers = #tpu.dot_dimension_numbers<[1], [0], [0], [1], [0, 0, 1, 1], [], []>} : vector<2x32xf32>, vector<32x128xf32>, vector<2x128xf32> -> vector<2x128xf32>
    %280 = arith.addf %278, %279 : vector<2x128xf32>
    %281 = vector.extract_strided_slice %280 {offsets = [0, 0], sizes = [2, 96], strides = [1, 1]} : vector<2x128xf32> to vector<2x96xf32>
    %282 = arith.negf %281 : vector<2x96xf32>
    %283 = math.exp %282 : vector<2x96xf32>
    %cst_97 = arith.constant 1.000000e+00 : f32
    %284 = vector.broadcast %cst_97 : f32 to vector<2x96xf32>
    %285 = arith.addf %284, %283 : vector<2x96xf32>
    %286 = arith.divf %284, %285 : vector<2x96xf32>
    %287 = vector.extract_strided_slice %286 {offsets = [0, 0], sizes = [2, 32], strides = [1, 1]} : vector<2x96xf32> to vector<2x32xf32>
    %288 = vector.extract_strided_slice %286 {offsets = [0, 32], sizes = [2, 32], strides = [1, 1]} : vector<2x96xf32> to vector<2x32xf32>
    %289 = vector.extract_strided_slice %286 {offsets = [0, 64], sizes = [2, 32], strides = [1, 1]} : vector<2x96xf32> to vector<2x32xf32>
    %290 = vector.extract_strided_slice %280 {offsets = [0, 96], sizes = [2, 32], strides = [1, 1]} : vector<2x128xf32> to vector<2x32xf32>
    %291 = math.tanh %290 : vector<2x32xf32>
    %292 = arith.mulf %288, %272 : vector<2x32xf32>
    %293 = arith.mulf %287, %291 : vector<2x32xf32>
    %294 = arith.addf %292, %293 : vector<2x32xf32>
    %295 = math.tanh %294 : vector<2x32xf32>
    %296 = arith.mulf %289, %295 : vector<2x32xf32>
    %c3_i32_98 = arith.constant 3 : i32
    %297 = arith.index_cast %c3_i32_98 : i32 to index
    %c0_99 = arith.constant 0 : index
    %c0_100 = arith.constant 0 : index
    %298 = vector.load %arg15[%297, %c0_99, %c0_100] : memref<8x2x256xf32, #tpu.memory_space<vmem>>, vector<1x2x256xf32>
    %299 = vector.shape_cast %298 : vector<1x2x256xf32> to vector<2x256xf32>
    %300 = vector.extract_strided_slice %299 {offsets = [0, 0], sizes = [2, 128], strides = [1, 1]} : vector<2x256xf32> to vector<2x128xf32>
    %cst_101 = arith.constant dense<0.000000e+00> : vector<2x128xf32>
    %301 = tpu.matmul %296, %228, %cst_101 {dimension_numbers = #tpu.dot_dimension_numbers<[1], [0], [0], [1], [0, 0, 1, 1], [], []>} : vector<2x32xf32>, vector<32x128xf32>, vector<2x128xf32> -> vector<2x128xf32>
    %302 = arith.addf %300, %301 : vector<2x128xf32>
    %303 = vector.extract_strided_slice %302 {offsets = [0, 0], sizes = [2, 96], strides = [1, 1]} : vector<2x128xf32> to vector<2x96xf32>
    %304 = arith.negf %303 : vector<2x96xf32>
    %305 = math.exp %304 : vector<2x96xf32>
    %cst_102 = arith.constant 1.000000e+00 : f32
    %306 = vector.broadcast %cst_102 : f32 to vector<2x96xf32>
    %307 = arith.addf %306, %305 : vector<2x96xf32>
    %308 = arith.divf %306, %307 : vector<2x96xf32>
    %309 = vector.extract_strided_slice %308 {offsets = [0, 0], sizes = [2, 32], strides = [1, 1]} : vector<2x96xf32> to vector<2x32xf32>
    %310 = vector.extract_strided_slice %308 {offsets = [0, 32], sizes = [2, 32], strides = [1, 1]} : vector<2x96xf32> to vector<2x32xf32>
    %311 = vector.extract_strided_slice %308 {offsets = [0, 64], sizes = [2, 32], strides = [1, 1]} : vector<2x96xf32> to vector<2x32xf32>
    %312 = vector.extract_strided_slice %302 {offsets = [0, 96], sizes = [2, 32], strides = [1, 1]} : vector<2x128xf32> to vector<2x32xf32>
    %313 = math.tanh %312 : vector<2x32xf32>
    %314 = arith.mulf %310, %294 : vector<2x32xf32>
    %315 = arith.mulf %309, %313 : vector<2x32xf32>
    %316 = arith.addf %314, %315 : vector<2x32xf32>
    %317 = math.tanh %316 : vector<2x32xf32>
    %318 = arith.mulf %311, %317 : vector<2x32xf32>
    %c4_i32_103 = arith.constant 4 : i32
    %319 = arith.index_cast %c4_i32_103 : i32 to index
    %c0_104 = arith.constant 0 : index
    %c0_105 = arith.constant 0 : index
    %320 = vector.load %arg15[%319, %c0_104, %c0_105] : memref<8x2x256xf32, #tpu.memory_space<vmem>>, vector<1x2x256xf32>
    %321 = vector.shape_cast %320 : vector<1x2x256xf32> to vector<2x256xf32>
    %322 = vector.extract_strided_slice %321 {offsets = [0, 0], sizes = [2, 128], strides = [1, 1]} : vector<2x256xf32> to vector<2x128xf32>
    %cst_106 = arith.constant dense<0.000000e+00> : vector<2x128xf32>
    %323 = tpu.matmul %318, %228, %cst_106 {dimension_numbers = #tpu.dot_dimension_numbers<[1], [0], [0], [1], [0, 0, 1, 1], [], []>} : vector<2x32xf32>, vector<32x128xf32>, vector<2x128xf32> -> vector<2x128xf32>
    %324 = arith.addf %322, %323 : vector<2x128xf32>
    %325 = vector.extract_strided_slice %324 {offsets = [0, 0], sizes = [2, 96], strides = [1, 1]} : vector<2x128xf32> to vector<2x96xf32>
    %326 = arith.negf %325 : vector<2x96xf32>
    %327 = math.exp %326 : vector<2x96xf32>
    %cst_107 = arith.constant 1.000000e+00 : f32
    %328 = vector.broadcast %cst_107 : f32 to vector<2x96xf32>
    %329 = arith.addf %328, %327 : vector<2x96xf32>
    %330 = arith.divf %328, %329 : vector<2x96xf32>
    %331 = vector.extract_strided_slice %330 {offsets = [0, 0], sizes = [2, 32], strides = [1, 1]} : vector<2x96xf32> to vector<2x32xf32>
    %332 = vector.extract_strided_slice %330 {offsets = [0, 32], sizes = [2, 32], strides = [1, 1]} : vector<2x96xf32> to vector<2x32xf32>
    %333 = vector.extract_strided_slice %330 {offsets = [0, 64], sizes = [2, 32], strides = [1, 1]} : vector<2x96xf32> to vector<2x32xf32>
    %334 = vector.extract_strided_slice %324 {offsets = [0, 96], sizes = [2, 32], strides = [1, 1]} : vector<2x128xf32> to vector<2x32xf32>
    %335 = math.tanh %334 : vector<2x32xf32>
    %336 = arith.mulf %332, %316 : vector<2x32xf32>
    %337 = arith.mulf %331, %335 : vector<2x32xf32>
    %338 = arith.addf %336, %337 : vector<2x32xf32>
    %339 = math.tanh %338 : vector<2x32xf32>
    %340 = arith.mulf %333, %339 : vector<2x32xf32>
    %c5_i32_108 = arith.constant 5 : i32
    %341 = arith.index_cast %c5_i32_108 : i32 to index
    %c0_109 = arith.constant 0 : index
    %c0_110 = arith.constant 0 : index
    %342 = vector.load %arg15[%341, %c0_109, %c0_110] : memref<8x2x256xf32, #tpu.memory_space<vmem>>, vector<1x2x256xf32>
    %343 = vector.shape_cast %342 : vector<1x2x256xf32> to vector<2x256xf32>
    %344 = vector.extract_strided_slice %343 {offsets = [0, 0], sizes = [2, 128], strides = [1, 1]} : vector<2x256xf32> to vector<2x128xf32>
    %cst_111 = arith.constant dense<0.000000e+00> : vector<2x128xf32>
    %345 = tpu.matmul %340, %228, %cst_111 {dimension_numbers = #tpu.dot_dimension_numbers<[1], [0], [0], [1], [0, 0, 1, 1], [], []>} : vector<2x32xf32>, vector<32x128xf32>, vector<2x128xf32> -> vector<2x128xf32>
    %346 = arith.addf %344, %345 : vector<2x128xf32>
    %347 = vector.extract_strided_slice %346 {offsets = [0, 0], sizes = [2, 96], strides = [1, 1]} : vector<2x128xf32> to vector<2x96xf32>
    %348 = arith.negf %347 : vector<2x96xf32>
    %349 = math.exp %348 : vector<2x96xf32>
    %cst_112 = arith.constant 1.000000e+00 : f32
    %350 = vector.broadcast %cst_112 : f32 to vector<2x96xf32>
    %351 = arith.addf %350, %349 : vector<2x96xf32>
    %352 = arith.divf %350, %351 : vector<2x96xf32>
    %353 = vector.extract_strided_slice %352 {offsets = [0, 0], sizes = [2, 32], strides = [1, 1]} : vector<2x96xf32> to vector<2x32xf32>
    %354 = vector.extract_strided_slice %352 {offsets = [0, 32], sizes = [2, 32], strides = [1, 1]} : vector<2x96xf32> to vector<2x32xf32>
    %355 = vector.extract_strided_slice %352 {offsets = [0, 64], sizes = [2, 32], strides = [1, 1]} : vector<2x96xf32> to vector<2x32xf32>
    %356 = vector.extract_strided_slice %346 {offsets = [0, 96], sizes = [2, 32], strides = [1, 1]} : vector<2x128xf32> to vector<2x32xf32>
    %357 = math.tanh %356 : vector<2x32xf32>
    %358 = arith.mulf %354, %338 : vector<2x32xf32>
    %359 = arith.mulf %353, %357 : vector<2x32xf32>
    %360 = arith.addf %358, %359 : vector<2x32xf32>
    %361 = math.tanh %360 : vector<2x32xf32>
    %362 = arith.mulf %355, %361 : vector<2x32xf32>
    %c6_i32_113 = arith.constant 6 : i32
    %363 = arith.index_cast %c6_i32_113 : i32 to index
    %c0_114 = arith.constant 0 : index
    %c0_115 = arith.constant 0 : index
    %364 = vector.load %arg15[%363, %c0_114, %c0_115] : memref<8x2x256xf32, #tpu.memory_space<vmem>>, vector<1x2x256xf32>
    %365 = vector.shape_cast %364 : vector<1x2x256xf32> to vector<2x256xf32>
    %366 = vector.extract_strided_slice %365 {offsets = [0, 0], sizes = [2, 128], strides = [1, 1]} : vector<2x256xf32> to vector<2x128xf32>
    %cst_116 = arith.constant dense<0.000000e+00> : vector<2x128xf32>
    %367 = tpu.matmul %362, %228, %cst_116 {dimension_numbers = #tpu.dot_dimension_numbers<[1], [0], [0], [1], [0, 0, 1, 1], [], []>} : vector<2x32xf32>, vector<32x128xf32>, vector<2x128xf32> -> vector<2x128xf32>
    %368 = arith.addf %366, %367 : vector<2x128xf32>
    %369 = vector.extract_strided_slice %368 {offsets = [0, 0], sizes = [2, 96], strides = [1, 1]} : vector<2x128xf32> to vector<2x96xf32>
    %370 = arith.negf %369 : vector<2x96xf32>
    %371 = math.exp %370 : vector<2x96xf32>
    %cst_117 = arith.constant 1.000000e+00 : f32
    %372 = vector.broadcast %cst_117 : f32 to vector<2x96xf32>
    %373 = arith.addf %372, %371 : vector<2x96xf32>
    %374 = arith.divf %372, %373 : vector<2x96xf32>
    %375 = vector.extract_strided_slice %374 {offsets = [0, 0], sizes = [2, 32], strides = [1, 1]} : vector<2x96xf32> to vector<2x32xf32>
    %376 = vector.extract_strided_slice %374 {offsets = [0, 32], sizes = [2, 32], strides = [1, 1]} : vector<2x96xf32> to vector<2x32xf32>
    %377 = vector.extract_strided_slice %374 {offsets = [0, 64], sizes = [2, 32], strides = [1, 1]} : vector<2x96xf32> to vector<2x32xf32>
    %378 = vector.extract_strided_slice %368 {offsets = [0, 96], sizes = [2, 32], strides = [1, 1]} : vector<2x128xf32> to vector<2x32xf32>
    %379 = math.tanh %378 : vector<2x32xf32>
    %380 = arith.mulf %376, %360 : vector<2x32xf32>
    %381 = arith.mulf %375, %379 : vector<2x32xf32>
    %382 = arith.addf %380, %381 : vector<2x32xf32>
    %383 = math.tanh %382 : vector<2x32xf32>
    %384 = arith.mulf %377, %383 : vector<2x32xf32>
    %c7_i32_118 = arith.constant 7 : i32
    %385 = arith.index_cast %c7_i32_118 : i32 to index
    %c0_119 = arith.constant 0 : index
    %c0_120 = arith.constant 0 : index
    %386 = vector.load %arg15[%385, %c0_119, %c0_120] : memref<8x2x256xf32, #tpu.memory_space<vmem>>, vector<1x2x256xf32>
    %387 = vector.shape_cast %386 : vector<1x2x256xf32> to vector<2x256xf32>
    %388 = vector.extract_strided_slice %387 {offsets = [0, 0], sizes = [2, 128], strides = [1, 1]} : vector<2x256xf32> to vector<2x128xf32>
    %cst_121 = arith.constant dense<0.000000e+00> : vector<2x128xf32>
    %389 = tpu.matmul %384, %228, %cst_121 {dimension_numbers = #tpu.dot_dimension_numbers<[1], [0], [0], [1], [0, 0, 1, 1], [], []>} : vector<2x32xf32>, vector<32x128xf32>, vector<2x128xf32> -> vector<2x128xf32>
    %390 = arith.addf %388, %389 : vector<2x128xf32>
    %391 = vector.extract_strided_slice %390 {offsets = [0, 0], sizes = [2, 96], strides = [1, 1]} : vector<2x128xf32> to vector<2x96xf32>
    %392 = arith.negf %391 : vector<2x96xf32>
    %393 = math.exp %392 : vector<2x96xf32>
    %cst_122 = arith.constant 1.000000e+00 : f32
    %394 = vector.broadcast %cst_122 : f32 to vector<2x96xf32>
    %395 = arith.addf %394, %393 : vector<2x96xf32>
    %396 = arith.divf %394, %395 : vector<2x96xf32>
    %397 = vector.extract_strided_slice %396 {offsets = [0, 0], sizes = [2, 32], strides = [1, 1]} : vector<2x96xf32> to vector<2x32xf32>
    %398 = vector.extract_strided_slice %396 {offsets = [0, 32], sizes = [2, 32], strides = [1, 1]} : vector<2x96xf32> to vector<2x32xf32>
    %399 = vector.extract_strided_slice %396 {offsets = [0, 64], sizes = [2, 32], strides = [1, 1]} : vector<2x96xf32> to vector<2x32xf32>
    %400 = vector.extract_strided_slice %390 {offsets = [0, 96], sizes = [2, 32], strides = [1, 1]} : vector<2x128xf32> to vector<2x32xf32>
    %401 = math.tanh %400 : vector<2x32xf32>
    %402 = arith.mulf %398, %382 : vector<2x32xf32>
    %403 = arith.mulf %397, %401 : vector<2x32xf32>
    %404 = arith.addf %402, %403 : vector<2x32xf32>
    %405 = math.tanh %404 : vector<2x32xf32>
    %406 = arith.mulf %399, %405 : vector<2x32xf32>
    %c8_i32_123 = arith.constant 8 : i32
    %c0_i32_124 = arith.constant 0 : i32
    %c7_i32_125 = arith.constant 7 : i32
    %407 = arith.subi %c7_i32_125, %c0_i32_124 : i32
    %408 = arith.index_cast %407 : i32 to index
    %c0_126 = arith.constant 0 : index
    %c0_127 = arith.constant 0 : index
    %409 = vector.load %arg15[%408, %c0_126, %c0_127] : memref<8x2x256xf32, #tpu.memory_space<vmem>>, vector<1x2x256xf32>
    %410 = vector.shape_cast %409 : vector<1x2x256xf32> to vector<2x256xf32>
    %411 = vector.extract_strided_slice %410 {offsets = [0, 128], sizes = [2, 128], strides = [1, 1]} : vector<2x256xf32> to vector<2x128xf32>
    %cst_128 = arith.constant dense<0.000000e+00> : vector<2x128xf32>
    %412 = tpu.matmul %230, %229, %cst_128 {dimension_numbers = #tpu.dot_dimension_numbers<[1], [0], [0], [1], [0, 0, 1, 1], [], []>} : vector<2x32xf32>, vector<32x128xf32>, vector<2x128xf32> -> vector<2x128xf32>
    %413 = arith.addf %411, %412 : vector<2x128xf32>
    %414 = vector.extract_strided_slice %413 {offsets = [0, 0], sizes = [2, 96], strides = [1, 1]} : vector<2x128xf32> to vector<2x96xf32>
    %415 = arith.negf %414 : vector<2x96xf32>
    %416 = math.exp %415 : vector<2x96xf32>
    %cst_129 = arith.constant 1.000000e+00 : f32
    %417 = vector.broadcast %cst_129 : f32 to vector<2x96xf32>
    %418 = arith.addf %417, %416 : vector<2x96xf32>
    %419 = arith.divf %417, %418 : vector<2x96xf32>
    %420 = vector.extract_strided_slice %419 {offsets = [0, 0], sizes = [2, 32], strides = [1, 1]} : vector<2x96xf32> to vector<2x32xf32>
    %421 = vector.extract_strided_slice %419 {offsets = [0, 32], sizes = [2, 32], strides = [1, 1]} : vector<2x96xf32> to vector<2x32xf32>
    %422 = vector.extract_strided_slice %419 {offsets = [0, 64], sizes = [2, 32], strides = [1, 1]} : vector<2x96xf32> to vector<2x32xf32>
    %423 = vector.extract_strided_slice %413 {offsets = [0, 96], sizes = [2, 32], strides = [1, 1]} : vector<2x128xf32> to vector<2x32xf32>
    %424 = math.tanh %423 : vector<2x32xf32>
    %425 = arith.mulf %421, %230 : vector<2x32xf32>
    %426 = arith.mulf %420, %424 : vector<2x32xf32>
    %427 = arith.addf %425, %426 : vector<2x32xf32>
    %428 = math.tanh %427 : vector<2x32xf32>
    %429 = arith.mulf %422, %428 : vector<2x32xf32>
    %c1_i32_130 = arith.constant 1 : i32
    %c7_i32_131 = arith.constant 7 : i32
    %430 = arith.subi %c7_i32_131, %c1_i32_130 : i32
    %431 = arith.index_cast %430 : i32 to index
    %c0_132 = arith.constant 0 : index
    %c0_133 = arith.constant 0 : index
    %432 = vector.load %arg15[%431, %c0_132, %c0_133] : memref<8x2x256xf32, #tpu.memory_space<vmem>>, vector<1x2x256xf32>
    %433 = vector.shape_cast %432 : vector<1x2x256xf32> to vector<2x256xf32>
    %434 = vector.extract_strided_slice %433 {offsets = [0, 128], sizes = [2, 128], strides = [1, 1]} : vector<2x256xf32> to vector<2x128xf32>
    %cst_134 = arith.constant dense<0.000000e+00> : vector<2x128xf32>
    %435 = tpu.matmul %429, %229, %cst_134 {dimension_numbers = #tpu.dot_dimension_numbers<[1], [0], [0], [1], [0, 0, 1, 1], [], []>} : vector<2x32xf32>, vector<32x128xf32>, vector<2x128xf32> -> vector<2x128xf32>
    %436 = arith.addf %434, %435 : vector<2x128xf32>
    %437 = vector.extract_strided_slice %436 {offsets = [0, 0], sizes = [2, 96], strides = [1, 1]} : vector<2x128xf32> to vector<2x96xf32>
    %438 = arith.negf %437 : vector<2x96xf32>
    %439 = math.exp %438 : vector<2x96xf32>
    %cst_135 = arith.constant 1.000000e+00 : f32
    %440 = vector.broadcast %cst_135 : f32 to vector<2x96xf32>
    %441 = arith.addf %440, %439 : vector<2x96xf32>
    %442 = arith.divf %440, %441 : vector<2x96xf32>
    %443 = vector.extract_strided_slice %442 {offsets = [0, 0], sizes = [2, 32], strides = [1, 1]} : vector<2x96xf32> to vector<2x32xf32>
    %444 = vector.extract_strided_slice %442 {offsets = [0, 32], sizes = [2, 32], strides = [1, 1]} : vector<2x96xf32> to vector<2x32xf32>
    %445 = vector.extract_strided_slice %442 {offsets = [0, 64], sizes = [2, 32], strides = [1, 1]} : vector<2x96xf32> to vector<2x32xf32>
    %446 = vector.extract_strided_slice %436 {offsets = [0, 96], sizes = [2, 32], strides = [1, 1]} : vector<2x128xf32> to vector<2x32xf32>
    %447 = math.tanh %446 : vector<2x32xf32>
    %448 = arith.mulf %444, %427 : vector<2x32xf32>
    %449 = arith.mulf %443, %447 : vector<2x32xf32>
    %450 = arith.addf %448, %449 : vector<2x32xf32>
    %451 = math.tanh %450 : vector<2x32xf32>
    %452 = arith.mulf %445, %451 : vector<2x32xf32>
    %c2_i32_136 = arith.constant 2 : i32
    %c7_i32_137 = arith.constant 7 : i32
    %453 = arith.subi %c7_i32_137, %c2_i32_136 : i32
    %454 = arith.index_cast %453 : i32 to index
    %c0_138 = arith.constant 0 : index
    %c0_139 = arith.constant 0 : index
    %455 = vector.load %arg15[%454, %c0_138, %c0_139] : memref<8x2x256xf32, #tpu.memory_space<vmem>>, vector<1x2x256xf32>
    %456 = vector.shape_cast %455 : vector<1x2x256xf32> to vector<2x256xf32>
    %457 = vector.extract_strided_slice %456 {offsets = [0, 128], sizes = [2, 128], strides = [1, 1]} : vector<2x256xf32> to vector<2x128xf32>
    %cst_140 = arith.constant dense<0.000000e+00> : vector<2x128xf32>
    %458 = tpu.matmul %452, %229, %cst_140 {dimension_numbers = #tpu.dot_dimension_numbers<[1], [0], [0], [1], [0, 0, 1, 1], [], []>} : vector<2x32xf32>, vector<32x128xf32>, vector<2x128xf32> -> vector<2x128xf32>
    %459 = arith.addf %457, %458 : vector<2x128xf32>
    %460 = vector.extract_strided_slice %459 {offsets = [0, 0], sizes = [2, 96], strides = [1, 1]} : vector<2x128xf32> to vector<2x96xf32>
    %461 = arith.negf %460 : vector<2x96xf32>
    %462 = math.exp %461 : vector<2x96xf32>
    %cst_141 = arith.constant 1.000000e+00 : f32
    %463 = vector.broadcast %cst_141 : f32 to vector<2x96xf32>
    %464 = arith.addf %463, %462 : vector<2x96xf32>
    %465 = arith.divf %463, %464 : vector<2x96xf32>
    %466 = vector.extract_strided_slice %465 {offsets = [0, 0], sizes = [2, 32], strides = [1, 1]} : vector<2x96xf32> to vector<2x32xf32>
    %467 = vector.extract_strided_slice %465 {offsets = [0, 32], sizes = [2, 32], strides = [1, 1]} : vector<2x96xf32> to vector<2x32xf32>
    %468 = vector.extract_strided_slice %465 {offsets = [0, 64], sizes = [2, 32], strides = [1, 1]} : vector<2x96xf32> to vector<2x32xf32>
    %469 = vector.extract_strided_slice %459 {offsets = [0, 96], sizes = [2, 32], strides = [1, 1]} : vector<2x128xf32> to vector<2x32xf32>
    %470 = math.tanh %469 : vector<2x32xf32>
    %471 = arith.mulf %467, %450 : vector<2x32xf32>
    %472 = arith.mulf %466, %470 : vector<2x32xf32>
    %473 = arith.addf %471, %472 : vector<2x32xf32>
    %474 = math.tanh %473 : vector<2x32xf32>
    %475 = arith.mulf %468, %474 : vector<2x32xf32>
    %c3_i32_142 = arith.constant 3 : i32
    %c7_i32_143 = arith.constant 7 : i32
    %476 = arith.subi %c7_i32_143, %c3_i32_142 : i32
    %477 = arith.index_cast %476 : i32 to index
    %c0_144 = arith.constant 0 : index
    %c0_145 = arith.constant 0 : index
    %478 = vector.load %arg15[%477, %c0_144, %c0_145] : memref<8x2x256xf32, #tpu.memory_space<vmem>>, vector<1x2x256xf32>
    %479 = vector.shape_cast %478 : vector<1x2x256xf32> to vector<2x256xf32>
    %480 = vector.extract_strided_slice %479 {offsets = [0, 128], sizes = [2, 128], strides = [1, 1]} : vector<2x256xf32> to vector<2x128xf32>
    %cst_146 = arith.constant dense<0.000000e+00> : vector<2x128xf32>
    %481 = tpu.matmul %475, %229, %cst_146 {dimension_numbers = #tpu.dot_dimension_numbers<[1], [0], [0], [1], [0, 0, 1, 1], [], []>} : vector<2x32xf32>, vector<32x128xf32>, vector<2x128xf32> -> vector<2x128xf32>
    %482 = arith.addf %480, %481 : vector<2x128xf32>
    %483 = vector.extract_strided_slice %482 {offsets = [0, 0], sizes = [2, 96], strides = [1, 1]} : vector<2x128xf32> to vector<2x96xf32>
    %484 = arith.negf %483 : vector<2x96xf32>
    %485 = math.exp %484 : vector<2x96xf32>
    %cst_147 = arith.constant 1.000000e+00 : f32
    %486 = vector.broadcast %cst_147 : f32 to vector<2x96xf32>
    %487 = arith.addf %486, %485 : vector<2x96xf32>
    %488 = arith.divf %486, %487 : vector<2x96xf32>
    %489 = vector.extract_strided_slice %488 {offsets = [0, 0], sizes = [2, 32], strides = [1, 1]} : vector<2x96xf32> to vector<2x32xf32>
    %490 = vector.extract_strided_slice %488 {offsets = [0, 32], sizes = [2, 32], strides = [1, 1]} : vector<2x96xf32> to vector<2x32xf32>
    %491 = vector.extract_strided_slice %488 {offsets = [0, 64], sizes = [2, 32], strides = [1, 1]} : vector<2x96xf32> to vector<2x32xf32>
    %492 = vector.extract_strided_slice %482 {offsets = [0, 96], sizes = [2, 32], strides = [1, 1]} : vector<2x128xf32> to vector<2x32xf32>
    %493 = math.tanh %492 : vector<2x32xf32>
    %494 = arith.mulf %490, %473 : vector<2x32xf32>
    %495 = arith.mulf %489, %493 : vector<2x32xf32>
    %496 = arith.addf %494, %495 : vector<2x32xf32>
    %497 = math.tanh %496 : vector<2x32xf32>
    %498 = arith.mulf %491, %497 : vector<2x32xf32>
    %c4_i32_148 = arith.constant 4 : i32
    %c7_i32_149 = arith.constant 7 : i32
    %499 = arith.subi %c7_i32_149, %c4_i32_148 : i32
    %500 = arith.index_cast %499 : i32 to index
    %c0_150 = arith.constant 0 : index
    %c0_151 = arith.constant 0 : index
    %501 = vector.load %arg15[%500, %c0_150, %c0_151] : memref<8x2x256xf32, #tpu.memory_space<vmem>>, vector<1x2x256xf32>
    %502 = vector.shape_cast %501 : vector<1x2x256xf32> to vector<2x256xf32>
    %503 = vector.extract_strided_slice %502 {offsets = [0, 128], sizes = [2, 128], strides = [1, 1]} : vector<2x256xf32> to vector<2x128xf32>
    %cst_152 = arith.constant dense<0.000000e+00> : vector<2x128xf32>
    %504 = tpu.matmul %498, %229, %cst_152 {dimension_numbers = #tpu.dot_dimension_numbers<[1], [0], [0], [1], [0, 0, 1, 1], [], []>} : vector<2x32xf32>, vector<32x128xf32>, vector<2x128xf32> -> vector<2x128xf32>
    %505 = arith.addf %503, %504 : vector<2x128xf32>
    %506 = vector.extract_strided_slice %505 {offsets = [0, 0], sizes = [2, 96], strides = [1, 1]} : vector<2x128xf32> to vector<2x96xf32>
    %507 = arith.negf %506 : vector<2x96xf32>
    %508 = math.exp %507 : vector<2x96xf32>
    %cst_153 = arith.constant 1.000000e+00 : f32
    %509 = vector.broadcast %cst_153 : f32 to vector<2x96xf32>
    %510 = arith.addf %509, %508 : vector<2x96xf32>
    %511 = arith.divf %509, %510 : vector<2x96xf32>
    %512 = vector.extract_strided_slice %511 {offsets = [0, 0], sizes = [2, 32], strides = [1, 1]} : vector<2x96xf32> to vector<2x32xf32>
    %513 = vector.extract_strided_slice %511 {offsets = [0, 32], sizes = [2, 32], strides = [1, 1]} : vector<2x96xf32> to vector<2x32xf32>
    %514 = vector.extract_strided_slice %511 {offsets = [0, 64], sizes = [2, 32], strides = [1, 1]} : vector<2x96xf32> to vector<2x32xf32>
    %515 = vector.extract_strided_slice %505 {offsets = [0, 96], sizes = [2, 32], strides = [1, 1]} : vector<2x128xf32> to vector<2x32xf32>
    %516 = math.tanh %515 : vector<2x32xf32>
    %517 = arith.mulf %513, %496 : vector<2x32xf32>
    %518 = arith.mulf %512, %516 : vector<2x32xf32>
    %519 = arith.addf %517, %518 : vector<2x32xf32>
    %520 = math.tanh %519 : vector<2x32xf32>
    %521 = arith.mulf %514, %520 : vector<2x32xf32>
    %c5_i32_154 = arith.constant 5 : i32
    %c7_i32_155 = arith.constant 7 : i32
    %522 = arith.subi %c7_i32_155, %c5_i32_154 : i32
    %523 = arith.index_cast %522 : i32 to index
    %c0_156 = arith.constant 0 : index
    %c0_157 = arith.constant 0 : index
    %524 = vector.load %arg15[%523, %c0_156, %c0_157] : memref<8x2x256xf32, #tpu.memory_space<vmem>>, vector<1x2x256xf32>
    %525 = vector.shape_cast %524 : vector<1x2x256xf32> to vector<2x256xf32>
    %526 = vector.extract_strided_slice %525 {offsets = [0, 128], sizes = [2, 128], strides = [1, 1]} : vector<2x256xf32> to vector<2x128xf32>
    %cst_158 = arith.constant dense<0.000000e+00> : vector<2x128xf32>
    %527 = tpu.matmul %521, %229, %cst_158 {dimension_numbers = #tpu.dot_dimension_numbers<[1], [0], [0], [1], [0, 0, 1, 1], [], []>} : vector<2x32xf32>, vector<32x128xf32>, vector<2x128xf32> -> vector<2x128xf32>
    %528 = arith.addf %526, %527 : vector<2x128xf32>
    %529 = vector.extract_strided_slice %528 {offsets = [0, 0], sizes = [2, 96], strides = [1, 1]} : vector<2x128xf32> to vector<2x96xf32>
    %530 = arith.negf %529 : vector<2x96xf32>
    %531 = math.exp %530 : vector<2x96xf32>
    %cst_159 = arith.constant 1.000000e+00 : f32
    %532 = vector.broadcast %cst_159 : f32 to vector<2x96xf32>
    %533 = arith.addf %532, %531 : vector<2x96xf32>
    %534 = arith.divf %532, %533 : vector<2x96xf32>
    %535 = vector.extract_strided_slice %534 {offsets = [0, 0], sizes = [2, 32], strides = [1, 1]} : vector<2x96xf32> to vector<2x32xf32>
    %536 = vector.extract_strided_slice %534 {offsets = [0, 32], sizes = [2, 32], strides = [1, 1]} : vector<2x96xf32> to vector<2x32xf32>
    %537 = vector.extract_strided_slice %534 {offsets = [0, 64], sizes = [2, 32], strides = [1, 1]} : vector<2x96xf32> to vector<2x32xf32>
    %538 = vector.extract_strided_slice %528 {offsets = [0, 96], sizes = [2, 32], strides = [1, 1]} : vector<2x128xf32> to vector<2x32xf32>
    %539 = math.tanh %538 : vector<2x32xf32>
    %540 = arith.mulf %536, %519 : vector<2x32xf32>
    %541 = arith.mulf %535, %539 : vector<2x32xf32>
    %542 = arith.addf %540, %541 : vector<2x32xf32>
    %543 = math.tanh %542 : vector<2x32xf32>
    %544 = arith.mulf %537, %543 : vector<2x32xf32>
    %c6_i32_160 = arith.constant 6 : i32
    %c7_i32_161 = arith.constant 7 : i32
    %545 = arith.subi %c7_i32_161, %c6_i32_160 : i32
    %546 = arith.index_cast %545 : i32 to index
    %c0_162 = arith.constant 0 : index
    %c0_163 = arith.constant 0 : index
    %547 = vector.load %arg15[%546, %c0_162, %c0_163] : memref<8x2x256xf32, #tpu.memory_space<vmem>>, vector<1x2x256xf32>
    %548 = vector.shape_cast %547 : vector<1x2x256xf32> to vector<2x256xf32>
    %549 = vector.extract_strided_slice %548 {offsets = [0, 128], sizes = [2, 128], strides = [1, 1]} : vector<2x256xf32> to vector<2x128xf32>
    %cst_164 = arith.constant dense<0.000000e+00> : vector<2x128xf32>
    %550 = tpu.matmul %544, %229, %cst_164 {dimension_numbers = #tpu.dot_dimension_numbers<[1], [0], [0], [1], [0, 0, 1, 1], [], []>} : vector<2x32xf32>, vector<32x128xf32>, vector<2x128xf32> -> vector<2x128xf32>
    %551 = arith.addf %549, %550 : vector<2x128xf32>
    %552 = vector.extract_strided_slice %551 {offsets = [0, 0], sizes = [2, 96], strides = [1, 1]} : vector<2x128xf32> to vector<2x96xf32>
    %553 = arith.negf %552 : vector<2x96xf32>
    %554 = math.exp %553 : vector<2x96xf32>
    %cst_165 = arith.constant 1.000000e+00 : f32
    %555 = vector.broadcast %cst_165 : f32 to vector<2x96xf32>
    %556 = arith.addf %555, %554 : vector<2x96xf32>
    %557 = arith.divf %555, %556 : vector<2x96xf32>
    %558 = vector.extract_strided_slice %557 {offsets = [0, 0], sizes = [2, 32], strides = [1, 1]} : vector<2x96xf32> to vector<2x32xf32>
    %559 = vector.extract_strided_slice %557 {offsets = [0, 32], sizes = [2, 32], strides = [1, 1]} : vector<2x96xf32> to vector<2x32xf32>
    %560 = vector.extract_strided_slice %557 {offsets = [0, 64], sizes = [2, 32], strides = [1, 1]} : vector<2x96xf32> to vector<2x32xf32>
    %561 = vector.extract_strided_slice %551 {offsets = [0, 96], sizes = [2, 32], strides = [1, 1]} : vector<2x128xf32> to vector<2x32xf32>
    %562 = math.tanh %561 : vector<2x32xf32>
    %563 = arith.mulf %559, %542 : vector<2x32xf32>
    %564 = arith.mulf %558, %562 : vector<2x32xf32>
    %565 = arith.addf %563, %564 : vector<2x32xf32>
    %566 = math.tanh %565 : vector<2x32xf32>
    %567 = arith.mulf %560, %566 : vector<2x32xf32>
    %c7_i32_166 = arith.constant 7 : i32
    %c7_i32_167 = arith.constant 7 : i32
    %568 = arith.subi %c7_i32_167, %c7_i32_166 : i32
    %569 = arith.index_cast %568 : i32 to index
    %c0_168 = arith.constant 0 : index
    %c0_169 = arith.constant 0 : index
    %570 = vector.load %arg15[%569, %c0_168, %c0_169] : memref<8x2x256xf32, #tpu.memory_space<vmem>>, vector<1x2x256xf32>
    %571 = vector.shape_cast %570 : vector<1x2x256xf32> to vector<2x256xf32>
    %572 = vector.extract_strided_slice %571 {offsets = [0, 128], sizes = [2, 128], strides = [1, 1]} : vector<2x256xf32> to vector<2x128xf32>
    %cst_170 = arith.constant dense<0.000000e+00> : vector<2x128xf32>
    %573 = tpu.matmul %567, %229, %cst_170 {dimension_numbers = #tpu.dot_dimension_numbers<[1], [0], [0], [1], [0, 0, 1, 1], [], []>} : vector<2x32xf32>, vector<32x128xf32>, vector<2x128xf32> -> vector<2x128xf32>
    %574 = arith.addf %572, %573 : vector<2x128xf32>
    %575 = vector.extract_strided_slice %574 {offsets = [0, 0], sizes = [2, 96], strides = [1, 1]} : vector<2x128xf32> to vector<2x96xf32>
    %576 = arith.negf %575 : vector<2x96xf32>
    %577 = math.exp %576 : vector<2x96xf32>
    %cst_171 = arith.constant 1.000000e+00 : f32
    %578 = vector.broadcast %cst_171 : f32 to vector<2x96xf32>
    %579 = arith.addf %578, %577 : vector<2x96xf32>
    %580 = arith.divf %578, %579 : vector<2x96xf32>
    %581 = vector.extract_strided_slice %580 {offsets = [0, 0], sizes = [2, 32], strides = [1, 1]} : vector<2x96xf32> to vector<2x32xf32>
    %582 = vector.extract_strided_slice %580 {offsets = [0, 32], sizes = [2, 32], strides = [1, 1]} : vector<2x96xf32> to vector<2x32xf32>
    %583 = vector.extract_strided_slice %580 {offsets = [0, 64], sizes = [2, 32], strides = [1, 1]} : vector<2x96xf32> to vector<2x32xf32>
    %584 = vector.extract_strided_slice %574 {offsets = [0, 96], sizes = [2, 32], strides = [1, 1]} : vector<2x128xf32> to vector<2x32xf32>
    %585 = math.tanh %584 : vector<2x32xf32>
    %586 = arith.mulf %582, %565 : vector<2x32xf32>
    %587 = arith.mulf %581, %585 : vector<2x32xf32>
    %588 = arith.addf %586, %587 : vector<2x32xf32>
    %589 = math.tanh %588 : vector<2x32xf32>
    %590 = arith.mulf %583, %589 : vector<2x32xf32>
    %c8_i32_172 = arith.constant 8 : i32
    %c0_173 = arith.constant 0 : index
    %c0_174 = arith.constant 0 : index
    %591 = vector.load %arg7[%c0_173, %c0_174] : memref<32x32xf32, #tpu.memory_space<vmem>>, vector<32x32xf32>
    %cst_175 = arith.constant dense<0.000000e+00> : vector<2x32xf32>
    %592 = tpu.matmul %406, %591, %cst_175 {dimension_numbers = #tpu.dot_dimension_numbers<[1], [0], [0], [1], [0, 0, 1, 1], [], []>} : vector<2x32xf32>, vector<32x32xf32>, vector<2x32xf32> -> vector<2x32xf32>
    %c0_176 = arith.constant 0 : index
    %c0_177 = arith.constant 0 : index
    %593 = vector.load %arg8[%c0_176, %c0_177] : memref<32x32xf32, #tpu.memory_space<vmem>>, vector<32x32xf32>
    %cst_178 = arith.constant dense<0.000000e+00> : vector<2x32xf32>
    %594 = tpu.matmul %590, %593, %cst_178 {dimension_numbers = #tpu.dot_dimension_numbers<[1], [0], [0], [1], [0, 0, 1, 1], [], []>} : vector<2x32xf32>, vector<32x32xf32>, vector<2x32xf32> -> vector<2x32xf32>
    %595 = arith.addf %592, %594 : vector<2x32xf32>
    %c0_179 = arith.constant 0 : index
    %c0_180 = arith.constant 0 : index
    %596 = vector.load %arg9[%c0_179, %c0_180] : memref<1x32xf32, #tpu.memory_space<vmem>>, vector<1x32xf32>
    %597 = vector.broadcast %596 : vector<1x32xf32> to vector<2x32xf32>
    %598 = arith.addf %595, %597 : vector<2x32xf32>
    %c0_181 = arith.constant 0 : index
    %c0_182 = arith.constant 0 : index
    %599 = vector.load %arg13[%c0_181, %c0_182] : memref<2x32xf32, #tpu.memory_space<vmem>>, vector<2x32xf32>
    tpu.vector_store %arg13[%c0_181, %c0_182], %598 {strides = array<i32>} : memref<2x32xf32, #tpu.memory_space<vmem>>, vector<2x32xf32>,
    %c0_183 = arith.constant 0 : index
    %c0_184 = arith.constant 0 : index
    %600 = vector.load %arg10[%c0_183, %c0_184] : memref<32x32xf32, #tpu.memory_space<vmem>>, vector<32x32xf32>
    %cst_185 = arith.constant dense<0.000000e+00> : vector<2x32xf32>
    %601 = tpu.matmul %404, %600, %cst_185 {dimension_numbers = #tpu.dot_dimension_numbers<[1], [0], [0], [1], [0, 0, 1, 1], [], []>} : vector<2x32xf32>, vector<32x32xf32>, vector<2x32xf32> -> vector<2x32xf32>
    %c0_186 = arith.constant 0 : index
    %c0_187 = arith.constant 0 : index
    %602 = vector.load %arg11[%c0_186, %c0_187] : memref<32x32xf32, #tpu.memory_space<vmem>>, vector<32x32xf32>
    %cst_188 = arith.constant dense<0.000000e+00> : vector<2x32xf32>
    %603 = tpu.matmul %588, %602, %cst_188 {dimension_numbers = #tpu.dot_dimension_numbers<[1], [0], [0], [1], [0, 0, 1, 1], [], []>} : vector<2x32xf32>, vector<32x32xf32>, vector<2x32xf32> -> vector<2x32xf32>
    %604 = arith.addf %601, %603 : vector<2x32xf32>
    %c0_189 = arith.constant 0 : index
    %c0_190 = arith.constant 0 : index
    %605 = vector.load %arg12[%c0_189, %c0_190] : memref<1x32xf32, #tpu.memory_space<vmem>>, vector<1x32xf32>
    %606 = vector.broadcast %605 : vector<1x32xf32> to vector<2x32xf32>
    %607 = arith.addf %604, %606 : vector<2x32xf32>
    %c0_191 = arith.constant 0 : index
    %c0_192 = arith.constant 0 : index
    %608 = vector.load %arg14[%c0_191, %c0_192] : memref<2x32xf32, #tpu.memory_space<vmem>>, vector<2x32xf32>
    tpu.vector_store %arg14[%c0_191, %c0_192], %607 {strides = array<i32>} : memref<2x32xf32, #tpu.memory_space<vmem>>, vector<2x32xf32>,
    return
  }
}

</mosaic_0001>

<llo_original>
// kernel: tpu_custom_call.1
$region0: #{tpu_custom_call.1}
  #allocation0 [shape = 'u32[]', space=smem, size = 0x4, offset = 0x4, fixed_abs, tag = 'smem constant byte address 0x4 - core index']
  #allocation1 [shape = 'u32[72,128]{1,0:T(1,128)}', space=vmem, size = 0x9000, scoped, tag = 'internal scratch']
  #allocation2 [shape = 'f32[8,2,256]{2,1,0:T(2,128)}', space=vmem, size = 0x4000, scoped, tag = 'scratch operand']
  %s0 = inlined_call_operand.hbm [shape: f32[8,2,32], index: 0, kind: input, shape index: {}]
  %s1 = inlined_call_operand.hbm [shape: f32[32,96], index: 1, kind: input, shape index: {}]
  %s2 = inlined_call_operand.vmem [shape: f32[1,96], index: 2, kind: input, shape index: {}]
  %s3 = inlined_call_operand.hbm [shape: f32[32,256], index: 3, kind: input, shape index: {}]
  %s4 = inlined_call_operand.vmem [shape: f32[1,256], index: 4, kind: input, shape index: {}]
  %s5 = inlined_call_operand.hbm [shape: f32[32,128], index: 5, kind: input, shape index: {}]
  %s6 = inlined_call_operand.hbm [shape: f32[32,128], index: 6, kind: input, shape index: {}]
  %s7 = inlined_call_operand.hbm [shape: f32[32,32], index: 7, kind: input, shape index: {}]
  %s8 = inlined_call_operand.hbm [shape: f32[32,32], index: 8, kind: input, shape index: {}]
  %s9 = inlined_call_operand.vmem [shape: f32[1,32], index: 9, kind: input, shape index: {}]
  %s10 = inlined_call_operand.hbm [shape: f32[32,32], index: 10, kind: input, shape index: {}]
  %s11 = inlined_call_operand.hbm [shape: f32[32,32], index: 11, kind: input, shape index: {}]
  %s12 = inlined_call_operand.vmem [shape: f32[1,32], index: 12, kind: input, shape index: {}]
  %s13 = inlined_call_operand.hbm [shape: f32[2,32], index: 13, kind: output, shape index: {0}]
  %s14 = inlined_call_operand.hbm [shape: f32[2,32], index: 14, kind: output, shape index: {1}]
  %15 = xla_tuple %s13, %s14
  %s16 = sld [smem:[#allocation0]]
  $region106: #{tpu_custom_call.1} parent=0
    _
  %s18 = ssub.s32 1, %s16
  %s19 = scalar_select 0, %s18, %s16
  $region1: #{tpu_custom_call.1} parent=0
    #allocation3 [shape = 'u8[8192]{0}', space=vmem, size = 0x2000, scoped, tag = 'input window, operand 0, single buffered']
    #allocation4 [shape = 's32[1]{0}', space=sflag, size = 0x4, scoped, tag = 'scoped memory for tpu_custom_call.1']
    #allocation5 [shape = 's32[1]{0}', space=sflag, size = 0x4, scoped, tag = 'scoped memory for tpu_custom_call.1']
    #allocation6 [shape = 'u8[16384]{0}', space=vmem, size = 0x4000, scoped, tag = 'input window, operand 1, single buffered']
    #allocation7 [shape = 's32[1]{0}', space=sflag, size = 0x4, scoped, tag = 'scoped memory for tpu_custom_call.1']
    #allocation8 [shape = 'u8[32768]{0}', space=vmem, size = 0x8000, scoped, tag = 'input window, operand 3, single buffered']
    #allocation9 [shape = 'u8[16384]{0}', space=vmem, size = 0x4000, scoped, tag = 'input window, operand 5, single buffered']
    #allocation10 [shape = 's32[1]{0}', space=sflag, size = 0x4, scoped, tag = 'scoped memory for tpu_custom_call.1']
    #allocation11 [shape = 'u8[16384]{0}', space=vmem, size = 0x4000, scoped, tag = 'input window, operand 6, single buffered']
    #allocation12 [shape = 'u8[16384]{0}', space=vmem, size = 0x4000, scoped, tag = 'input window, operand 7, single buffered']
    #allocation13 [shape = 's32[1]{0}', space=sflag, size = 0x4, scoped, tag = 'scoped memory for tpu_custom_call.1']
    #allocation14 [shape = 'u8[16384]{0}', space=vmem, size = 0x4000, scoped, tag = 'input window, operand 8, single buffered']
    #allocation15 [shape = 'u8[16384]{0}', space=vmem, size = 0x4000, scoped, tag = 'input window, operand 10, single buffered']
    #allocation16 [shape = 's32[1]{0}', space=sflag, size = 0x4, scoped, tag = 'scoped memory for tpu_custom_call.1']
    #allocation17 [shape = 'u8[16384]{0}', space=vmem, size = 0x4000, scoped, tag = 'input window, operand 11, single buffered']
    #allocation18 [shape = 'u8[1024]{0}', space=vmem, size = 0x400, scoped, tag = 'output window, operand 0, single buffered']
    #allocation19 [shape = 'u8[1024]{0}', space=vmem, size = 0x400, scoped, tag = 'output window, operand 1, single buffered']
    #allocation20 [shape = 's32[1]{0}', space=sflag, size = 0x4, scoped, tag = 'scoped memory for tpu_custom_call.1']
    %20 = vsyncpa [#allocation4], 0
    %21 = vsyncpa [#allocation7], 0
    %22 = vsyncpa [#allocation10], 0
    %23 = vsyncpa [#allocation13], 0
    %24 = vsyncpa [#allocation16], 0
    %25 = vsyncpa [#allocation5], 0
    %26 = vsyncpa [#allocation20], 0
    // Predicated region
    $region2: #{tpu_custom_call.1} parent=1 // pred_check
      _
    $region3: #{tpu_custom_call.1} parent=1 // pred_check_branch
      %28 = sbr.rel (0) target = $region5
    $region4: #{tpu_custom_call.1} parent=1 // pred_region
      %30 = vsyncadd [#allocation4], 0
      %s31 = sshll.u32 %s0, 4
      %s32 = int_to_ptr.hbm [resolvable:$true] %s31
      %s33 = sshll.u32 [#allocation3], 4
      %s34 = int_to_ptr.vmem [resolvable:$true] %s33
      %39 = dma.hbm_to_vmem [thread:$0]  %s32, 256, %s34, [#allocation4], 32, 32, 2
    $region5: #{tpu_custom_call.1} parent=1 // pred_fallthru
      _
    // Predicated region
    $region6: #{tpu_custom_call.1} parent=1 // pred_check
      _
    $region7: #{tpu_custom_call.1} parent=1 // pred_check_branch
      %41 = sbr.rel (0) target = $region9
    $region8: #{tpu_custom_call.1} parent=1 // pred_region
      %43 = vsyncadd [#allocation7], 0
      %s44 = sshll.u32 %s1, 4
      %s45 = int_to_ptr.hbm [resolvable:$true] %s44
      %s46 = sshll.u32 [#allocation6], 4
      %s47 = int_to_ptr.vmem [resolvable:$true] %s46
      %52 = dma.hbm_to_vmem [thread:$0]  %s45, 512, %s47, [#allocation7], 128, 128, 8
    $region9: #{tpu_custom_call.1} parent=1 // pred_fallthru
      _
    // Predicated region
    $region10: #{tpu_custom_call.1} parent=1 // pred_check
      _
    $region11: #{tpu_custom_call.1} parent=1 // pred_check_branch
      %54 = sbr.rel (0) target = $region13
    $region12: #{tpu_custom_call.1} parent=1 // pred_region
      _
    $region13: #{tpu_custom_call.1} parent=1 // pred_fallthru
      _
    // Predicated region
    $region14: #{tpu_custom_call.1} parent=1 // pred_check
      _
    $region15: #{tpu_custom_call.1} parent=1 // pred_check_branch
      %56 = sbr.rel (0) target = $region17
    $region16: #{tpu_custom_call.1} parent=1 // pred_region
      %58 = vsyncadd [#allocation7], 0
      %s59 = sshll.u32 %s3, 4
      %s60 = int_to_ptr.hbm [resolvable:$true] %s59
      %s61 = sshll.u32 [#allocation8], 4
      %s62 = int_to_ptr.vmem [resolvable:$true] %s61
      %67 = dma.hbm_to_vmem [thread:$0]  %s60, 1024, %s62, [#allocation7], 256, 256, 16
    $region17: #{tpu_custom_call.1} parent=1 // pred_fallthru
      _
    // Predicated region
    $region18: #{tpu_custom_call.1} parent=1 // pred_check
      _
    $region19: #{tpu_custom_call.1} parent=1 // pred_check_branch
      %69 = sbr.rel (0) target = $region21
    $region20: #{tpu_custom_call.1} parent=1 // pred_region
      _
    $region21: #{tpu_custom_call.1} parent=1 // pred_fallthru
      _
    // Predicated region
    $region22: #{tpu_custom_call.1} parent=1 // pred_check
      _
    $region23: #{tpu_custom_call.1} parent=1 // pred_check_branch
      %71 = sbr.rel (0) target = $region25
    $region24: #{tpu_custom_call.1} parent=1 // pred_region
      %73 = vsyncadd [#allocation10], 0
      %s74 = sshll.u32 %s5, 4
      %s75 = int_to_ptr.hbm [resolvable:$true] %s74
      %s76 = sshll.u32 [#allocation9], 4
      %s77 = int_to_ptr.vmem [resolvable:$true] %s76
      %82 = dma.hbm_to_vmem [thread:$0]  %s75, 512, %s77, [#allocation10], 128, 128, 8
    $region25: #{tpu_custom_call.1} parent=1 // pred_fallthru
      _
    // Predicated region
    $region26: #{tpu_custom_call.1} parent=1 // pred_check
      _
    $region27: #{tpu_custom_call.1} parent=1 // pred_check_branch
      %84 = sbr.rel (0) target = $region29
    $region28: #{tpu_custom_call.1} parent=1 // pred_region
      %86 = vsyncadd [#allocation10], 0
      %s87 = sshll.u32 %s6, 4
      %s88 = int_to_ptr.hbm [resolvable:$true] %s87
      %s89 = sshll.u32 [#allocation11], 4
      %s90 = int_to_ptr.vmem [resolvable:$true] %s89
      %95 = dma.hbm_to_vmem [thread:$0]  %s88, 512, %s90, [#allocation10], 128, 128, 8
    $region29: #{tpu_custom_call.1} parent=1 // pred_fallthru
      _
    // Predicated region
    $region30: #{tpu_custom_call.1} parent=1 // pred_check
      _
    $region31: #{tpu_custom_call.1} parent=1 // pred_check_branch
      %97 = sbr.rel (0) target = $region33
    $region32: #{tpu_custom_call.1} parent=1 // pred_region
      %99 = vsyncadd [#allocation13], 0
      %s100 = sshll.u32 %s7, 4
      %s101 = int_to_ptr.hbm [resolvable:$true] %s100
      %s102 = sshll.u32 [#allocation12], 4
      %s103 = int_to_ptr.vmem [resolvable:$true] %s102
      %108 = dma.hbm_to_vmem [thread:$0]  %s101, 512, %s103, [#allocation13], 128, 128, 8
    $region33: #{tpu_custom_call.1} parent=1 // pred_fallthru
      _
    // Predicated region
    $region34: #{tpu_custom_call.1} parent=1 // pred_check
      _
    $region35: #{tpu_custom_call.1} parent=1 // pred_check_branch
      %110 = sbr.rel (0) target = $region37
    $region36: #{tpu_custom_call.1} parent=1 // pred_region
      %112 = vsyncadd [#allocation13], 0
      %s113 = sshll.u32 %s8, 4
      %s114 = int_to_ptr.hbm [resolvable:$true] %s113
      %s115 = sshll.u32 [#allocation14], 4
      %s116 = int_to_ptr.vmem [resolvable:$true] %s115
      %121 = dma.hbm_to_vmem [thread:$0]  %s114, 512, %s116, [#allocation13], 128, 128, 8
    $region37: #{tpu_custom_call.1} parent=1 // pred_fallthru
      _
    // Predicated region
    $region38: #{tpu_custom_call.1} parent=1 // pred_check
      _
    $region39: #{tpu_custom_call.1} parent=1 // pred_check_branch
      %123 = sbr.rel (0) target = $region41
    $region40: #{tpu_custom_call.1} parent=1 // pred_region
      _
    $region41: #{tpu_custom_call.1} parent=1 // pred_fallthru
      _
    // Predicated region
    $region42: #{tpu_custom_call.1} parent=1 // pred_check
      _
    $region43: #{tpu_custom_call.1} parent=1 // pred_check_branch
      %125 = sbr.rel (0) target = $region45
    $region44: #{tpu_custom_call.1} parent=1 // pred_region
      %127 = vsyncadd [#allocation16], 0
      %s128 = sshll.u32 %s10, 4
      %s129 = int_to_ptr.hbm [resolvable:$true] %s128
      %s130 = sshll.u32 [#allocation15], 4
      %s131 = int_to_ptr.vmem [resolvable:$true] %s130
      %136 = dma.hbm_to_vmem [thread:$0]  %s129, 512, %s131, [#allocation16], 128, 128, 8
    $region45: #{tpu_custom_call.1} parent=1 // pred_fallthru
      _
    // Predicated region
    $region46: #{tpu_custom_call.1} parent=1 // pred_check
      _
    $region47: #{tpu_custom_call.1} parent=1 // pred_check_branch
      %138 = sbr.rel (0) target = $region49
    $region48: #{tpu_custom_call.1} parent=1 // pred_region
      %140 = vsyncadd [#allocation16], 0
      %s141 = sshll.u32 %s11, 4
      %s142 = int_to_ptr.hbm [resolvable:$true] %s141
      %s143 = sshll.u32 [#allocation17], 4
      %s144 = int_to_ptr.vmem [resolvable:$true] %s143
      %149 = dma.hbm_to_vmem [thread:$0]  %s142, 512, %s144, [#allocation16], 128, 128, 8
    $region49: #{tpu_custom_call.1} parent=1 // pred_fallthru
      _
    // Predicated region
    $region50: #{tpu_custom_call.1} parent=1 // pred_check
      _
    $region51: #{tpu_custom_call.1} parent=1 // pred_check_branch
      %151 = sbr.rel (0) target = $region53
    $region52: #{tpu_custom_call.1} parent=1 // pred_region
      _
    $region53: #{tpu_custom_call.1} parent=1 // pred_fallthru
      _
    // Predicated region
    $region54: #{tpu_custom_call.1} parent=1 // pred_check
      _
    $region55: #{tpu_custom_call.1} parent=1 // pred_check_branch
      %153 = sbr.rel (0) target = $region57
    $region56: #{tpu_custom_call.1} parent=1 // pred_region
      %155 = dma.done [#allocation4], 256
    $region57: #{tpu_custom_call.1} parent=1 // pred_fallthru
      _
    // Predicated region
    $region58: #{tpu_custom_call.1} parent=1 // pred_check
      _
    $region59: #{tpu_custom_call.1} parent=1 // pred_check_branch
      %157 = sbr.rel (0) target = $region61
    $region60: #{tpu_custom_call.1} parent=1 // pred_region
      %159 = dma.done [#allocation7], 512
    $region61: #{tpu_custom_call.1} parent=1 // pred_fallthru
      _
    // Predicated region
    $region62: #{tpu_custom_call.1} parent=1 // pred_check
      _
    $region63: #{tpu_custom_call.1} parent=1 // pred_check_branch
      %161 = sbr.rel (0) target = $region65
    $region64: #{tpu_custom_call.1} parent=1 // pred_region
      %163 = dma.done [#allocation7], 1024
    $region65: #{tpu_custom_call.1} parent=1 // pred_fallthru
      _
    // Predicated region
    $region66: #{tpu_custom_call.1} parent=1 // pred_check
      _
    $region67: #{tpu_custom_call.1} parent=1 // pred_check_branch
      %165 = sbr.rel (0) target = $region69
    $region68: #{tpu_custom_call.1} parent=1 // pred_region
      %167 = dma.done [#allocation10], 512
    $region69: #{tpu_custom_call.1} parent=1 // pred_fallthru
      _
    // Predicated region
    $region70: #{tpu_custom_call.1} parent=1 // pred_check
      _
    $region71: #{tpu_custom_call.1} parent=1 // pred_check_branch
      %169 = sbr.rel (0) target = $region73
    $region72: #{tpu_custom_call.1} parent=1 // pred_region
      %171 = dma.done [#allocation10], 512
    $region73: #{tpu_custom_call.1} parent=1 // pred_fallthru
      _
    // Predicated region
    $region74: #{tpu_custom_call.1} parent=1 // pred_check
      _
    $region75: #{tpu_custom_call.1} parent=1 // pred_check_branch
      %173 = sbr.rel (0) target = $region77
    $region76: #{tpu_custom_call.1} parent=1 // pred_region
      %175 = dma.done [#allocation13], 512
    $region77: #{tpu_custom_call.1} parent=1 // pred_fallthru
      _
    // Predicated region
    $region78: #{tpu_custom_call.1} parent=1 // pred_check
      _
    $region79: #{tpu_custom_call.1} parent=1 // pred_check_branch
      %177 = sbr.rel (0) target = $region81
    $region80: #{tpu_custom_call.1} parent=1 // pred_region
      %179 = dma.done [#allocation13], 512
    $region81: #{tpu_custom_call.1} parent=1 // pred_fallthru
      _
    // Predicated region
    $region82: #{tpu_custom_call.1} parent=1 // pred_check
      _
    $region83: #{tpu_custom_call.1} parent=1 // pred_check_branch
      %181 = sbr.rel (0) target = $region85
    $region84: #{tpu_custom_call.1} parent=1 // pred_region
      %183 = dma.done [#allocation16], 512
    $region85: #{tpu_custom_call.1} parent=1 // pred_fallthru
      _
    // Predicated region
    $region86: #{tpu_custom_call.1} parent=1 // pred_check
      _
    $region87: #{tpu_custom_call.1} parent=1 // pred_check_branch
      %185 = sbr.rel (0) target = $region89
    $region88: #{tpu_custom_call.1} parent=1 // pred_region
      %187 = dma.done [#allocation16], 512
    $region89: #{tpu_custom_call.1} parent=1 // pred_fallthru
      _
    %v188 = vld [vmem:[#allocation6] sm:$0xff]
    %v189 = vld [vmem:[#allocation6 + $0x8] sm:$0xff]
    %v190 = vld [vmem:[#allocation6 + $0x10] sm:$0xff]
    %v191 = vld [vmem:[#allocation6 + $0x18] sm:$0xff]
    %v192 = vld [vmem:[%s2] sm:$0x1]
    %v193 = vld [vmem:[#allocation8] sm:$0xff]
    %v194 = vld [vmem:[#allocation8 + $0x8] sm:$0xff]
    %v195 = vld [vmem:[#allocation8 + $0x10] sm:$0xff]
    %v196 = vld [vmem:[#allocation8 + $0x18] sm:$0xff]
    %v197 = vld [vmem:[#allocation8 + $0x20] sm:$0xff]
    %v198 = vld [vmem:[#allocation8 + $0x28] sm:$0xff]
    %v199 = vld [vmem:[#allocation8 + $0x30] sm:$0xff]
    %v200 = vld [vmem:[#allocation8 + $0x38] sm:$0xff]
    %v201 = vld [vmem:[%s4] sm:$0x3]
    %v202 = vld [vmem:[#allocation3] sm:$0x3]
    %v204 = vperm.slane %v192, 0
    %vm206 = vcmask 261120
    %v208 = vsel %vm206, %v202, 0
    %210 = vmatpush.msra.mxu0 0.0
    %211 = vmatpush.msra.mxu0 0.0
    %212 = vmatpush.msra.mxu0 0.0
    %213 = vmatpush.msra.mxu0 0.0
    %214 = vmatpush.msra.mxu0 0.0
    %215 = vmatpush.msra.mxu0 0.0
    %216 = vmatpush.msra.mxu0 0.0
    %217 = vmatpush.msra.mxu0 0.0
    %218 = vmatpush.msra.mxu0 0.0
    %219 = vmatpush.msra.mxu0 0.0
    %220 = vmatpush.msra.mxu0 0.0
    %221 = vmatpush.msra.mxu0 0.0
    %222 = vmatpush.msra.mxu0 %v191
    %223 = vmatpush.msra.mxu0 %v190
    %224 = vmatpush.msra.mxu0 %v189
    %225 = vmatpush.msra.mxu0 %v188
    %226 = vmatmul.f32.gmra.mxu0 %v208
    %v227 = vpop.f32.mrf.mxu0
    %v228 = vadd.f32 %v204, %v227
    %229 = vdwg.mxu0
    %v230 = vxor.u32 %v228, 2147483648
    %v231 = vmul.f32 %v230, 1.442695
    %v232 = vpow.pop %v231
    %v233 = vadd.f32 %v232, 1.0
    %v234 = vrcp.pop %v233
    %v235 = vmul.f32 %v233, %v234
    %v236 = vsub.f32 1.0, %v235
    %v237 = vmul.f32 %v234, %v236
    %v238 = vadd.f32 %v234, %v237
    %vm239 = vweird.f32 %v233
    %vm240 = vweird.f32 %v234
    %vm241 = vmor %vm239, %vm240
    %v242 = vsel %vm241, %v234, %v238
    %v243 = vand.u32 2147483647, %v233
    %vm244 = vcmp.eq.f32.partialorder %v243, 8.507059e+37
    %v245 = vand.u32 %v233, 2147483648
    %v246 = vor.u32 1.1754944e-38, %v245
    %v247 = vsel %vm244, %v246, %v242
    %v248 = vmul.f32 1.0, %v247
    %v249 = vmax.f32 %v228, 0.0
    %251 = vrot.lane.b32.xlu0 %v249, 96
    %v252 = vpop.permute.xlu0 %251
    %v254 = vmul.f32 %v248, %v252
    %v255 = vsub.f32 1.0, %v248
    %257 = vrot.lane.b32.xlu0 %v228, 64
    %v258 = vpop.permute.xlu0 %257
    %v260 = vmul.f32 %v255, %v258
    %v261 = vadd.f32 %v254, %v260
    %v263 = vperm.slane %v201, 0
    %v264 = vperm.slane %v201, 1
    %v268 = vsel %vm206, %v261, 0
    %270 = vmatpush.msra.mxu0 0.0
    %271 = vmatpush.msra.mxu0 0.0
    %272 = vmatpush.msra.mxu0 0.0
    %273 = vmatpush.msra.mxu0 0.0
    %274 = vmatpush.msra.mxu0 0.0
    %275 = vmatpush.msra.mxu0 0.0
    %276 = vmatpush.msra.mxu0 0.0
    %277 = vmatpush.msra.mxu0 0.0
    %278 = vmatpush.msra.mxu0 0.0
    %279 = vmatpush.msra.mxu0 0.0
    %280 = vmatpush.msra.mxu0 0.0
    %281 = vmatpush.msra.mxu0 0.0
    %282 = vmatpush.msra.mxu0 %v199
    %283 = vmatpush.msra.mxu0 %v197
    %284 = vmatpush.msra.mxu0 %v195
    %285 = vmatpush.msra.mxu0 %v193
    %286 = vmatmul.f32.gmra.mxu0 %v268
    %v287 = vpop.f32.mrf.mxu0
    %v288 = vadd.f32 %v263, %v287
    %289 = vdwg.mxu0
    %290 = vmatpush.msra.mxu0 0.0
    %291 = vmatpush.msra.mxu0 0.0
    %292 = vmatpush.msra.mxu0 0.0
    %293 = vmatpush.msra.mxu0 0.0
    %294 = vmatpush.msra.mxu0 0.0
    %295 = vmatpush.msra.mxu0 0.0
    %296 = vmatpush.msra.mxu0 0.0
    %297 = vmatpush.msra.mxu0 0.0
    %298 = vmatpush.msra.mxu0 0.0
    %299 = vmatpush.msra.mxu0 0.0
    %300 = vmatpush.msra.mxu0 0.0
    %301 = vmatpush.msra.mxu0 0.0
    %302 = vmatpush.msra.mxu0 %v200
    %303 = vmatpush.msra.mxu0 %v198
    %304 = vmatpush.msra.mxu0 %v196
    %305 = vmatpush.msra.mxu0 %v194
    %306 = vmatmul.f32.gmra.mxu0 %v268
    %v307 = vpop.f32.mrf.mxu0
    %v308 = vadd.f32 %v264, %v307
    %309 = vdwg.mxu0
    %v312 = vrot.slane %v308, 6
    %vm313 = vcmask 1041408
    %v314 = vsel %vm313, %v288, %v312
    %316 = vst [vmem:[#allocation2] sm:$0xf] %v314
    %s317 = scalar_lea.vmem [#allocation3], 2
    %v318 = vld [vmem:[%s317] sm:$0x3]
    %v320 = vsel %vm206, %v318, 0
    %322 = vmatpush.msra.mxu0 0.0
    %323 = vmatpush.msra.mxu0 0.0
    %324 = vmatpush.msra.mxu0 0.0
    %325 = vmatpush.msra.mxu0 0.0
    %326 = vmatpush.msra.mxu0 0.0
    %327 = vmatpush.msra.mxu0 0.0
    %328 = vmatpush.msra.mxu0 0.0
    %329 = vmatpush.msra.mxu0 0.0
    %330 = vmatpush.msra.mxu0 0.0
    %331 = vmatpush.msra.mxu0 0.0
    %332 = vmatpush.msra.mxu0 0.0
    %333 = vmatpush.msra.mxu0 0.0
    %334 = vmatpush.msra.mxu0 %v191
    %335 = vmatpush.msra.mxu0 %v190
    %336 = vmatpush.msra.mxu0 %v189
    %337 = vmatpush.msra.mxu0 %v188
    %338 = vmatmul.f32.gmra.mxu0 %v320
    %v339 = vpop.f32.mrf.mxu0
    %v340 = vadd.f32 %v204, %v339
    %341 = vdwg.mxu0
    %v342 = vxor.u32 %v340, 2147483648
    %v343 = vmul.f32 %v342, 1.442695
    %v344 = vpow.pop %v343
    %v345 = vadd.f32 %v344, 1.0
    %v346 = vrcp.pop %v345
    %v347 = vmul.f32 %v345, %v346
    %v348 = vsub.f32 1.0, %v347
    %v349 = vmul.f32 %v346, %v348
    %v350 = vadd.f32 %v346, %v349
    %vm351 = vweird.f32 %v345
    %vm352 = vweird.f32 %v346
    %vm353 = vmor %vm351, %vm352
    %v354 = vsel %vm353, %v346, %v350
    %v355 = vand.u32 2147483647, %v345
    %vm356 = vcmp.eq.f32.partialorder %v355, 8.507059e+37
    %v357 = vand.u32 %v345, 2147483648
    %v358 = vor.u32 1.1754944e-38, %v357
    %v359 = vsel %vm356, %v358, %v354
    %v360 = vmul.f32 1.0, %v359
    %v361 = vmax.f32 %v340, 0.0
    %363 = vrot.lane.b32.xlu0 %v361, 96
    %v364 = vpop.permute.xlu0 %363
    %v366 = vmul.f32 %v360, %v364
    %v367 = vsub.f32 1.0, %v360
    %369 = vrot.lane.b32.xlu0 %v340, 64
    %v370 = vpop.permute.xlu0 %369
    %v372 = vmul.f32 %v367, %v370
    %v373 = vadd.f32 %v366, %v372
    %v375 = vsel %vm206, %v373, 0
    %377 = vmatpush.msra.mxu0 0.0
    %378 = vmatpush.msra.mxu0 0.0
    %379 = vmatpush.msra.mxu0 0.0
    %380 = vmatpush.msra.mxu0 0.0
    %381 = vmatpush.msra.mxu0 0.0
    %382 = vmatpush.msra.mxu0 0.0
    %383 = vmatpush.msra.mxu0 0.0
    %384 = vmatpush.msra.mxu0 0.0
    %385 = vmatpush.msra.mxu0 0.0
    %386 = vmatpush.msra.mxu0 0.0
    %387 = vmatpush.msra.mxu0 0.0
    %388 = vmatpush.msra.mxu0 0.0
    %389 = vmatpush.msra.mxu0 %v199
    %390 = vmatpush.msra.mxu0 %v197
    %391 = vmatpush.msra.mxu0 %v195
    %392 = vmatpush.msra.mxu0 %v193
    %393 = vmatmul.f32.gmra.mxu0 %v375
    %v394 = vpop.f32.mrf.mxu0
    %v395 = vadd.f32 %v263, %v394
    %396 = vdwg.mxu0
    %397 = vmatpush.msra.mxu0 0.0
    %398 = vmatpush.msra.mxu0 0.0
    %399 = vmatpush.msra.mxu0 0.0
    %400 = vmatpush.msra.mxu0 0.0
    %401 = vmatpush.msra.mxu0 0.0
    %402 = vmatpush.msra.mxu0 0.0
    %403 = vmatpush.msra.mxu0 0.0
    %404 = vmatpush.msra.mxu0 0.0
    %405 = vmatpush.msra.mxu0 0.0
    %406 = vmatpush.msra.mxu0 0.0
    %407 = vmatpush.msra.mxu0 0.0
    %408 = vmatpush.msra.mxu0 0.0
    %409 = vmatpush.msra.mxu0 %v200
    %410 = vmatpush.msra.mxu0 %v198
    %411 = vmatpush.msra.mxu0 %v196
    %412 = vmatpush.msra.mxu0 %v194
    %413 = vmatmul.f32.gmra.mxu0 %v375
    %v414 = vpop.f32.mrf.mxu0
    %v415 = vadd.f32 %v264, %v414
    %416 = vdwg.mxu0
    %v419 = vrot.slane %v415, 6
    %v420 = vsel %vm313, %v395, %v419
    %s422 = scalar_lea.vmem [#allocation2], 4
    %423 = vst [vmem:[%s422] sm:$0xf] %v420
    %s424 = scalar_lea.vmem [#allocation3], 4
    %v425 = vld [vmem:[%s424] sm:$0x3]
    %v427 = vsel %vm206, %v425, 0
    %429 = vmatpush.msra.mxu0 0.0
    %430 = vmatpush.msra.mxu0 0.0
    %431 = vmatpush.msra.mxu0 0.0
    %432 = vmatpush.msra.mxu0 0.0
    %433 = vmatpush.msra.mxu0 0.0
    %434 = vmatpush.msra.mxu0 0.0
    %435 = vmatpush.msra.mxu0 0.0
    %436 = vmatpush.msra.mxu0 0.0
    %437 = vmatpush.msra.mxu0 0.0
    %438 = vmatpush.msra.mxu0 0.0
    %439 = vmatpush.msra.mxu0 0.0
    %440 = vmatpush.msra.mxu0 0.0
    %441 = vmatpush.msra.mxu0 %v191
    %442 = vmatpush.msra.mxu0 %v190
    %443 = vmatpush.msra.mxu0 %v189
    %444 = vmatpush.msra.mxu0 %v188
    %445 = vmatmul.f32.gmra.mxu0 %v427
    %v446 = vpop.f32.mrf.mxu0
    %v447 = vadd.f32 %v204, %v446
    %448 = vdwg.mxu0
    %v449 = vxor.u32 %v447, 2147483648
    %v450 = vmul.f32 %v449, 1.442695
    %v451 = vpow.pop %v450
    %v452 = vadd.f32 %v451, 1.0
    %v453 = vrcp.pop %v452
    %v454 = vmul.f32 %v452, %v453
    %v455 = vsub.f32 1.0, %v454
    %v456 = vmul.f32 %v453, %v455
    %v457 = vadd.f32 %v453, %v456
    %vm458 = vweird.f32 %v452
    %vm459 = vweird.f32 %v453
    %vm460 = vmor %vm458, %vm459
    %v461 = vsel %vm460, %v453, %v457
    %v462 = vand.u32 2147483647, %v452
    %vm463 = vcmp.eq.f32.partialorder %v462, 8.507059e+37
    %v464 = vand.u32 %v452, 2147483648
    %v465 = vor.u32 1.1754944e-38, %v464
    %v466 = vsel %vm463, %v465, %v461
    %v467 = vmul.f32 1.0, %v466
    %v468 = vmax.f32 %v447, 0.0
    %470 = vrot.lane.b32.xlu0 %v468, 96
    %v471 = vpop.permute.xlu0 %470
    %v473 = vmul.f32 %v467, %v471
    %v474 = vsub.f32 1.0, %v467
    %476 = vrot.lane.b32.xlu0 %v447, 64
    %v477 = vpop.permute.xlu0 %476
    %v479 = vmul.f32 %v474, %v477
    %v480 = vadd.f32 %v473, %v479
    %v482 = vsel %vm206, %v480, 0
    %484 = vmatpush.msra.mxu0 0.0
    %485 = vmatpush.msra.mxu0 0.0
    %486 = vmatpush.msra.mxu0 0.0
    %487 = vmatpush.msra.mxu0 0.0
    %488 = vmatpush.msra.mxu0 0.0
    %489 = vmatpush.msra.mxu0 0.0
    %490 = vmatpush.msra.mxu0 0.0
    %491 = vmatpush.msra.mxu0 0.0
    %492 = vmatpush.msra.mxu0 0.0
    %493 = vmatpush.msra.mxu0 0.0
    %494 = vmatpush.msra.mxu0 0.0
    %495 = vmatpush.msra.mxu0 0.0
    %496 = vmatpush.msra.mxu0 %v199
    %497 = vmatpush.msra.mxu0 %v197
    %498 = vmatpush.msra.mxu0 %v195
    %499 = vmatpush.msra.mxu0 %v193
    %500 = vmatmul.f32.gmra.mxu0 %v482
    %v501 = vpop.f32.mrf.mxu0
    %v502 = vadd.f32 %v263, %v501
    %503 = vdwg.mxu0
    %504 = vmatpush.msra.mxu0 0.0
    %505 = vmatpush.msra.mxu0 0.0
    %506 = vmatpush.msra.mxu0 0.0
    %507 = vmatpush.msra.mxu0 0.0
    %508 = vmatpush.msra.mxu0 0.0
    %509 = vmatpush.msra.mxu0 0.0
    %510 = vmatpush.msra.mxu0 0.0
    %511 = vmatpush.msra.mxu0 0.0
    %512 = vmatpush.msra.mxu0 0.0
    %513 = vmatpush.msra.mxu0 0.0
    %514 = vmatpush.msra.mxu0 0.0
    %515 = vmatpush.msra.mxu0 0.0
    %516 = vmatpush.msra.mxu0 %v200
    %517 = vmatpush.msra.mxu0 %v198
    %518 = vmatpush.msra.mxu0 %v196
    %519 = vmatpush.msra.mxu0 %v194
    %520 = vmatmul.f32.gmra.mxu0 %v482
    %v521 = vpop.f32.mrf.mxu0
    %v522 = vadd.f32 %v264, %v521
    %523 = vdwg.mxu0
    %v526 = vrot.slane %v522, 6
    %v527 = vsel %vm313, %v502, %v526
    %s529 = scalar_lea.vmem [#allocation2], 8
    %530 = vst [vmem:[%s529] sm:$0xf] %v527
    %s531 = scalar_lea.vmem [#allocation3], 6
    %v532 = vld [vmem:[%s531] sm:$0x3]
    %v534 = vsel %vm206, %v532, 0
    %536 = vmatpush.msra.mxu0 0.0
    %537 = vmatpush.msra.mxu0 0.0
    %538 = vmatpush.msra.mxu0 0.0
    %539 = vmatpush.msra.mxu0 0.0
    %540 = vmatpush.msra.mxu0 0.0
    %541 = vmatpush.msra.mxu0 0.0
    %542 = vmatpush.msra.mxu0 0.0
    %543 = vmatpush.msra.mxu0 0.0
    %544 = vmatpush.msra.mxu0 0.0
    %545 = vmatpush.msra.mxu0 0.0
    %546 = vmatpush.msra.mxu0 0.0
    %547 = vmatpush.msra.mxu0 0.0
    %548 = vmatpush.msra.mxu0 %v191
    %549 = vmatpush.msra.mxu0 %v190
    %550 = vmatpush.msra.mxu0 %v189
    %551 = vmatpush.msra.mxu0 %v188
    %552 = vmatmul.f32.gmra.mxu0 %v534
    %v553 = vpop.f32.mrf.mxu0
    %v554 = vadd.f32 %v204, %v553
    %555 = vdwg.mxu0
    %v556 = vxor.u32 %v554, 2147483648
    %v557 = vmul.f32 %v556, 1.442695
    %v558 = vpow.pop %v557
    %v559 = vadd.f32 %v558, 1.0
    %v560 = vrcp.pop %v559
    %v561 = vmul.f32 %v559, %v560
    %v562 = vsub.f32 1.0, %v561
    %v563 = vmul.f32 %v560, %v562
    %v564 = vadd.f32 %v560, %v563
    %vm565 = vweird.f32 %v559
    %vm566 = vweird.f32 %v560
    %vm567 = vmor %vm565, %vm566
    %v568 = vsel %vm567, %v560, %v564
    %v569 = vand.u32 2147483647, %v559
    %vm570 = vcmp.eq.f32.partialorder %v569, 8.507059e+37
    %v571 = vand.u32 %v559, 2147483648
    %v572 = vor.u32 1.1754944e-38, %v571
    %v573 = vsel %vm570, %v572, %v568
    %v574 = vmul.f32 1.0, %v573
    %v575 = vmax.f32 %v554, 0.0
    %577 = vrot.lane.b32.xlu0 %v575, 96
    %v578 = vpop.permute.xlu0 %577
    %v580 = vmul.f32 %v574, %v578
    %v581 = vsub.f32 1.0, %v574
    %583 = vrot.lane.b32.xlu0 %v554, 64
    %v584 = vpop.permute.xlu0 %583
    %v586 = vmul.f32 %v581, %v584
    %v587 = vadd.f32 %v580, %v586
    %v589 = vsel %vm206, %v587, 0
    %591 = vmatpush.msra.mxu0 0.0
    %592 = vmatpush.msra.mxu0 0.0
    %593 = vmatpush.msra.mxu0 0.0
    %594 = vmatpush.msra.mxu0 0.0
    %595 = vmatpush.msra.mxu0 0.0
    %596 = vmatpush.msra.mxu0 0.0
    %597 = vmatpush.msra.mxu0 0.0
    %598 = vmatpush.msra.mxu0 0.0
    %599 = vmatpush.msra.mxu0 0.0
    %600 = vmatpush.msra.mxu0 0.0
    %601 = vmatpush.msra.mxu0 0.0
    %602 = vmatpush.msra.mxu0 0.0
    %603 = vmatpush.msra.mxu0 %v199
    %604 = vmatpush.msra.mxu0 %v197
    %605 = vmatpush.msra.mxu0 %v195
    %606 = vmatpush.msra.mxu0 %v193
    %607 = vmatmul.f32.gmra.mxu0 %v589
    %v608 = vpop.f32.mrf.mxu0
    %v609 = vadd.f32 %v263, %v608
    %610 = vdwg.mxu0
    %611 = vmatpush.msra.mxu0 0.0
    %612 = vmatpush.msra.mxu0 0.0
    %613 = vmatpush.msra.mxu0 0.0
    %614 = vmatpush.msra.mxu0 0.0
    %615 = vmatpush.msra.mxu0 0.0
    %616 = vmatpush.msra.mxu0 0.0
    %617 = vmatpush.msra.mxu0 0.0
    %618 = vmatpush.msra.mxu0 0.0
    %619 = vmatpush.msra.mxu0 0.0
    %620 = vmatpush.msra.mxu0 0.0
    %621 = vmatpush.msra.mxu0 0.0
    %622 = vmatpush.msra.mxu0 0.0
    %623 = vmatpush.msra.mxu0 %v200
    %624 = vmatpush.msra.mxu0 %v198
    %625 = vmatpush.msra.mxu0 %v196
    %626 = vmatpush.msra.mxu0 %v194
    %627 = vmatmul.f32.gmra.mxu0 %v589
    %v628 = vpop.f32.mrf.mxu0
    %v629 = vadd.f32 %v264, %v628
    %630 = vdwg.mxu0
    %v633 = vrot.slane %v629, 6
    %v634 = vsel %vm313, %v609, %v633
    %s636 = scalar_lea.vmem [#allocation2], 12
    %637 = vst [vmem:[%s636] sm:$0xf] %v634
    %s638 = scalar_lea.vmem [#allocation3], 8
    %v639 = vld [vmem:[%s638] sm:$0x3]
    %v641 = vsel %vm206, %v639, 0
    %643 = vmatpush.msra.mxu0 0.0
    %644 = vmatpush.msra.mxu0 0.0
    %645 = vmatpush.msra.mxu0 0.0
    %646 = vmatpush.msra.mxu0 0.0
    %647 = vmatpush.msra.mxu0 0.0
    %648 = vmatpush.msra.mxu0 0.0
    %649 = vmatpush.msra.mxu0 0.0
    %650 = vmatpush.msra.mxu0 0.0
    %651 = vmatpush.msra.mxu0 0.0
    %652 = vmatpush.msra.mxu0 0.0
    %653 = vmatpush.msra.mxu0 0.0
    %654 = vmatpush.msra.mxu0 0.0
    %655 = vmatpush.msra.mxu0 %v191
    %656 = vmatpush.msra.mxu0 %v190
    %657 = vmatpush.msra.mxu0 %v189
    %658 = vmatpush.msra.mxu0 %v188
    %659 = vmatmul.f32.gmra.mxu0 %v641
    %v660 = vpop.f32.mrf.mxu0
    %v661 = vadd.f32 %v204, %v660
    %662 = vdwg.mxu0
    %v663 = vxor.u32 %v661, 2147483648
    %v664 = vmul.f32 %v663, 1.442695
    %v665 = vpow.pop %v664
    %v666 = vadd.f32 %v665, 1.0
    %v667 = vrcp.pop %v666
    %v668 = vmul.f32 %v666, %v667
    %v669 = vsub.f32 1.0, %v668
    %v670 = vmul.f32 %v667, %v669
    %v671 = vadd.f32 %v667, %v670
    %vm672 = vweird.f32 %v666
    %vm673 = vweird.f32 %v667
    %vm674 = vmor %vm672, %vm673
    %v675 = vsel %vm674, %v667, %v671
    %v676 = vand.u32 2147483647, %v666
    %vm677 = vcmp.eq.f32.partialorder %v676, 8.507059e+37
    %v678 = vand.u32 %v666, 2147483648
    %v679 = vor.u32 1.1754944e-38, %v678
    %v680 = vsel %vm677, %v679, %v675
    %v681 = vmul.f32 1.0, %v680
    %v682 = vmax.f32 %v661, 0.0
    %684 = vrot.lane.b32.xlu0 %v682, 96
    %v685 = vpop.permute.xlu0 %684
    %v687 = vmul.f32 %v681, %v685
    %v688 = vsub.f32 1.0, %v681
    %690 = vrot.lane.b32.xlu0 %v661, 64
    %v691 = vpop.permute.xlu0 %690
    %v693 = vmul.f32 %v688, %v691
    %v694 = vadd.f32 %v687, %v693
    %v696 = vsel %vm206, %v694, 0
    %698 = vmatpush.msra.mxu0 0.0
    %699 = vmatpush.msra.mxu0 0.0
    %700 = vmatpush.msra.mxu0 0.0
    %701 = vmatpush.msra.mxu0 0.0
    %702 = vmatpush.msra.mxu0 0.0
    %703 = vmatpush.msra.mxu0 0.0
    %704 = vmatpush.msra.mxu0 0.0
    %705 = vmatpush.msra.mxu0 0.0
    %706 = vmatpush.msra.mxu0 0.0
    %707 = vmatpush.msra.mxu0 0.0
    %708 = vmatpush.msra.mxu0 0.0
    %709 = vmatpush.msra.mxu0 0.0
    %710 = vmatpush.msra.mxu0 %v199
    %711 = vmatpush.msra.mxu0 %v197
    %712 = vmatpush.msra.mxu0 %v195
    %713 = vmatpush.msra.mxu0 %v193
    %714 = vmatmul.f32.gmra.mxu0 %v696
    %v715 = vpop.f32.mrf.mxu0
    %v716 = vadd.f32 %v263, %v715
    %717 = vdwg.mxu0
    %718 = vmatpush.msra.mxu0 0.0
    %719 = vmatpush.msra.mxu0 0.0
    %720 = vmatpush.msra.mxu0 0.0
    %721 = vmatpush.msra.mxu0 0.0
    %722 = vmatpush.msra.mxu0 0.0
    %723 = vmatpush.msra.mxu0 0.0
    %724 = vmatpush.msra.mxu0 0.0
    %725 = vmatpush.msra.mxu0 0.0
    %726 = vmatpush.msra.mxu0 0.0
    %727 = vmatpush.msra.mxu0 0.0
    %728 = vmatpush.msra.mxu0 0.0
    %729 = vmatpush.msra.mxu0 0.0
    %730 = vmatpush.msra.mxu0 %v200
    %731 = vmatpush.msra.mxu0 %v198
    %732 = vmatpush.msra.mxu0 %v196
    %733 = vmatpush.msra.mxu0 %v194
    %734 = vmatmul.f32.gmra.mxu0 %v696
    %v735 = vpop.f32.mrf.mxu0
    %v736 = vadd.f32 %v264, %v735
    %737 = vdwg.mxu0
    %v740 = vrot.slane %v736, 6
    %v741 = vsel %vm313, %v716, %v740
    %s743 = scalar_lea.vmem [#allocation2], 16
    %744 = vst [vmem:[%s743] sm:$0xf] %v741
    %s745 = scalar_lea.vmem [#allocation3], 10
    %v746 = vld [vmem:[%s745] sm:$0x3]
    %v748 = vsel %vm206, %v746, 0
    %750 = vmatpush.msra.mxu0 0.0
    %751 = vmatpush.msra.mxu0 0.0
    %752 = vmatpush.msra.mxu0 0.0
    %753 = vmatpush.msra.mxu0 0.0
    %754 = vmatpush.msra.mxu0 0.0
    %755 = vmatpush.msra.mxu0 0.0
    %756 = vmatpush.msra.mxu0 0.0
    %757 = vmatpush.msra.mxu0 0.0
    %758 = vmatpush.msra.mxu0 0.0
    %759 = vmatpush.msra.mxu0 0.0
    %760 = vmatpush.msra.mxu0 0.0
    %761 = vmatpush.msra.mxu0 0.0
    %762 = vmatpush.msra.mxu0 %v191
    %763 = vmatpush.msra.mxu0 %v190
    %764 = vmatpush.msra.mxu0 %v189
    %765 = vmatpush.msra.mxu0 %v188
    %766 = vmatmul.f32.gmra.mxu0 %v748
    %v767 = vpop.f32.mrf.mxu0
    %v768 = vadd.f32 %v204, %v767
    %769 = vdwg.mxu0
    %v770 = vxor.u32 %v768, 2147483648
    %v771 = vmul.f32 %v770, 1.442695
    %v772 = vpow.pop %v771
    %v773 = vadd.f32 %v772, 1.0
    %v774 = vrcp.pop %v773
    %v775 = vmul.f32 %v773, %v774
    %v776 = vsub.f32 1.0, %v775
    %v777 = vmul.f32 %v774, %v776
    %v778 = vadd.f32 %v774, %v777
    %vm779 = vweird.f32 %v773
    %vm780 = vweird.f32 %v774
    %vm781 = vmor %vm779, %vm780
    %v782 = vsel %vm781, %v774, %v778
    %v783 = vand.u32 2147483647, %v773
    %vm784 = vcmp.eq.f32.partialorder %v783, 8.507059e+37
    %v785 = vand.u32 %v773, 2147483648
    %v786 = vor.u32 1.1754944e-38, %v785
    %v787 = vsel %vm784, %v786, %v782
    %v788 = vmul.f32 1.0, %v787
    %v789 = vmax.f32 %v768, 0.0
    %791 = vrot.lane.b32.xlu0 %v789, 96
    %v792 = vpop.permute.xlu0 %791
    %v794 = vmul.f32 %v788, %v792
    %v795 = vsub.f32 1.0, %v788
    %797 = vrot.lane.b32.xlu0 %v768, 64
    %v798 = vpop.permute.xlu0 %797
    %v800 = vmul.f32 %v795, %v798
    %v801 = vadd.f32 %v794, %v800
    %v803 = vsel %vm206, %v801, 0
    %805 = vmatpush.msra.mxu0 0.0
    %806 = vmatpush.msra.mxu0 0.0
    %807 = vmatpush.msra.mxu0 0.0
    %808 = vmatpush.msra.mxu0 0.0
    %809 = vmatpush.msra.mxu0 0.0
    %810 = vmatpush.msra.mxu0 0.0
    %811 = vmatpush.msra.mxu0 0.0
    %812 = vmatpush.msra.mxu0 0.0
    %813 = vmatpush.msra.mxu0 0.0
    %814 = vmatpush.msra.mxu0 0.0
    %815 = vmatpush.msra.mxu0 0.0
    %816 = vmatpush.msra.mxu0 0.0
    %817 = vmatpush.msra.mxu0 %v199
    %818 = vmatpush.msra.mxu0 %v197
    %819 = vmatpush.msra.mxu0 %v195
    %820 = vmatpush.msra.mxu0 %v193
    %821 = vmatmul.f32.gmra.mxu0 %v803
    %v822 = vpop.f32.mrf.mxu0
    %v823 = vadd.f32 %v263, %v822
    %824 = vdwg.mxu0
    %825 = vmatpush.msra.mxu0 0.0
    %826 = vmatpush.msra.mxu0 0.0
    %827 = vmatpush.msra.mxu0 0.0
    %828 = vmatpush.msra.mxu0 0.0
    %829 = vmatpush.msra.mxu0 0.0
    %830 = vmatpush.msra.mxu0 0.0
    %831 = vmatpush.msra.mxu0 0.0
    %832 = vmatpush.msra.mxu0 0.0
    %833 = vmatpush.msra.mxu0 0.0
    %834 = vmatpush.msra.mxu0 0.0
    %835 = vmatpush.msra.mxu0 0.0
    %836 = vmatpush.msra.mxu0 0.0
    %837 = vmatpush.msra.mxu0 %v200
    %838 = vmatpush.msra.mxu0 %v198
    %839 = vmatpush.msra.mxu0 %v196
    %840 = vmatpush.msra.mxu0 %v194
    %841 = vmatmul.f32.gmra.mxu0 %v803
    %v842 = vpop.f32.mrf.mxu0
    %v843 = vadd.f32 %v264, %v842
    %844 = vdwg.mxu0
    %v847 = vrot.slane %v843, 6
    %v848 = vsel %vm313, %v823, %v847
    %s850 = scalar_lea.vmem [#allocation2], 20
    %851 = vst [vmem:[%s850] sm:$0xf] %v848
    %s852 = scalar_lea.vmem [#allocation3], 12
    %v853 = vld [vmem:[%s852] sm:$0x3]
    %v855 = vsel %vm206, %v853, 0
    %857 = vmatpush.msra.mxu0 0.0
    %858 = vmatpush.msra.mxu0 0.0
    %859 = vmatpush.msra.mxu0 0.0
    %860 = vmatpush.msra.mxu0 0.0
    %861 = vmatpush.msra.mxu0 0.0
    %862 = vmatpush.msra.mxu0 0.0
    %863 = vmatpush.msra.mxu0 0.0
    %864 = vmatpush.msra.mxu0 0.0
    %865 = vmatpush.msra.mxu0 0.0
    %866 = vmatpush.msra.mxu0 0.0
    %867 = vmatpush.msra.mxu0 0.0
    %868 = vmatpush.msra.mxu0 0.0
    %869 = vmatpush.msra.mxu0 %v191
    %870 = vmatpush.msra.mxu0 %v190
    %871 = vmatpush.msra.mxu0 %v189
    %872 = vmatpush.msra.mxu0 %v188
    %873 = vmatmul.f32.gmra.mxu0 %v855
    %v874 = vpop.f32.mrf.mxu0
    %v875 = vadd.f32 %v204, %v874
    %876 = vdwg.mxu0
    %v877 = vxor.u32 %v875, 2147483648
    %v878 = vmul.f32 %v877, 1.442695
    %v879 = vpow.pop %v878
    %v880 = vadd.f32 %v879, 1.0
    %v881 = vrcp.pop %v880
    %v882 = vmul.f32 %v880, %v881
    %v883 = vsub.f32 1.0, %v882
    %v884 = vmul.f32 %v881, %v883
    %v885 = vadd.f32 %v881, %v884
    %vm886 = vweird.f32 %v880
    %vm887 = vweird.f32 %v881
    %vm888 = vmor %vm886, %vm887
    %v889 = vsel %vm888, %v881, %v885
    %v890 = vand.u32 2147483647, %v880
    %vm891 = vcmp.eq.f32.partialorder %v890, 8.507059e+37
    %v892 = vand.u32 %v880, 2147483648
    %v893 = vor.u32 1.1754944e-38, %v892
    %v894 = vsel %vm891, %v893, %v889
    %v895 = vmul.f32 1.0, %v894
    %v896 = vmax.f32 %v875, 0.0
    %898 = vrot.lane.b32.xlu0 %v896, 96
    %v899 = vpop.permute.xlu0 %898
    %v901 = vmul.f32 %v895, %v899
    %v902 = vsub.f32 1.0, %v895
    %904 = vrot.lane.b32.xlu0 %v875, 64
    %v905 = vpop.permute.xlu0 %904
    %v907 = vmul.f32 %v902, %v905
    %v908 = vadd.f32 %v901, %v907
    %v910 = vsel %vm206, %v908, 0
    %912 = vmatpush.msra.mxu0 0.0
    %913 = vmatpush.msra.mxu0 0.0
    %914 = vmatpush.msra.mxu0 0.0
    %915 = vmatpush.msra.mxu0 0.0
    %916 = vmatpush.msra.mxu0 0.0
    %917 = vmatpush.msra.mxu0 0.0
    %918 = vmatpush.msra.mxu0 0.0
    %919 = vmatpush.msra.mxu0 0.0
    %920 = vmatpush.msra.mxu0 0.0
    %921 = vmatpush.msra.mxu0 0.0
    %922 = vmatpush.msra.mxu0 0.0
    %923 = vmatpush.msra.mxu0 0.0
    %924 = vmatpush.msra.mxu0 %v199
    %925 = vmatpush.msra.mxu0 %v197
    %926 = vmatpush.msra.mxu0 %v195
    %927 = vmatpush.msra.mxu0 %v193
    %928 = vmatmul.f32.gmra.mxu0 %v910
    %v929 = vpop.f32.mrf.mxu0
    %v930 = vadd.f32 %v263, %v929
    %931 = vdwg.mxu0
    %932 = vmatpush.msra.mxu0 0.0
    %933 = vmatpush.msra.mxu0 0.0
    %934 = vmatpush.msra.mxu0 0.0
    %935 = vmatpush.msra.mxu0 0.0
    %936 = vmatpush.msra.mxu0 0.0
    %937 = vmatpush.msra.mxu0 0.0
    %938 = vmatpush.msra.mxu0 0.0
    %939 = vmatpush.msra.mxu0 0.0
    %940 = vmatpush.msra.mxu0 0.0
    %941 = vmatpush.msra.mxu0 0.0
    %942 = vmatpush.msra.mxu0 0.0
    %943 = vmatpush.msra.mxu0 0.0
    %944 = vmatpush.msra.mxu0 %v200
    %945 = vmatpush.msra.mxu0 %v198
    %946 = vmatpush.msra.mxu0 %v196
    %947 = vmatpush.msra.mxu0 %v194
    %948 = vmatmul.f32.gmra.mxu0 %v910
    %v949 = vpop.f32.mrf.mxu0
    %v950 = vadd.f32 %v264, %v949
    %951 = vdwg.mxu0
    %v954 = vrot.slane %v950, 6
    %v955 = vsel %vm313, %v930, %v954
    %s957 = scalar_lea.vmem [#allocation2], 24
    %958 = vst [vmem:[%s957] sm:$0xf] %v955
    %s959 = scalar_lea.vmem [#allocation3], 14
    %v960 = vld [vmem:[%s959] sm:$0x3]
    %v962 = vsel %vm206, %v960, 0
    %964 = vmatpush.msra.mxu0 0.0
    %965 = vmatpush.msra.mxu0 0.0
    %966 = vmatpush.msra.mxu0 0.0
    %967 = vmatpush.msra.mxu0 0.0
    %968 = vmatpush.msra.mxu0 0.0
    %969 = vmatpush.msra.mxu0 0.0
    %970 = vmatpush.msra.mxu0 0.0
    %971 = vmatpush.msra.mxu0 0.0
    %972 = vmatpush.msra.mxu0 0.0
    %973 = vmatpush.msra.mxu0 0.0
    %974 = vmatpush.msra.mxu0 0.0
    %975 = vmatpush.msra.mxu0 0.0
    %976 = vmatpush.msra.mxu0 %v191
    %977 = vmatpush.msra.mxu0 %v190
    %978 = vmatpush.msra.mxu0 %v189
    %979 = vmatpush.msra.mxu0 %v188
    %980 = vmatmul.f32.gmra.mxu0 %v962
    %v981 = vpop.f32.mrf.mxu0
    %v982 = vadd.f32 %v204, %v981
    %983 = vdwg.mxu0
    %v984 = vxor.u32 %v982, 2147483648
    %v985 = vmul.f32 %v984, 1.442695
    %v986 = vpow.pop %v985
    %v987 = vadd.f32 %v986, 1.0
    %v988 = vrcp.pop %v987
    %v989 = vmul.f32 %v987, %v988
    %v990 = vsub.f32 1.0, %v989
    %v991 = vmul.f32 %v988, %v990
    %v992 = vadd.f32 %v988, %v991
    %vm993 = vweird.f32 %v987
    %vm994 = vweird.f32 %v988
    %vm995 = vmor %vm993, %vm994
    %v996 = vsel %vm995, %v988, %v992
    %v997 = vand.u32 2147483647, %v987
    %vm998 = vcmp.eq.f32.partialorder %v997, 8.507059e+37
    %v999 = vand.u32 %v987, 2147483648
    %v1000 = vor.u32 1.1754944e-38, %v999
    %v1001 = vsel %vm998, %v1000, %v996
    %v1002 = vmul.f32 1.0, %v1001
    %v1003 = vmax.f32 %v982, 0.0
    %1005 = vrot.lane.b32.xlu0 %v1003, 96
    %v1006 = vpop.permute.xlu0 %1005
    %v1008 = vmul.f32 %v1002, %v1006
    %v1009 = vsub.f32 1.0, %v1002
    %1011 = vrot.lane.b32.xlu0 %v982, 64
    %v1012 = vpop.permute.xlu0 %1011
    %v1014 = vmul.f32 %v1009, %v1012
    %v1015 = vadd.f32 %v1008, %v1014
    %v1017 = vsel %vm206, %v1015, 0
    %1019 = vmatpush.msra.mxu0 0.0
    %1020 = vmatpush.msra.mxu0 0.0
    %1021 = vmatpush.msra.mxu0 0.0
    %1022 = vmatpush.msra.mxu0 0.0
    %1023 = vmatpush.msra.mxu0 0.0
    %1024 = vmatpush.msra.mxu0 0.0
    %1025 = vmatpush.msra.mxu0 0.0
    %1026 = vmatpush.msra.mxu0 0.0
    %1027 = vmatpush.msra.mxu0 0.0
    %1028 = vmatpush.msra.mxu0 0.0
    %1029 = vmatpush.msra.mxu0 0.0
    %1030 = vmatpush.msra.mxu0 0.0
    %1031 = vmatpush.msra.mxu0 %v199
    %1032 = vmatpush.msra.mxu0 %v197
    %1033 = vmatpush.msra.mxu0 %v195
    %1034 = vmatpush.msra.mxu0 %v193
    %1035 = vmatmul.f32.gmra.mxu0 %v1017
    %v1036 = vpop.f32.mrf.mxu0
    %v1037 = vadd.f32 %v263, %v1036
    %1038 = vdwg.mxu0
    %1039 = vmatpush.msra.mxu0 0.0
    %1040 = vmatpush.msra.mxu0 0.0
    %1041 = vmatpush.msra.mxu0 0.0
    %1042 = vmatpush.msra.mxu0 0.0
    %1043 = vmatpush.msra.mxu0 0.0
    %1044 = vmatpush.msra.mxu0 0.0
    %1045 = vmatpush.msra.mxu0 0.0
    %1046 = vmatpush.msra.mxu0 0.0
    %1047 = vmatpush.msra.mxu0 0.0
    %1048 = vmatpush.msra.mxu0 0.0
    %1049 = vmatpush.msra.mxu0 0.0
    %1050 = vmatpush.msra.mxu0 0.0
    %1051 = vmatpush.msra.mxu0 %v200
    %1052 = vmatpush.msra.mxu0 %v198
    %1053 = vmatpush.msra.mxu0 %v196
    %1054 = vmatpush.msra.mxu0 %v194
    %1055 = vmatmul.f32.gmra.mxu0 %v1017
    %v1056 = vpop.f32.mrf.mxu0
    %v1057 = vadd.f32 %v264, %v1056
    %1058 = vdwg.mxu0
    %v1061 = vrot.slane %v1057, 6
    %v1062 = vsel %vm313, %v1037, %v1061
    %s1064 = scalar_lea.vmem [#allocation2], 28
    %1065 = vst [vmem:[%s1064] sm:$0xf] %v1062
    %v1066 = vld [vmem:[#allocation9] sm:$0xff]
    %v1067 = vld [vmem:[#allocation9 + $0x8] sm:$0xff]
    %v1068 = vld [vmem:[#allocation9 + $0x10] sm:$0xff]
    %v1069 = vld [vmem:[#allocation9 + $0x18] sm:$0xff]
    %v1070 = vld [vmem:[#allocation11] sm:$0xff]
    %v1071 = vld [vmem:[#allocation11 + $0x8] sm:$0xff]
    %v1072 = vld [vmem:[#allocation11 + $0x10] sm:$0xff]
    %v1073 = vld [vmem:[#allocation11 + $0x18] sm:$0xff]
    %v1074 = vld [vmem:[#allocation2] sm:$0xf]
    %v1076 = vsel %vm206, 0.0, 0
    %1078 = vmatpush.msra.mxu0 0.0
    %1079 = vmatpush.msra.mxu0 0.0
    %1080 = vmatpush.msra.mxu0 0.0
    %1081 = vmatpush.msra.mxu0 0.0
    %1082 = vmatpush.msra.mxu0 0.0
    %1083 = vmatpush.msra.mxu0 0.0
    %1084 = vmatpush.msra.mxu0 0.0
    %1085 = vmatpush.msra.mxu0 0.0
    %1086 = vmatpush.msra.mxu0 0.0
    %1087 = vmatpush.msra.mxu0 0.0
    %1088 = vmatpush.msra.mxu0 0.0
    %1089 = vmatpush.msra.mxu0 0.0
    %1090 = vmatpush.msra.mxu0 %v1069
    %1091 = vmatpush.msra.mxu0 %v1068
    %1092 = vmatpush.msra.mxu0 %v1067
    %1093 = vmatpush.msra.mxu0 %v1066
    %1094 = vmatmul.f32.gmra.mxu0 %v1076
    %v1095 = vpop.f32.mrf.mxu0
    %v1096 = vadd.f32 0.0, %v1095
    %1097 = vdwg.mxu0
    %v1098 = vadd.f32 %v1074, %v1096
    %v1099 = vxor.u32 %v1098, 2147483648
    %v1100 = vmul.f32 %v1099, 1.442695
    %v1101 = vpow.pop %v1100
    %v1102 = vadd.f32 %v1101, 1.0
    %v1103 = vrcp.pop %v1102
    %v1104 = vmul.f32 %v1102, %v1103
    %v1105 = vsub.f32 1.0, %v1104
    %v1106 = vmul.f32 %v1103, %v1105
    %v1107 = vadd.f32 %v1103, %v1106
    %vm1108 = vweird.f32 %v1102
    %vm1109 = vweird.f32 %v1103
    %vm1110 = vmor %vm1108, %vm1109
    %v1111 = vsel %vm1110, %v1103, %v1107
    %v1112 = vand.u32 2147483647, %v1102
    %vm1113 = vcmp.eq.f32.partialorder %v1112, 8.507059e+37
    %v1114 = vand.u32 %v1102, 2147483648
    %v1115 = vor.u32 1.1754944e-38, %v1114
    %v1116 = vsel %vm1113, %v1115, %v1111
    %v1117 = vmul.f32 1.0, %v1116
    %v1118 = vtanh.pop %v1098
    %v1119 = vmul.f32 %v1117, 0.0
    %1121 = vrot.lane.b32.xlu0 %v1118, 32
    %v1122 = vpop.permute.xlu0 %1121
    %v1124 = vmul.f32 %v1117, %v1122
    %1126 = vrot.lane.b32.xlu0 %v1124, 32
    %v1127 = vpop.permute.xlu0 %1126
    %v1129 = vadd.f32 %v1119, %v1127
    %v1130 = vtanh.pop %v1129
    %1132 = vrot.lane.b32.xlu0 %v1130, 32
    %v1133 = vpop.permute.xlu0 %1132
    %v1135 = vmul.f32 %v1117, %v1133
    %v1136 = vld [vmem:[%s422] sm:$0xf]
    %1138 = vst [vmem:[#allocation1] ss:$4 sm:$0xff] %v1135
    %v1139 = vld.sshfl [vmem:[#allocation1] sm:$0xff pattern:$0x73625140]
    %1140 = vrot.lane.b32.xlu0 %v1139, 64
    %v1141 = vpop.permute.xlu0 %1140
    %v1142 = vsel %vm206, %v1141, 0
    %1144 = vmatpush.msra.mxu0 0.0
    %1145 = vmatpush.msra.mxu0 0.0
    %1146 = vmatpush.msra.mxu0 0.0
    %1147 = vmatpush.msra.mxu0 0.0
    %1148 = vmatpush.msra.mxu0 0.0
    %1149 = vmatpush.msra.mxu0 0.0
    %1150 = vmatpush.msra.mxu0 0.0
    %1151 = vmatpush.msra.mxu0 0.0
    %1152 = vmatpush.msra.mxu0 0.0
    %1153 = vmatpush.msra.mxu0 0.0
    %1154 = vmatpush.msra.mxu0 0.0
    %1155 = vmatpush.msra.mxu0 0.0
    %1156 = vmatpush.msra.mxu0 %v1069
    %1157 = vmatpush.msra.mxu0 %v1068
    %1158 = vmatpush.msra.mxu0 %v1067
    %1159 = vmatpush.msra.mxu0 %v1066
    %1160 = vmatmul.f32.gmra.mxu0 %v1142
    %v1161 = vpop.f32.mrf.mxu0
    %v1162 = vadd.f32 0.0, %v1161
    %1163 = vdwg.mxu0
    %v1164 = vadd.f32 %v1136, %v1162
    %v1165 = vxor.u32 %v1164, 2147483648
    %v1166 = vmul.f32 %v1165, 1.442695
    %v1167 = vpow.pop %v1166
    %v1168 = vadd.f32 %v1167, 1.0
    %v1169 = vrcp.pop %v1168
    %v1170 = vmul.f32 %v1168, %v1169
    %v1171 = vsub.f32 1.0, %v1170
    %v1172 = vmul.f32 %v1169, %v1171
    %v1173 = vadd.f32 %v1169, %v1172
    %vm1174 = vweird.f32 %v1168
    %vm1175 = vweird.f32 %v1169
    %vm1176 = vmor %vm1174, %vm1175
    %v1177 = vsel %vm1176, %v1169, %v1173
    %v1178 = vand.u32 2147483647, %v1168
    %vm1179 = vcmp.eq.f32.partialorder %v1178, 8.507059e+37
    %v1180 = vand.u32 %v1168, 2147483648
    %v1181 = vor.u32 1.1754944e-38, %v1180
    %v1182 = vsel %vm1179, %v1181, %v1177
    %v1183 = vmul.f32 1.0, %v1182
    %v1184 = vtanh.pop %v1164
    %v1185 = vmul.f32 %v1183, %v1129
    %1187 = vrot.lane.b32.xlu0 %v1184, 32
    %v1188 = vpop.permute.xlu0 %1187
    %v1190 = vmul.f32 %v1183, %v1188
    %1192 = vrot.lane.b32.xlu0 %v1190, 32
    %v1193 = vpop.permute.xlu0 %1192
    %v1195 = vadd.f32 %v1185, %v1193
    %v1196 = vtanh.pop %v1195
    %1198 = vrot.lane.b32.xlu0 %v1196, 32
    %v1199 = vpop.permute.xlu0 %1198
    %v1201 = vmul.f32 %v1183, %v1199
    %v1202 = vld [vmem:[%s529] sm:$0xf]
    %1204 = vst [vmem:[#allocation1] ss:$4 sm:$0xff] %v1201
    %v1205 = vld.sshfl [vmem:[#allocation1] sm:$0xff pattern:$0x73625140]
    %1206 = vrot.lane.b32.xlu0 %v1205, 64
    %v1207 = vpop.permute.xlu0 %1206
    %v1208 = vsel %vm206, %v1207, 0
    %1210 = vmatpush.msra.mxu0 0.0
    %1211 = vmatpush.msra.mxu0 0.0
    %1212 = vmatpush.msra.mxu0 0.0
    %1213 = vmatpush.msra.mxu0 0.0
    %1214 = vmatpush.msra.mxu0 0.0
    %1215 = vmatpush.msra.mxu0 0.0
    %1216 = vmatpush.msra.mxu0 0.0
    %1217 = vmatpush.msra.mxu0 0.0
    %1218 = vmatpush.msra.mxu0 0.0
    %1219 = vmatpush.msra.mxu0 0.0
    %1220 = vmatpush.msra.mxu0 0.0
    %1221 = vmatpush.msra.mxu0 0.0
    %1222 = vmatpush.msra.mxu0 %v1069
    %1223 = vmatpush.msra.mxu0 %v1068
    %1224 = vmatpush.msra.mxu0 %v1067
    %1225 = vmatpush.msra.mxu0 %v1066
    %1226 = vmatmul.f32.gmra.mxu0 %v1208
    %v1227 = vpop.f32.mrf.mxu0
    %v1228 = vadd.f32 0.0, %v1227
    %1229 = vdwg.mxu0
    %v1230 = vadd.f32 %v1202, %v1228
    %v1231 = vxor.u32 %v1230, 2147483648
    %v1232 = vmul.f32 %v1231, 1.442695
    %v1233 = vpow.pop %v1232
    %v1234 = vadd.f32 %v1233, 1.0
    %v1235 = vrcp.pop %v1234
    %v1236 = vmul.f32 %v1234, %v1235
    %v1237 = vsub.f32 1.0, %v1236
    %v1238 = vmul.f32 %v1235, %v1237
    %v1239 = vadd.f32 %v1235, %v1238
    %vm1240 = vweird.f32 %v1234
    %vm1241 = vweird.f32 %v1235
    %vm1242 = vmor %vm1240, %vm1241
    %v1243 = vsel %vm1242, %v1235, %v1239
    %v1244 = vand.u32 2147483647, %v1234
    %vm1245 = vcmp.eq.f32.partialorder %v1244, 8.507059e+37
    %v1246 = vand.u32 %v1234, 2147483648
    %v1247 = vor.u32 1.1754944e-38, %v1246
    %v1248 = vsel %vm1245, %v1247, %v1243
    %v1249 = vmul.f32 1.0, %v1248
    %v1250 = vtanh.pop %v1230
    %v1251 = vmul.f32 %v1249, %v1195
    %1253 = vrot.lane.b32.xlu0 %v1250, 32
    %v1254 = vpop.permute.xlu0 %1253
    %v1256 = vmul.f32 %v1249, %v1254
    %1258 = vrot.lane.b32.xlu0 %v1256, 32
    %v1259 = vpop.permute.xlu0 %1258
    %v1261 = vadd.f32 %v1251, %v1259
    %v1262 = vtanh.pop %v1261
    %1264 = vrot.lane.b32.xlu0 %v1262, 32
    %v1265 = vpop.permute.xlu0 %1264
    %v1267 = vmul.f32 %v1249, %v1265
    %v1268 = vld [vmem:[%s636] sm:$0xf]
    %1270 = vst [vmem:[#allocation1] ss:$4 sm:$0xff] %v1267
    %v1271 = vld.sshfl [vmem:[#allocation1] sm:$0xff pattern:$0x73625140]
    %1272 = vrot.lane.b32.xlu0 %v1271, 64
    %v1273 = vpop.permute.xlu0 %1272
    %v1274 = vsel %vm206, %v1273, 0
    %1276 = vmatpush.msra.mxu0 0.0
    %1277 = vmatpush.msra.mxu0 0.0
    %1278 = vmatpush.msra.mxu0 0.0
    %1279 = vmatpush.msra.mxu0 0.0
    %1280 = vmatpush.msra.mxu0 0.0
    %1281 = vmatpush.msra.mxu0 0.0
    %1282 = vmatpush.msra.mxu0 0.0
    %1283 = vmatpush.msra.mxu0 0.0
    %1284 = vmatpush.msra.mxu0 0.0
    %1285 = vmatpush.msra.mxu0 0.0
    %1286 = vmatpush.msra.mxu0 0.0
    %1287 = vmatpush.msra.mxu0 0.0
    %1288 = vmatpush.msra.mxu0 %v1069
    %1289 = vmatpush.msra.mxu0 %v1068
    %1290 = vmatpush.msra.mxu0 %v1067
    %1291 = vmatpush.msra.mxu0 %v1066
    %1292 = vmatmul.f32.gmra.mxu0 %v1274
    %v1293 = vpop.f32.mrf.mxu0
    %v1294 = vadd.f32 0.0, %v1293
    %1295 = vdwg.mxu0
    %v1296 = vadd.f32 %v1268, %v1294
    %v1297 = vxor.u32 %v1296, 2147483648
    %v1298 = vmul.f32 %v1297, 1.442695
    %v1299 = vpow.pop %v1298
    %v1300 = vadd.f32 %v1299, 1.0
    %v1301 = vrcp.pop %v1300
    %v1302 = vmul.f32 %v1300, %v1301
    %v1303 = vsub.f32 1.0, %v1302
    %v1304 = vmul.f32 %v1301, %v1303
    %v1305 = vadd.f32 %v1301, %v1304
    %vm1306 = vweird.f32 %v1300
    %vm1307 = vweird.f32 %v1301
    %vm1308 = vmor %vm1306, %vm1307
    %v1309 = vsel %vm1308, %v1301, %v1305
    %v1310 = vand.u32 2147483647, %v1300
    %vm1311 = vcmp.eq.f32.partialorder %v1310, 8.507059e+37
    %v1312 = vand.u32 %v1300, 2147483648
    %v1313 = vor.u32 1.1754944e-38, %v1312
    %v1314 = vsel %vm1311, %v1313, %v1309
    %v1315 = vmul.f32 1.0, %v1314
    %v1316 = vtanh.pop %v1296
    %v1317 = vmul.f32 %v1315, %v1261
    %1319 = vrot.lane.b32.xlu0 %v1316, 32
    %v1320 = vpop.permute.xlu0 %1319
    %v1322 = vmul.f32 %v1315, %v1320
    %1324 = vrot.lane.b32.xlu0 %v1322, 32
    %v1325 = vpop.permute.xlu0 %1324
    %v1327 = vadd.f32 %v1317, %v1325
    %v1328 = vtanh.pop %v1327
    %1330 = vrot.lane.b32.xlu0 %v1328, 32
    %v1331 = vpop.permute.xlu0 %1330
    %v1333 = vmul.f32 %v1315, %v1331
    %v1334 = vld [vmem:[%s743] sm:$0xf]
    %1336 = vst [vmem:[#allocation1] ss:$4 sm:$0xff] %v1333
    %v1337 = vld.sshfl [vmem:[#allocation1] sm:$0xff pattern:$0x73625140]
    %1338 = vrot.lane.b32.xlu0 %v1337, 64
    %v1339 = vpop.permute.xlu0 %1338
    %v1340 = vsel %vm206, %v1339, 0
    %1342 = vmatpush.msra.mxu0 0.0
    %1343 = vmatpush.msra.mxu0 0.0
    %1344 = vmatpush.msra.mxu0 0.0
    %1345 = vmatpush.msra.mxu0 0.0
    %1346 = vmatpush.msra.mxu0 0.0
    %1347 = vmatpush.msra.mxu0 0.0
    %1348 = vmatpush.msra.mxu0 0.0
    %1349 = vmatpush.msra.mxu0 0.0
    %1350 = vmatpush.msra.mxu0 0.0
    %1351 = vmatpush.msra.mxu0 0.0
    %1352 = vmatpush.msra.mxu0 0.0
    %1353 = vmatpush.msra.mxu0 0.0
    %1354 = vmatpush.msra.mxu0 %v1069
    %1355 = vmatpush.msra.mxu0 %v1068
    %1356 = vmatpush.msra.mxu0 %v1067
    %1357 = vmatpush.msra.mxu0 %v1066
    %1358 = vmatmul.f32.gmra.mxu0 %v1340
    %v1359 = vpop.f32.mrf.mxu0
    %v1360 = vadd.f32 0.0, %v1359
    %1361 = vdwg.mxu0
    %v1362 = vadd.f32 %v1334, %v1360
    %v1363 = vxor.u32 %v1362, 2147483648
    %v1364 = vmul.f32 %v1363, 1.442695
    %v1365 = vpow.pop %v1364
    %v1366 = vadd.f32 %v1365, 1.0
    %v1367 = vrcp.pop %v1366
    %v1368 = vmul.f32 %v1366, %v1367
    %v1369 = vsub.f32 1.0, %v1368
    %v1370 = vmul.f32 %v1367, %v1369
    %v1371 = vadd.f32 %v1367, %v1370
    %vm1372 = vweird.f32 %v1366
    %vm1373 = vweird.f32 %v1367
    %vm1374 = vmor %vm1372, %vm1373
    %v1375 = vsel %vm1374, %v1367, %v1371
    %v1376 = vand.u32 2147483647, %v1366
    %vm1377 = vcmp.eq.f32.partialorder %v1376, 8.507059e+37
    %v1378 = vand.u32 %v1366, 2147483648
    %v1379 = vor.u32 1.1754944e-38, %v1378
    %v1380 = vsel %vm1377, %v1379, %v1375
    %v1381 = vmul.f32 1.0, %v1380
    %v1382 = vtanh.pop %v1362
    %v1383 = vmul.f32 %v1381, %v1327
    %1385 = vrot.lane.b32.xlu0 %v1382, 32
    %v1386 = vpop.permute.xlu0 %1385
    %v1388 = vmul.f32 %v1381, %v1386
    %1390 = vrot.lane.b32.xlu0 %v1388, 32
    %v1391 = vpop.permute.xlu0 %1390
    %v1393 = vadd.f32 %v1383, %v1391
    %v1394 = vtanh.pop %v1393
    %1396 = vrot.lane.b32.xlu0 %v1394, 32
    %v1397 = vpop.permute.xlu0 %1396
    %v1399 = vmul.f32 %v1381, %v1397
    %v1400 = vld [vmem:[%s850] sm:$0xf]
    %1402 = vst [vmem:[#allocation1] ss:$4 sm:$0xff] %v1399
    %v1403 = vld.sshfl [vmem:[#allocation1] sm:$0xff pattern:$0x73625140]
    %1404 = vrot.lane.b32.xlu0 %v1403, 64
    %v1405 = vpop.permute.xlu0 %1404
    %v1406 = vsel %vm206, %v1405, 0
    %1408 = vmatpush.msra.mxu0 0.0
    %1409 = vmatpush.msra.mxu0 0.0
    %1410 = vmatpush.msra.mxu0 0.0
    %1411 = vmatpush.msra.mxu0 0.0
    %1412 = vmatpush.msra.mxu0 0.0
    %1413 = vmatpush.msra.mxu0 0.0
    %1414 = vmatpush.msra.mxu0 0.0
    %1415 = vmatpush.msra.mxu0 0.0
    %1416 = vmatpush.msra.mxu0 0.0
    %1417 = vmatpush.msra.mxu0 0.0
    %1418 = vmatpush.msra.mxu0 0.0
    %1419 = vmatpush.msra.mxu0 0.0
    %1420 = vmatpush.msra.mxu0 %v1069
    %1421 = vmatpush.msra.mxu0 %v1068
    %1422 = vmatpush.msra.mxu0 %v1067
    %1423 = vmatpush.msra.mxu0 %v1066
    %1424 = vmatmul.f32.gmra.mxu0 %v1406
    %v1425 = vpop.f32.mrf.mxu0
    %v1426 = vadd.f32 0.0, %v1425
    %1427 = vdwg.mxu0
    %v1428 = vadd.f32 %v1400, %v1426
    %v1429 = vxor.u32 %v1428, 2147483648
    %v1430 = vmul.f32 %v1429, 1.442695
    %v1431 = vpow.pop %v1430
    %v1432 = vadd.f32 %v1431, 1.0
    %v1433 = vrcp.pop %v1432
    %v1434 = vmul.f32 %v1432, %v1433
    %v1435 = vsub.f32 1.0, %v1434
    %v1436 = vmul.f32 %v1433, %v1435
    %v1437 = vadd.f32 %v1433, %v1436
    %vm1438 = vweird.f32 %v1432
    %vm1439 = vweird.f32 %v1433
    %vm1440 = vmor %vm1438, %vm1439
    %v1441 = vsel %vm1440, %v1433, %v1437
    %v1442 = vand.u32 2147483647, %v1432
    %vm1443 = vcmp.eq.f32.partialorder %v1442, 8.507059e+37
    %v1444 = vand.u32 %v1432, 2147483648
    %v1445 = vor.u32 1.1754944e-38, %v1444
    %v1446 = vsel %vm1443, %v1445, %v1441
    %v1447 = vmul.f32 1.0, %v1446
    %v1448 = vtanh.pop %v1428
    %v1449 = vmul.f32 %v1447, %v1393
    %1451 = vrot.lane.b32.xlu0 %v1448, 32
    %v1452 = vpop.permute.xlu0 %1451
    %v1454 = vmul.f32 %v1447, %v1452
    %1456 = vrot.lane.b32.xlu0 %v1454, 32
    %v1457 = vpop.permute.xlu0 %1456
    %v1459 = vadd.f32 %v1449, %v1457
    %v1460 = vtanh.pop %v1459
    %1462 = vrot.lane.b32.xlu0 %v1460, 32
    %v1463 = vpop.permute.xlu0 %1462
    %v1465 = vmul.f32 %v1447, %v1463
    %v1466 = vld [vmem:[%s957] sm:$0xf]
    %1468 = vst [vmem:[#allocation1] ss:$4 sm:$0xff] %v1465
    %v1469 = vld.sshfl [vmem:[#allocation1] sm:$0xff pattern:$0x73625140]
    %1470 = vrot.lane.b32.xlu0 %v1469, 64
    %v1471 = vpop.permute.xlu0 %1470
    %v1472 = vsel %vm206, %v1471, 0
    %1474 = vmatpush.msra.mxu0 0.0
    %1475 = vmatpush.msra.mxu0 0.0
    %1476 = vmatpush.msra.mxu0 0.0
    %1477 = vmatpush.msra.mxu0 0.0
    %1478 = vmatpush.msra.mxu0 0.0
    %1479 = vmatpush.msra.mxu0 0.0
    %1480 = vmatpush.msra.mxu0 0.0
    %1481 = vmatpush.msra.mxu0 0.0
    %1482 = vmatpush.msra.mxu0 0.0
    %1483 = vmatpush.msra.mxu0 0.0
    %1484 = vmatpush.msra.mxu0 0.0
    %1485 = vmatpush.msra.mxu0 0.0
    %1486 = vmatpush.msra.mxu0 %v1069
    %1487 = vmatpush.msra.mxu0 %v1068
    %1488 = vmatpush.msra.mxu0 %v1067
    %1489 = vmatpush.msra.mxu0 %v1066
    %1490 = vmatmul.f32.gmra.mxu0 %v1472
    %v1491 = vpop.f32.mrf.mxu0
    %v1492 = vadd.f32 0.0, %v1491
    %1493 = vdwg.mxu0
    %v1494 = vadd.f32 %v1466, %v1492
    %v1495 = vxor.u32 %v1494, 2147483648
    %v1496 = vmul.f32 %v1495, 1.442695
    %v1497 = vpow.pop %v1496
    %v1498 = vadd.f32 %v1497, 1.0
    %v1499 = vrcp.pop %v1498
    %v1500 = vmul.f32 %v1498, %v1499
    %v1501 = vsub.f32 1.0, %v1500
    %v1502 = vmul.f32 %v1499, %v1501
    %v1503 = vadd.f32 %v1499, %v1502
    %vm1504 = vweird.f32 %v1498
    %vm1505 = vweird.f32 %v1499
    %vm1506 = vmor %vm1504, %vm1505
    %v1507 = vsel %vm1506, %v1499, %v1503
    %v1508 = vand.u32 2147483647, %v1498
    %vm1509 = vcmp.eq.f32.partialorder %v1508, 8.507059e+37
    %v1510 = vand.u32 %v1498, 2147483648
    %v1511 = vor.u32 1.1754944e-38, %v1510
    %v1512 = vsel %vm1509, %v1511, %v1507
    %v1513 = vmul.f32 1.0, %v1512
    %v1514 = vtanh.pop %v1494
    %v1515 = vmul.f32 %v1513, %v1459
    %1517 = vrot.lane.b32.xlu0 %v1514, 32
    %v1518 = vpop.permute.xlu0 %1517
    %v1520 = vmul.f32 %v1513, %v1518
    %1522 = vrot.lane.b32.xlu0 %v1520, 32
    %v1523 = vpop.permute.xlu0 %1522
    %v1525 = vadd.f32 %v1515, %v1523
    %v1526 = vtanh.pop %v1525
    %1528 = vrot.lane.b32.xlu0 %v1526, 32
    %v1529 = vpop.permute.xlu0 %1528
    %v1531 = vmul.f32 %v1513, %v1529
    %v1532 = vld [vmem:[%s1064] sm:$0xf]
    %1534 = vst [vmem:[#allocation1] ss:$4 sm:$0xff] %v1531
    %v1535 = vld.sshfl [vmem:[#allocation1] sm:$0xff pattern:$0x73625140]
    %1536 = vrot.lane.b32.xlu0 %v1535, 64
    %v1537 = vpop.permute.xlu0 %1536
    %v1538 = vsel %vm206, %v1537, 0
    %1540 = vmatpush.msra.mxu0 0.0
    %1541 = vmatpush.msra.mxu0 0.0
    %1542 = vmatpush.msra.mxu0 0.0
    %1543 = vmatpush.msra.mxu0 0.0
    %1544 = vmatpush.msra.mxu0 0.0
    %1545 = vmatpush.msra.mxu0 0.0
    %1546 = vmatpush.msra.mxu0 0.0
    %1547 = vmatpush.msra.mxu0 0.0
    %1548 = vmatpush.msra.mxu0 0.0
    %1549 = vmatpush.msra.mxu0 0.0
    %1550 = vmatpush.msra.mxu0 0.0
    %1551 = vmatpush.msra.mxu0 0.0
    %1552 = vmatpush.msra.mxu0 %v1069
    %1553 = vmatpush.msra.mxu0 %v1068
    %1554 = vmatpush.msra.mxu0 %v1067
    %1555 = vmatpush.msra.mxu0 %v1066
    %1556 = vmatmul.f32.gmra.mxu0 %v1538
    %v1557 = vpop.f32.mrf.mxu0
    %v1558 = vadd.f32 0.0, %v1557
    %1559 = vdwg.mxu0
    %v1560 = vadd.f32 %v1532, %v1558
    %v1561 = vxor.u32 %v1560, 2147483648
    %v1562 = vmul.f32 %v1561, 1.442695
    %v1563 = vpow.pop %v1562
    %v1564 = vadd.f32 %v1563, 1.0
    %v1565 = vrcp.pop %v1564
    %v1566 = vmul.f32 %v1564, %v1565
    %v1567 = vsub.f32 1.0, %v1566
    %v1568 = vmul.f32 %v1565, %v1567
    %v1569 = vadd.f32 %v1565, %v1568
    %vm1570 = vweird.f32 %v1564
    %vm1571 = vweird.f32 %v1565
    %vm1572 = vmor %vm1570, %vm1571
    %v1573 = vsel %vm1572, %v1565, %v1569
    %v1574 = vand.u32 2147483647, %v1564
    %vm1575 = vcmp.eq.f32.partialorder %v1574, 8.507059e+37
    %v1576 = vand.u32 %v1564, 2147483648
    %v1577 = vor.u32 1.1754944e-38, %v1576
    %v1578 = vsel %vm1575, %v1577, %v1573
    %v1579 = vmul.f32 1.0, %v1578
    %v1580 = vtanh.pop %v1560
    %v1581 = vmul.f32 %v1579, %v1525
    %1583 = vrot.lane.b32.xlu0 %v1580, 32
    %v1584 = vpop.permute.xlu0 %1583
    %v1586 = vmul.f32 %v1579, %v1584
    %1588 = vrot.lane.b32.xlu0 %v1586, 32
    %v1589 = vpop.permute.xlu0 %1588
    %v1591 = vadd.f32 %v1581, %v1589
    %v1592 = vtanh.pop %v1591
    %1594 = vrot.lane.b32.xlu0 %v1592, 32
    %v1595 = vpop.permute.xlu0 %1594
    %v1597 = vmul.f32 %v1579, %v1595
    %1598 = vmatpush.msra.mxu0 0.0
    %1599 = vmatpush.msra.mxu0 0.0
    %1600 = vmatpush.msra.mxu0 0.0
    %1601 = vmatpush.msra.mxu0 0.0
    %1602 = vmatpush.msra.mxu0 0.0
    %1603 = vmatpush.msra.mxu0 0.0
    %1604 = vmatpush.msra.mxu0 0.0
    %1605 = vmatpush.msra.mxu0 0.0
    %1606 = vmatpush.msra.mxu0 0.0
    %1607 = vmatpush.msra.mxu0 0.0
    %1608 = vmatpush.msra.mxu0 0.0
    %1609 = vmatpush.msra.mxu0 0.0
    %1610 = vmatpush.msra.mxu0 %v1073
    %1611 = vmatpush.msra.mxu0 %v1072
    %1612 = vmatpush.msra.mxu0 %v1071
    %1613 = vmatpush.msra.mxu0 %v1070
    %1614 = vmatmul.f32.gmra.mxu0 %v1076
    %v1615 = vpop.f32.mrf.mxu0
    %v1616 = vadd.f32 0.0, %v1615
    %1617 = vdwg.mxu0
    %v1619 = vrot.slane %v1532, 2
    %v1621 = vadd.f32 %v1619, %v1616
    %v1622 = vxor.u32 %v1621, 2147483648
    %v1623 = vmul.f32 %v1622, 1.442695
    %v1624 = vpow.pop %v1623
    %v1625 = vadd.f32 %v1624, 1.0
    %v1626 = vrcp.pop %v1625
    %v1627 = vmul.f32 %v1625, %v1626
    %v1628 = vsub.f32 1.0, %v1627
    %v1629 = vmul.f32 %v1626, %v1628
    %v1630 = vadd.f32 %v1626, %v1629
    %vm1631 = vweird.f32 %v1625
    %vm1632 = vweird.f32 %v1626
    %vm1633 = vmor %vm1631, %vm1632
    %v1634 = vsel %vm1633, %v1626, %v1630
    %v1635 = vand.u32 2147483647, %v1625
    %vm1636 = vcmp.eq.f32.partialorder %v1635, 8.507059e+37
    %v1637 = vand.u32 %v1625, 2147483648
    %v1638 = vor.u32 1.1754944e-38, %v1637
    %v1639 = vsel %vm1636, %v1638, %v1634
    %v1640 = vmul.f32 1.0, %v1639
    %v1641 = vtanh.pop %v1621
    %v1642 = vmul.f32 %v1640, 0.0
    %1644 = vrot.lane.b32.xlu0 %v1641, 32
    %v1645 = vpop.permute.xlu0 %1644
    %v1647 = vmul.f32 %v1640, %v1645
    %1649 = vrot.lane.b32.xlu0 %v1647, 32
    %v1650 = vpop.permute.xlu0 %1649
    %v1652 = vadd.f32 %v1642, %v1650
    %v1653 = vtanh.pop %v1652
    %1655 = vrot.lane.b32.xlu0 %v1653, 32
    %v1656 = vpop.permute.xlu0 %1655
    %v1658 = vmul.f32 %v1640, %v1656
    %1660 = vst [vmem:[#allocation1] ss:$4 sm:$0xff] %v1658
    %v1661 = vld.sshfl [vmem:[#allocation1] sm:$0xff pattern:$0x73625140]
    %1662 = vrot.lane.b32.xlu0 %v1661, 64
    %v1663 = vpop.permute.xlu0 %1662
    %v1664 = vsel %vm206, %v1663, 0
    %1666 = vmatpush.msra.mxu0 0.0
    %1667 = vmatpush.msra.mxu0 0.0
    %1668 = vmatpush.msra.mxu0 0.0
    %1669 = vmatpush.msra.mxu0 0.0
    %1670 = vmatpush.msra.mxu0 0.0
    %1671 = vmatpush.msra.mxu0 0.0
    %1672 = vmatpush.msra.mxu0 0.0
    %1673 = vmatpush.msra.mxu0 0.0
    %1674 = vmatpush.msra.mxu0 0.0
    %1675 = vmatpush.msra.mxu0 0.0
    %1676 = vmatpush.msra.mxu0 0.0
    %1677 = vmatpush.msra.mxu0 0.0
    %1678 = vmatpush.msra.mxu0 %v1073
    %1679 = vmatpush.msra.mxu0 %v1072
    %1680 = vmatpush.msra.mxu0 %v1071
    %1681 = vmatpush.msra.mxu0 %v1070
    %1682 = vmatmul.f32.gmra.mxu0 %v1664
    %v1683 = vpop.f32.mrf.mxu0
    %v1684 = vadd.f32 0.0, %v1683
    %1685 = vdwg.mxu0
    %v1687 = vrot.slane %v1466, 2
    %v1689 = vadd.f32 %v1687, %v1684
    %v1690 = vxor.u32 %v1689, 2147483648
    %v1691 = vmul.f32 %v1690, 1.442695
    %v1692 = vpow.pop %v1691
    %v1693 = vadd.f32 %v1692, 1.0
    %v1694 = vrcp.pop %v1693
    %v1695 = vmul.f32 %v1693, %v1694
    %v1696 = vsub.f32 1.0, %v1695
    %v1697 = vmul.f32 %v1694, %v1696
    %v1698 = vadd.f32 %v1694, %v1697
    %vm1699 = vweird.f32 %v1693
    %vm1700 = vweird.f32 %v1694
    %vm1701 = vmor %vm1699, %vm1700
    %v1702 = vsel %vm1701, %v1694, %v1698
    %v1703 = vand.u32 2147483647, %v1693
    %vm1704 = vcmp.eq.f32.partialorder %v1703, 8.507059e+37
    %v1705 = vand.u32 %v1693, 2147483648
    %v1706 = vor.u32 1.1754944e-38, %v1705
    %v1707 = vsel %vm1704, %v1706, %v1702
    %v1708 = vmul.f32 1.0, %v1707
    %v1709 = vtanh.pop %v1689
    %v1710 = vmul.f32 %v1708, %v1652
    %1712 = vrot.lane.b32.xlu0 %v1709, 32
    %v1713 = vpop.permute.xlu0 %1712
    %v1715 = vmul.f32 %v1708, %v1713
    %1717 = vrot.lane.b32.xlu0 %v1715, 32
    %v1718 = vpop.permute.xlu0 %1717
    %v1720 = vadd.f32 %v1710, %v1718
    %v1721 = vtanh.pop %v1720
    %1723 = vrot.lane.b32.xlu0 %v1721, 32
    %v1724 = vpop.permute.xlu0 %1723
    %v1726 = vmul.f32 %v1708, %v1724
    %1728 = vst [vmem:[#allocation1] ss:$4 sm:$0xff] %v1726
    %v1729 = vld.sshfl [vmem:[#allocation1] sm:$0xff pattern:$0x73625140]
    %1730 = vrot.lane.b32.xlu0 %v1729, 64
    %v1731 = vpop.permute.xlu0 %1730
    %v1732 = vsel %vm206, %v1731, 0
    %1734 = vmatpush.msra.mxu0 0.0
    %1735 = vmatpush.msra.mxu0 0.0
    %1736 = vmatpush.msra.mxu0 0.0
    %1737 = vmatpush.msra.mxu0 0.0
    %1738 = vmatpush.msra.mxu0 0.0
    %1739 = vmatpush.msra.mxu0 0.0
    %1740 = vmatpush.msra.mxu0 0.0
    %1741 = vmatpush.msra.mxu0 0.0
    %1742 = vmatpush.msra.mxu0 0.0
    %1743 = vmatpush.msra.mxu0 0.0
    %1744 = vmatpush.msra.mxu0 0.0
    %1745 = vmatpush.msra.mxu0 0.0
    %1746 = vmatpush.msra.mxu0 %v1073
    %1747 = vmatpush.msra.mxu0 %v1072
    %1748 = vmatpush.msra.mxu0 %v1071
    %1749 = vmatpush.msra.mxu0 %v1070
    %1750 = vmatmul.f32.gmra.mxu0 %v1732
    %v1751 = vpop.f32.mrf.mxu0
    %v1752 = vadd.f32 0.0, %v1751
    %1753 = vdwg.mxu0
    %v1755 = vrot.slane %v1400, 2
    %v1757 = vadd.f32 %v1755, %v1752
    %v1758 = vxor.u32 %v1757, 2147483648
    %v1759 = vmul.f32 %v1758, 1.442695
    %v1760 = vpow.pop %v1759
    %v1761 = vadd.f32 %v1760, 1.0
    %v1762 = vrcp.pop %v1761
    %v1763 = vmul.f32 %v1761, %v1762
    %v1764 = vsub.f32 1.0, %v1763
    %v1765 = vmul.f32 %v1762, %v1764
    %v1766 = vadd.f32 %v1762, %v1765
    %vm1767 = vweird.f32 %v1761
    %vm1768 = vweird.f32 %v1762
    %vm1769 = vmor %vm1767, %vm1768
    %v1770 = vsel %vm1769, %v1762, %v1766
    %v1771 = vand.u32 2147483647, %v1761
    %vm1772 = vcmp.eq.f32.partialorder %v1771, 8.507059e+37
    %v1773 = vand.u32 %v1761, 2147483648
    %v1774 = vor.u32 1.1754944e-38, %v1773
    %v1775 = vsel %vm1772, %v1774, %v1770
    %v1776 = vmul.f32 1.0, %v1775
    %v1777 = vtanh.pop %v1757
    %v1778 = vmul.f32 %v1776, %v1720
    %1780 = vrot.lane.b32.xlu0 %v1777, 32
    %v1781 = vpop.permute.xlu0 %1780
    %v1783 = vmul.f32 %v1776, %v1781
    %1785 = vrot.lane.b32.xlu0 %v1783, 32
    %v1786 = vpop.permute.xlu0 %1785
    %v1788 = vadd.f32 %v1778, %v1786
    %v1789 = vtanh.pop %v1788
    %1791 = vrot.lane.b32.xlu0 %v1789, 32
    %v1792 = vpop.permute.xlu0 %1791
    %v1794 = vmul.f32 %v1776, %v1792
    %1796 = vst [vmem:[#allocation1] ss:$4 sm:$0xff] %v1794
    %v1797 = vld.sshfl [vmem:[#allocation1] sm:$0xff pattern:$0x73625140]
    %1798 = vrot.lane.b32.xlu0 %v1797, 64
    %v1799 = vpop.permute.xlu0 %1798
    %v1800 = vsel %vm206, %v1799, 0
    %1802 = vmatpush.msra.mxu0 0.0
    %1803 = vmatpush.msra.mxu0 0.0
    %1804 = vmatpush.msra.mxu0 0.0
    %1805 = vmatpush.msra.mxu0 0.0
    %1806 = vmatpush.msra.mxu0 0.0
    %1807 = vmatpush.msra.mxu0 0.0
    %1808 = vmatpush.msra.mxu0 0.0
    %1809 = vmatpush.msra.mxu0 0.0
    %1810 = vmatpush.msra.mxu0 0.0
    %1811 = vmatpush.msra.mxu0 0.0
    %1812 = vmatpush.msra.mxu0 0.0
    %1813 = vmatpush.msra.mxu0 0.0
    %1814 = vmatpush.msra.mxu0 %v1073
    %1815 = vmatpush.msra.mxu0 %v1072
    %1816 = vmatpush.msra.mxu0 %v1071
    %1817 = vmatpush.msra.mxu0 %v1070
    %1818 = vmatmul.f32.gmra.mxu0 %v1800
    %v1819 = vpop.f32.mrf.mxu0
    %v1820 = vadd.f32 0.0, %v1819
    %1821 = vdwg.mxu0
    %v1823 = vrot.slane %v1334, 2
    %v1825 = vadd.f32 %v1823, %v1820
    %v1826 = vxor.u32 %v1825, 2147483648
    %v1827 = vmul.f32 %v1826, 1.442695
    %v1828 = vpow.pop %v1827
    %v1829 = vadd.f32 %v1828, 1.0
    %v1830 = vrcp.pop %v1829
    %v1831 = vmul.f32 %v1829, %v1830
    %v1832 = vsub.f32 1.0, %v1831
    %v1833 = vmul.f32 %v1830, %v1832
    %v1834 = vadd.f32 %v1830, %v1833
    %vm1835 = vweird.f32 %v1829
    %vm1836 = vweird.f32 %v1830
    %vm1837 = vmor %vm1835, %vm1836
    %v1838 = vsel %vm1837, %v1830, %v1834
    %v1839 = vand.u32 2147483647, %v1829
    %vm1840 = vcmp.eq.f32.partialorder %v1839, 8.507059e+37
    %v1841 = vand.u32 %v1829, 2147483648
    %v1842 = vor.u32 1.1754944e-38, %v1841
    %v1843 = vsel %vm1840, %v1842, %v1838
    %v1844 = vmul.f32 1.0, %v1843
    %v1845 = vtanh.pop %v1825
    %v1846 = vmul.f32 %v1844, %v1788
    %1848 = vrot.lane.b32.xlu0 %v1845, 32
    %v1849 = vpop.permute.xlu0 %1848
    %v1851 = vmul.f32 %v1844, %v1849
    %1853 = vrot.lane.b32.xlu0 %v1851, 32
    %v1854 = vpop.permute.xlu0 %1853
    %v1856 = vadd.f32 %v1846, %v1854
    %v1857 = vtanh.pop %v1856
    %1859 = vrot.lane.b32.xlu0 %v1857, 32
    %v1860 = vpop.permute.xlu0 %1859
    %v1862 = vmul.f32 %v1844, %v1860
    %1864 = vst [vmem:[#allocation1] ss:$4 sm:$0xff] %v1862
    %v1865 = vld.sshfl [vmem:[#allocation1] sm:$0xff pattern:$0x73625140]
    %1866 = vrot.lane.b32.xlu0 %v1865, 64
    %v1867 = vpop.permute.xlu0 %1866
    %v1868 = vsel %vm206, %v1867, 0
    %1870 = vmatpush.msra.mxu0 0.0
    %1871 = vmatpush.msra.mxu0 0.0
    %1872 = vmatpush.msra.mxu0 0.0
    %1873 = vmatpush.msra.mxu0 0.0
    %1874 = vmatpush.msra.mxu0 0.0
    %1875 = vmatpush.msra.mxu0 0.0
    %1876 = vmatpush.msra.mxu0 0.0
    %1877 = vmatpush.msra.mxu0 0.0
    %1878 = vmatpush.msra.mxu0 0.0
    %1879 = vmatpush.msra.mxu0 0.0
    %1880 = vmatpush.msra.mxu0 0.0
    %1881 = vmatpush.msra.mxu0 0.0
    %1882 = vmatpush.msra.mxu0 %v1073
    %1883 = vmatpush.msra.mxu0 %v1072
    %1884 = vmatpush.msra.mxu0 %v1071
    %1885 = vmatpush.msra.mxu0 %v1070
    %1886 = vmatmul.f32.gmra.mxu0 %v1868
    %v1887 = vpop.f32.mrf.mxu0
    %v1888 = vadd.f32 0.0, %v1887
    %1889 = vdwg.mxu0
    %v1891 = vrot.slane %v1268, 2
    %v1893 = vadd.f32 %v1891, %v1888
    %v1894 = vxor.u32 %v1893, 2147483648
    %v1895 = vmul.f32 %v1894, 1.442695
    %v1896 = vpow.pop %v1895
    %v1897 = vadd.f32 %v1896, 1.0
    %v1898 = vrcp.pop %v1897
    %v1899 = vmul.f32 %v1897, %v1898
    %v1900 = vsub.f32 1.0, %v1899
    %v1901 = vmul.f32 %v1898, %v1900
    %v1902 = vadd.f32 %v1898, %v1901
    %vm1903 = vweird.f32 %v1897
    %vm1904 = vweird.f32 %v1898
    %vm1905 = vmor %vm1903, %vm1904
    %v1906 = vsel %vm1905, %v1898, %v1902
    %v1907 = vand.u32 2147483647, %v1897
    %vm1908 = vcmp.eq.f32.partialorder %v1907, 8.507059e+37
    %v1909 = vand.u32 %v1897, 2147483648
    %v1910 = vor.u32 1.1754944e-38, %v1909
    %v1911 = vsel %vm1908, %v1910, %v1906
    %v1912 = vmul.f32 1.0, %v1911
    %v1913 = vtanh.pop %v1893
    %v1914 = vmul.f32 %v1912, %v1856
    %1916 = vrot.lane.b32.xlu0 %v1913, 32
    %v1917 = vpop.permute.xlu0 %1916
    %v1919 = vmul.f32 %v1912, %v1917
    %1921 = vrot.lane.b32.xlu0 %v1919, 32
    %v1922 = vpop.permute.xlu0 %1921
    %v1924 = vadd.f32 %v1914, %v1922
    %v1925 = vtanh.pop %v1924
    %1927 = vrot.lane.b32.xlu0 %v1925, 32
    %v1928 = vpop.permute.xlu0 %1927
    %v1930 = vmul.f32 %v1912, %v1928
    %1932 = vst [vmem:[#allocation1] ss:$4 sm:$0xff] %v1930
    %v1933 = vld.sshfl [vmem:[#allocation1] sm:$0xff pattern:$0x73625140]
    %1934 = vrot.lane.b32.xlu0 %v1933, 64
    %v1935 = vpop.permute.xlu0 %1934
    %v1936 = vsel %vm206, %v1935, 0
    %1938 = vmatpush.msra.mxu0 0.0
    %1939 = vmatpush.msra.mxu0 0.0
    %1940 = vmatpush.msra.mxu0 0.0
    %1941 = vmatpush.msra.mxu0 0.0
    %1942 = vmatpush.msra.mxu0 0.0
    %1943 = vmatpush.msra.mxu0 0.0
    %1944 = vmatpush.msra.mxu0 0.0
    %1945 = vmatpush.msra.mxu0 0.0
    %1946 = vmatpush.msra.mxu0 0.0
    %1947 = vmatpush.msra.mxu0 0.0
    %1948 = vmatpush.msra.mxu0 0.0
    %1949 = vmatpush.msra.mxu0 0.0
    %1950 = vmatpush.msra.mxu0 %v1073
    %1951 = vmatpush.msra.mxu0 %v1072
    %1952 = vmatpush.msra.mxu0 %v1071
    %1953 = vmatpush.msra.mxu0 %v1070
    %1954 = vmatmul.f32.gmra.mxu0 %v1936
    %v1955 = vpop.f32.mrf.mxu0
    %v1956 = vadd.f32 0.0, %v1955
    %1957 = vdwg.mxu0
    %v1959 = vrot.slane %v1202, 2
    %v1961 = vadd.f32 %v1959, %v1956
    %v1962 = vxor.u32 %v1961, 2147483648
    %v1963 = vmul.f32 %v1962, 1.442695
    %v1964 = vpow.pop %v1963
    %v1965 = vadd.f32 %v1964, 1.0
    %v1966 = vrcp.pop %v1965
    %v1967 = vmul.f32 %v1965, %v1966
    %v1968 = vsub.f32 1.0, %v1967
    %v1969 = vmul.f32 %v1966, %v1968
    %v1970 = vadd.f32 %v1966, %v1969
    %vm1971 = vweird.f32 %v1965
    %vm1972 = vweird.f32 %v1966
    %vm1973 = vmor %vm1971, %vm1972
    %v1974 = vsel %vm1973, %v1966, %v1970
    %v1975 = vand.u32 2147483647, %v1965
    %vm1976 = vcmp.eq.f32.partialorder %v1975, 8.507059e+37
    %v1977 = vand.u32 %v1965, 2147483648
    %v1978 = vor.u32 1.1754944e-38, %v1977
    %v1979 = vsel %vm1976, %v1978, %v1974
    %v1980 = vmul.f32 1.0, %v1979
    %v1981 = vtanh.pop %v1961
    %v1982 = vmul.f32 %v1980, %v1924
    %1984 = vrot.lane.b32.xlu0 %v1981, 32
    %v1985 = vpop.permute.xlu0 %1984
    %v1987 = vmul.f32 %v1980, %v1985
    %1989 = vrot.lane.b32.xlu0 %v1987, 32
    %v1990 = vpop.permute.xlu0 %1989
    %v1992 = vadd.f32 %v1982, %v1990
    %v1993 = vtanh.pop %v1992
    %1995 = vrot.lane.b32.xlu0 %v1993, 32
    %v1996 = vpop.permute.xlu0 %1995
    %v1998 = vmul.f32 %v1980, %v1996
    %2000 = vst [vmem:[#allocation1] ss:$4 sm:$0xff] %v1998
    %v2001 = vld.sshfl [vmem:[#allocation1] sm:$0xff pattern:$0x73625140]
    %2002 = vrot.lane.b32.xlu0 %v2001, 64
    %v2003 = vpop.permute.xlu0 %2002
    %v2004 = vsel %vm206, %v2003, 0
    %2006 = vmatpush.msra.mxu0 0.0
    %2007 = vmatpush.msra.mxu0 0.0
    %2008 = vmatpush.msra.mxu0 0.0
    %2009 = vmatpush.msra.mxu0 0.0
    %2010 = vmatpush.msra.mxu0 0.0
    %2011 = vmatpush.msra.mxu0 0.0
    %2012 = vmatpush.msra.mxu0 0.0
    %2013 = vmatpush.msra.mxu0 0.0
    %2014 = vmatpush.msra.mxu0 0.0
    %2015 = vmatpush.msra.mxu0 0.0
    %2016 = vmatpush.msra.mxu0 0.0
    %2017 = vmatpush.msra.mxu0 0.0
    %2018 = vmatpush.msra.mxu0 %v1073
    %2019 = vmatpush.msra.mxu0 %v1072
    %2020 = vmatpush.msra.mxu0 %v1071
    %2021 = vmatpush.msra.mxu0 %v1070
    %2022 = vmatmul.f32.gmra.mxu0 %v2004
    %v2023 = vpop.f32.mrf.mxu0
    %v2024 = vadd.f32 0.0, %v2023
    %2025 = vdwg.mxu0
    %v2027 = vrot.slane %v1136, 2
    %v2029 = vadd.f32 %v2027, %v2024
    %v2030 = vxor.u32 %v2029, 2147483648
    %v2031 = vmul.f32 %v2030, 1.442695
    %v2032 = vpow.pop %v2031
    %v2033 = vadd.f32 %v2032, 1.0
    %v2034 = vrcp.pop %v2033
    %v2035 = vmul.f32 %v2033, %v2034
    %v2036 = vsub.f32 1.0, %v2035
    %v2037 = vmul.f32 %v2034, %v2036
    %v2038 = vadd.f32 %v2034, %v2037
    %vm2039 = vweird.f32 %v2033
    %vm2040 = vweird.f32 %v2034
    %vm2041 = vmor %vm2039, %vm2040
    %v2042 = vsel %vm2041, %v2034, %v2038
    %v2043 = vand.u32 2147483647, %v2033
    %vm2044 = vcmp.eq.f32.partialorder %v2043, 8.507059e+37
    %v2045 = vand.u32 %v2033, 2147483648
    %v2046 = vor.u32 1.1754944e-38, %v2045
    %v2047 = vsel %vm2044, %v2046, %v2042
    %v2048 = vmul.f32 1.0, %v2047
    %v2049 = vtanh.pop %v2029
    %v2050 = vmul.f32 %v2048, %v1992
    %2052 = vrot.lane.b32.xlu0 %v2049, 32
    %v2053 = vpop.permute.xlu0 %2052
    %v2055 = vmul.f32 %v2048, %v2053
    %2057 = vrot.lane.b32.xlu0 %v2055, 32
    %v2058 = vpop.permute.xlu0 %2057
    %v2060 = vadd.f32 %v2050, %v2058
    %v2061 = vtanh.pop %v2060
    %2063 = vrot.lane.b32.xlu0 %v2061, 32
    %v2064 = vpop.permute.xlu0 %2063
    %v2066 = vmul.f32 %v2048, %v2064
    %2068 = vst [vmem:[#allocation1] ss:$4 sm:$0xff] %v2066
    %v2069 = vld.sshfl [vmem:[#allocation1] sm:$0xff pattern:$0x73625140]
    %2070 = vrot.lane.b32.xlu0 %v2069, 64
    %v2071 = vpop.permute.xlu0 %2070
    %v2072 = vsel %vm206, %v2071, 0
    %2074 = vmatpush.msra.mxu0 0.0
    %2075 = vmatpush.msra.mxu0 0.0
    %2076 = vmatpush.msra.mxu0 0.0
    %2077 = vmatpush.msra.mxu0 0.0
    %2078 = vmatpush.msra.mxu0 0.0
    %2079 = vmatpush.msra.mxu0 0.0
    %2080 = vmatpush.msra.mxu0 0.0
    %2081 = vmatpush.msra.mxu0 0.0
    %2082 = vmatpush.msra.mxu0 0.0
    %2083 = vmatpush.msra.mxu0 0.0
    %2084 = vmatpush.msra.mxu0 0.0
    %2085 = vmatpush.msra.mxu0 0.0
    %2086 = vmatpush.msra.mxu0 %v1073
    %2087 = vmatpush.msra.mxu0 %v1072
    %2088 = vmatpush.msra.mxu0 %v1071
    %2089 = vmatpush.msra.mxu0 %v1070
    %2090 = vmatmul.f32.gmra.mxu0 %v2072
    %v2091 = vpop.f32.mrf.mxu0
    %v2092 = vadd.f32 0.0, %v2091
    %2093 = vdwg.mxu0
    %v2095 = vrot.slane %v1074, 2
    %v2097 = vadd.f32 %v2095, %v2092
    %v2098 = vxor.u32 %v2097, 2147483648
    %v2099 = vmul.f32 %v2098, 1.442695
    %v2100 = vpow.pop %v2099
    %v2101 = vadd.f32 %v2100, 1.0
    %v2102 = vrcp.pop %v2101
    %v2103 = vmul.f32 %v2101, %v2102
    %v2104 = vsub.f32 1.0, %v2103
    %v2105 = vmul.f32 %v2102, %v2104
    %v2106 = vadd.f32 %v2102, %v2105
    %vm2107 = vweird.f32 %v2101
    %vm2108 = vweird.f32 %v2102
    %vm2109 = vmor %vm2107, %vm2108
    %v2110 = vsel %vm2109, %v2102, %v2106
    %v2111 = vand.u32 2147483647, %v2101
    %vm2112 = vcmp.eq.f32.partialorder %v2111, 8.507059e+37
    %v2113 = vand.u32 %v2101, 2147483648
    %v2114 = vor.u32 1.1754944e-38, %v2113
    %v2115 = vsel %vm2112, %v2114, %v2110
    %v2116 = vmul.f32 1.0, %v2115
    %v2117 = vtanh.pop %v2097
    %v2118 = vmul.f32 %v2116, %v2060
    %2120 = vrot.lane.b32.xlu0 %v2117, 32
    %v2121 = vpop.permute.xlu0 %2120
    %v2123 = vmul.f32 %v2116, %v2121
    %2125 = vrot.lane.b32.xlu0 %v2123, 32
    %v2126 = vpop.permute.xlu0 %2125
    %v2128 = vadd.f32 %v2118, %v2126
    %v2129 = vtanh.pop %v2128
    %2131 = vrot.lane.b32.xlu0 %v2129, 32
    %v2132 = vpop.permute.xlu0 %2131
    %v2134 = vmul.f32 %v2116, %v2132
    %v2135 = vld [vmem:[#allocation12] sm:$0xff]
    %v2136 = vld [vmem:[#allocation12 + $0x8] sm:$0xff]
    %v2137 = vld [vmem:[#allocation12 + $0x10] sm:$0xff]
    %v2138 = vld [vmem:[#allocation12 + $0x18] sm:$0xff]
    %v2139 = vld [vmem:[#allocation14] sm:$0xff]
    %v2140 = vld [vmem:[#allocation14 + $0x8] sm:$0xff]
    %v2141 = vld [vmem:[#allocation14 + $0x10] sm:$0xff]
    %v2142 = vld [vmem:[#allocation14 + $0x18] sm:$0xff]
    %2144 = vst [vmem:[#allocation1] ss:$4 sm:$0xff] %v2134
    %v2145 = vld.sshfl [vmem:[#allocation1] sm:$0xff pattern:$0x73625140]
    %2146 = vrot.lane.b32.xlu0 %v2145, 64
    %v2147 = vpop.permute.xlu0 %2146
    %v2148 = vsel %vm206, %v2147, 0
    %2150 = vmatpush.msra.mxu0 0.0
    %2151 = vmatpush.msra.mxu0 0.0
    %2152 = vmatpush.msra.mxu0 0.0
    %2153 = vmatpush.msra.mxu0 0.0
    %2154 = vmatpush.msra.mxu0 0.0
    %2155 = vmatpush.msra.mxu0 0.0
    %2156 = vmatpush.msra.mxu0 0.0
    %2157 = vmatpush.msra.mxu0 0.0
    %2158 = vmatpush.msra.mxu0 0.0
    %2159 = vmatpush.msra.mxu0 0.0
    %2160 = vmatpush.msra.mxu0 0.0
    %2161 = vmatpush.msra.mxu0 0.0
    %2162 = vmatpush.msra.mxu0 %v2142
    %2163 = vmatpush.msra.mxu0 %v2141
    %2164 = vmatpush.msra.mxu0 %v2140
    %2165 = vmatpush.msra.mxu0 %v2139
    %2166 = vmatmul.f32.gmra.mxu0 %v2148
    %v2167 = vpop.f32.mrf.mxu0
    %v2168 = vadd.f32 0.0, %v2167
    %2169 = vdwg.mxu0
    %2171 = vst [vmem:[#allocation1] ss:$4 sm:$0xff] %v1597
    %v2172 = vld.sshfl [vmem:[#allocation1] sm:$0xff pattern:$0x73625140]
    %2173 = vrot.lane.b32.xlu0 %v2172, 64
    %v2174 = vpop.permute.xlu0 %2173
    %v2175 = vsel %vm206, %v2174, 0
    %2177 = vmatpush.msra.mxu0 0.0
    %2178 = vmatpush.msra.mxu0 0.0
    %2179 = vmatpush.msra.mxu0 0.0
    %2180 = vmatpush.msra.mxu0 0.0
    %2181 = vmatpush.msra.mxu0 0.0
    %2182 = vmatpush.msra.mxu0 0.0
    %2183 = vmatpush.msra.mxu0 0.0
    %2184 = vmatpush.msra.mxu0 0.0
    %2185 = vmatpush.msra.mxu0 0.0
    %2186 = vmatpush.msra.mxu0 0.0
    %2187 = vmatpush.msra.mxu0 0.0
    %2188 = vmatpush.msra.mxu0 0.0
    %2189 = vmatpush.msra.mxu0 %v2138
    %2190 = vmatpush.msra.mxu0 %v2137
    %2191 = vmatpush.msra.mxu0 %v2136
    %2192 = vmatpush.msra.mxu0 %v2135
    %2193 = vmatmul.f32.gmra.mxu0 %v2175
    %v2194 = vpop.f32.mrf.mxu0
    %v2195 = vadd.f32 %v2168, %v2194
    %2196 = vdwg.mxu0
    %v2197 = vld [vmem:[%s9] sm:$0x1]
    %v2199 = vperm.slane %v2197, 0
    %v2201 = vadd.f32 %v2195, %v2199
    %vm2202 = vcmask 254976
    %2203 = vst.msk [vmem:[#allocation18] sm:$0x3] %vm2202, %v2201
    %v2204 = vld [vmem:[#allocation15] sm:$0xff]
    %v2205 = vld [vmem:[#allocation15 + $0x8] sm:$0xff]
    %v2206 = vld [vmem:[#allocation15 + $0x10] sm:$0xff]
    %v2207 = vld [vmem:[#allocation15 + $0x18] sm:$0xff]
    %v2208 = vld [vmem:[#allocation17] sm:$0xff]
    %v2209 = vld [vmem:[#allocation17 + $0x8] sm:$0xff]
    %v2210 = vld [vmem:[#allocation17 + $0x10] sm:$0xff]
    %v2211 = vld [vmem:[#allocation17 + $0x18] sm:$0xff]
    %2213 = vst [vmem:[#allocation1] ss:$4 sm:$0xff] %v2128
    %v2214 = vld.sshfl [vmem:[#allocation1] sm:$0xff pattern:$0x73625140]
    %2215 = vrot.lane.b32.xlu0 %v2214, 96
    %v2216 = vpop.permute.xlu0 %2215
    %v2217 = vsel %vm206, %v2216, 0
    %2219 = vmatpush.msra.mxu0 0.0
    %2220 = vmatpush.msra.mxu0 0.0
    %2221 = vmatpush.msra.mxu0 0.0
    %2222 = vmatpush.msra.mxu0 0.0
    %2223 = vmatpush.msra.mxu0 0.0
    %2224 = vmatpush.msra.mxu0 0.0
    %2225 = vmatpush.msra.mxu0 0.0
    %2226 = vmatpush.msra.mxu0 0.0
    %2227 = vmatpush.msra.mxu0 0.0
    %2228 = vmatpush.msra.mxu0 0.0
    %2229 = vmatpush.msra.mxu0 0.0
    %2230 = vmatpush.msra.mxu0 0.0
    %2231 = vmatpush.msra.mxu0 %v2211
    %2232 = vmatpush.msra.mxu0 %v2210
    %2233 = vmatpush.msra.mxu0 %v2209
    %2234 = vmatpush.msra.mxu0 %v2208
    %2235 = vmatmul.f32.gmra.mxu0 %v2217
    %v2236 = vpop.f32.mrf.mxu0
    %v2237 = vadd.f32 0.0, %v2236
    %2238 = vdwg.mxu0
    %2240 = vst [vmem:[#allocation1] ss:$4 sm:$0xff] %v1591
    %v2241 = vld.sshfl [vmem:[#allocation1] sm:$0xff pattern:$0x73625140]
    %2242 = vrot.lane.b32.xlu0 %v2241, 96
    %v2243 = vpop.permute.xlu0 %2242
    %v2244 = vsel %vm206, %v2243, 0
    %2246 = vmatpush.msra.mxu0 0.0
    %2247 = vmatpush.msra.mxu0 0.0
    %2248 = vmatpush.msra.mxu0 0.0
    %2249 = vmatpush.msra.mxu0 0.0
    %2250 = vmatpush.msra.mxu0 0.0
    %2251 = vmatpush.msra.mxu0 0.0
    %2252 = vmatpush.msra.mxu0 0.0
    %2253 = vmatpush.msra.mxu0 0.0
    %2254 = vmatpush.msra.mxu0 0.0
    %2255 = vmatpush.msra.mxu0 0.0
    %2256 = vmatpush.msra.mxu0 0.0
    %2257 = vmatpush.msra.mxu0 0.0
    %2258 = vmatpush.msra.mxu0 %v2207
    %2259 = vmatpush.msra.mxu0 %v2206
    %2260 = vmatpush.msra.mxu0 %v2205
    %2261 = vmatpush.msra.mxu0 %v2204
    %2262 = vmatmul.f32.gmra.mxu0 %v2244
    %v2263 = vpop.f32.mrf.mxu0
    %v2264 = vadd.f32 %v2237, %v2263
    %2265 = vdwg.mxu0
    %v2266 = vld [vmem:[%s12] sm:$0x1]
    %v2268 = vperm.slane %v2266, 0
    %v2270 = vadd.f32 %v2264, %v2268
    %2271 = vst.msk [vmem:[#allocation19] sm:$0x3] %vm2202, %v2270
    // Predicated region
    $region90: #{tpu_custom_call.1} parent=1 // pred_check
      _
    $region91: #{tpu_custom_call.1} parent=1 // pred_check_branch
      %2273 = sbr.rel (0) target = $region93
    $region92: #{tpu_custom_call.1} parent=1 // pred_region
      %2275 = vsyncadd [#allocation5], 0
      %s2277 = sshll.u32 [#allocation18], 4
      %s2278 = int_to_ptr.vmem [resolvable:$true] %s2277
      %s2279 = sshll.u32 %s13, 4
      %s2280 = int_to_ptr.hbm [resolvable:$true] %s2279
      %2282 = dma.vmem_to_hbm [thread:$0]  %s2278, 32, %s2280, [#allocation5]
    $region93: #{tpu_custom_call.1} parent=1 // pred_fallthru
      _
    // Predicated region
    $region94: #{tpu_custom_call.1} parent=1 // pred_check
      _
    $region95: #{tpu_custom_call.1} parent=1 // pred_check_branch
      %2284 = sbr.rel (0) target = $region97
    $region96: #{tpu_custom_call.1} parent=1 // pred_region
      %2286 = vsyncadd [#allocation20], 0
      %s2288 = sshll.u32 [#allocation19], 4
      %s2289 = int_to_ptr.vmem [resolvable:$true] %s2288
      %s2290 = sshll.u32 %s14, 4
      %s2291 = int_to_ptr.hbm [resolvable:$true] %s2290
      %2293 = dma.vmem_to_hbm [thread:$0]  %s2289, 32, %s2291, [#allocation20]
    $region97: #{tpu_custom_call.1} parent=1 // pred_fallthru
      _
    // Predicated region
    $region98: #{tpu_custom_call.1} parent=1 // pred_check
      _
    $region99: #{tpu_custom_call.1} parent=1 // pred_check_branch
      %2295 = sbr.rel (0) target = $region101
    $region100: #{tpu_custom_call.1} parent=1 // pred_region
      %2297 = dma.done [#allocation5], 32
    $region101: #{tpu_custom_call.1} parent=1 // pred_fallthru
      _
    // Predicated region
    $region102: #{tpu_custom_call.1} parent=1 // pred_check
      _
    $region103: #{tpu_custom_call.1} parent=1 // pred_check_branch
      %2299 = sbr.rel (0) target = $region105
    $region104: #{tpu_custom_call.1} parent=1 // pred_region
      %2301 = dma.done [#allocation20], 32
    $region105: #{tpu_custom_call.1} parent=1 // pred_fallthru
      _
    %2302 = vsyncpa [#allocation4], 1
    %2303 = vsyncpa [#allocation7], 1
    %2304 = vsyncpa [#allocation10], 1
    %2305 = vsyncpa [#allocation13], 1
    %2306 = vsyncpa [#allocation16], 1
    %2307 = vsyncpa [#allocation5], 1
    %2308 = vsyncpa [#allocation20], 1

</llo_original>
